<compile_context>
chip_gen: v6e
topology: v6e:2x2x1
jax: 0.10.0
libtpu: 0.0.40
codegen_flags: <defaults>
</compile_context>

<pallas_src>
import jax
import jax.numpy as jnp
from jax import lax
from jax.experimental import pallas as pl
from jax.experimental.pallas import tpu as pltpu

LEAK = 0.01
E_PAD = 128            # lane-dense padded width for the n_emo logits


def _leaky(x):
    return jnp.where(x > 0, x, LEAK * x)


def _full_spec(shape):
    """Whole-array block, pinned to block (0, ..., 0) for every grid step."""
    return pl.BlockSpec(shape, lambda i: (0,) * len(shape))


# ---------------- Fused Pallas kernel ----------------

def featdis_kernel(xr_ref, w1_ref, b1_ref, w2_ref, b2_ref, w3_ref, b3_ref,
                   w4_ref, b4_ref, w5_ref, o_ref):
    """Whole FeatDisNet forward for one batch tile.

    xr_ref : (HP, TB, HP*Cin) bf16  zero-padded input rows, (w, c) in lanes
    w1_ref : (4, 4*Cin, Cin)  bf16  conv1 weights, one (kw,ci)-flat GEMM per kh
    w2..w4 : (Cl, Cl/2)       bf16  1x1 convs as plain GEMMs
    w5_ref : (9, C4, E_PAD)   bf16  final 3x3 conv per spatial position (lane-padded)
    b*_ref : (1, Cl)          f32
    o_ref  : (TB, E_PAD)      f32   lane-dense logits (cols >= n_emo are zero)
    """
    hp = xr_ref.shape[0]                 # padded spatial extent (9)
    cin = w1_ref.shape[1] // 4           # 64
    ho_n = (hp - 4) // 2 + 1             # conv1 output spatial extent (3)

    # Hoist small weight / bias loads out of the position loop.
    b1 = b1_ref[...]
    b2 = b2_ref[...]
    b3 = b3_ref[...]
    b4 = b4_ref[...]
    w2 = w2_ref[...]
    w3 = w3_ref[...]
    w4 = w4_ref[...]

    out = None
    for p in range(ho_n * ho_n):         # 9 output positions of the 4x4 conv
        ho, wo = p // ho_n, p % ho_n

        # conv1 at (ho, wo): 4 row-tap GEMMs contracting (kw, ci) = 4*cin each,
        # f32 accumulation. Lane-slice starts (2*wo*cin) are multiples of 128.
        acc = None
        for kh in range(4):
            xs = xr_ref[2 * ho + kh, :, pl.ds(2 * wo * cin, 4 * cin)]  # (TB, 4*cin)
            d = jnp.dot(xs, w1_ref[kh], preferred_element_type=jnp.float32)
            acc = d if acc is None else acc + d
        h = _leaky(acc + b1)

        # repeat_num x (1x1 conv + LeakyReLU): bf16 GEMMs, f32 accumulate.
        h = _leaky(jnp.dot(h.astype(jnp.bfloat16), w2,
                           preferred_element_type=jnp.float32) + b2)
        h = _leaky(jnp.dot(h.astype(jnp.bfloat16), w3,
                           preferred_element_type=jnp.float32) + b3)
        h = _leaky(jnp.dot(h.astype(jnp.bfloat16), w4,
                           preferred_element_type=jnp.float32) + b4)

        # Final bias-free 3x3 conv over the full 3x3 map == sum over positions.
        contrib = jnp.dot(h.astype(jnp.bfloat16), w5_ref[p],
                          preferred_element_type=jnp.float32)
        out = contrib if out is None else out + contrib

    o_ref[...] = out


# ---------------- JAX wrapper ----------------

def _pick_batch_tile(n):
    for cand in (256, 128, 64, 32, 16):
        if n >= cand:
            return cand
    return 8


def featdisnet_forward(x_nchw, params, *, block_n=None):
    """x_nchw: (N, Cin, H, W) f32. Returns squeeze of (N, n_emo) like the module."""
    w1, b1, w2, b2, w3, b3, w4, b4, w5 = params      # conv weights in HWIO
    n, cin, hh, ww = x_nchw.shape
    assert hh == ww, "square feature maps expected"
    hp = hh + 2                                      # pad = 1 each side
    ho_n = (hp - 4) // 2 + 1                         # conv1 output spatial (3)
    c1 = w1.shape[-1]
    c4 = w4.shape[-1]
    n_emo = w5.shape[-1]
    # final conv must cover the whole post-conv1 map (feat_size=7 -> 3x3 kernel)
    assert w5.shape[0] == ho_n and w5.shape[1] == ho_n

    if block_n is None:
        block_n = _pick_batch_tile(n)
    n_pad = int(pl.cdiv(n, block_n)) * block_n

    # Layout plumbing only (no patch duplication): zero-pad batch & spatial,
    # NCHW -> (H, N, W, C) -> (H, N, W*C); cast the GEMM operand to bf16.
    xb = jnp.pad(x_nchw, ((0, n_pad - n), (0, 0), (1, 1), (1, 1)))   # (Np,C,9,9)
    xr = jnp.transpose(xb, (2, 0, 3, 1)).reshape(hp, n_pad, hp * cin)
    xr = xr.astype(jnp.bfloat16)

    # Weights as bf16 GEMM operands; biases stay f32.
    w1r = w1.reshape(4, 4 * cin, c1).astype(jnp.bfloat16)            # (kh, kw*ci, co)
    w2m = w2.reshape(-1, w2.shape[-1]).astype(jnp.bfloat16)
    w3m = w3.reshape(-1, w3.shape[-1]).astype(jnp.bfloat16)
    w4m = w4.reshape(-1, w4.shape[-1]).astype(jnp.bfloat16)
    w5r = jnp.pad(w5.reshape(ho_n * ho_n, c4, n_emo),
                  ((0, 0), (0, 0), (0, E_PAD - n_emo))).astype(jnp.bfloat16)
    b1r, b2r, b3r, b4r = (b.reshape(1, -1).astype(jnp.float32)
                          for b in (b1, b2, b3, b4))

    out_pad = pl.pallas_call(
        featdis_kernel,
        out_shape=jax.ShapeDtypeStruct((n_pad, E_PAD), jnp.float32),
        grid=(n_pad // block_n,),
        in_specs=[
            pl.BlockSpec((hp, block_n, hp * cin), lambda i: (0, i, 0)),
            _full_spec(w1r.shape), _full_spec(b1r.shape),
            _full_spec(w2m.shape), _full_spec(b2r.shape),
            _full_spec(w3m.shape), _full_spec(b3r.shape),
            _full_spec(w4m.shape), _full_spec(b4r.shape),
            _full_spec(w5r.shape),
        ],
        out_specs=pl.BlockSpec((block_n, E_PAD), lambda i: (i, 0)),
        compiler_params=pltpu.CompilerParams(
            dimension_semantics=("parallel",)),
    )(xr, w1r, b1r, w2m, b2r, w3m, b3r, w4m, b4r, w5r)

    out = out_pad[:n, :n_emo]
    return jnp.squeeze(out)              # matches torch.squeeze(pred_expr)


# ---------------- Pure-JAX reference (correctness check) ----------------

def featdisnet_reference(x_nchw, params):
    w1, b1, w2, b2, w3, b3, w4, b4, w5 = params
    x = jnp.transpose(x_nchw, (0, 2, 3, 1))
    dn = ('NHWC', 'HWIO', 'NHWC')
    h = lax.conv_general_dilated(x, w1, (2, 2), ((1, 1), (1, 1)),
                                 dimension_numbers=dn)
    h = _leaky(h + b1)
    for w, b in ((w2, b2), (w3, b3), (w4, b4)):
        h = lax.conv_general_dilated(h, w, (1, 1), 'VALID',
                                     dimension_numbers=dn)
        h = _leaky(h + b)
    h = lax.conv_general_dilated(h, w5, (1, 1), 'VALID',
                                 dimension_numbers=dn)     # (N, 1, 1, n_emo)
    return jnp.squeeze(h)


# ---------------- Main ----------------

if __name__ == "__main__":
    # Small, forward-consistent shapes: in_channels=64, feat_size=7, n_emo=6,
    # repeat_num=3, batch=2  ->  input (2, 64, 7, 7) NCHW, output (2, 6).
    C_IN, N_EMO, FEAT, BATCH = 64, 6, 7, 2
    KS_LAST = FEAT // 2  # = 3

    key = jax.random.PRNGKey(0)
    ks = jax.random.split(key, 10)
    s = 0.05
    w1 = s * jax.random.normal(ks[0], (4, 4, C_IN, C_IN), jnp.float32)
    b1 = s * jax.random.normal(ks[1], (C_IN,), jnp.float32)
    w2 = s * jax.random.normal(ks[2], (1, 1, C_IN, C_IN // 2), jnp.float32)
    b2 = s * jax.random.normal(ks[3], (C_IN // 2,), jnp.float32)
    w3 = s * jax.random.normal(ks[4], (1, 1, C_IN // 2, C_IN // 4), jnp.float32)
    b3 = s * jax.random.normal(ks[5], (C_IN // 4,), jnp.float32)
    w4 = s * jax.random.normal(ks[6], (1, 1, C_IN // 4, C_IN // 8), jnp.float32)
    b4 = s * jax.random.normal(ks[7], (C_IN // 8,), jnp.float32)
    w5 = s * jax.random.normal(ks[8], (KS_LAST, KS_LAST, C_IN // 8, N_EMO),
                               jnp.float32)  # final conv, bias=False
    params = (w1, b1, w2, b2, w3, b3, w4, b4, w5)

    x = jax.random.normal(ks[9], (BATCH, C_IN, FEAT, FEAT), jnp.float32)  # NCHW

    fwd = jax.jit(featdisnet_forward)
    out = jax.block_until_ready(fwd(x, params))

    ref = featdisnet_reference(x, params)
    assert out.shape == (BATCH, N_EMO), out.shape
    # bf16 GEMM operands (f32 accumulation) -> looser tolerance than pure f32.
    assert jnp.allclose(out, ref, rtol=5e-2, atol=5e-4), \
        f"max err {jnp.max(jnp.abs(out - ref))}"

    print("KERNEL_OK")
</pallas_src>

<mosaic_0001>
module attributes {stable_mosaic.version = 11 : i64} {
  func.func @featdis_kernel(%arg0: i32, %arg1: memref<9x8x576xbf16, #tpu.memory_space<vmem>>, %arg2: memref<4x256x64xbf16, #tpu.memory_space<vmem>>, %arg3: memref<1x64xf32, #tpu.memory_space<vmem>>, %arg4: memref<64x32xbf16, #tpu.memory_space<vmem>>, %arg5: memref<1x32xf32, #tpu.memory_space<vmem>>, %arg6: memref<32x16xbf16, #tpu.memory_space<vmem>>, %arg7: memref<1x16xf32, #tpu.memory_space<vmem>>, %arg8: memref<16x8xbf16, #tpu.memory_space<vmem>>, %arg9: memref<1x8xf32, #tpu.memory_space<vmem>>, %arg10: memref<9x8x128xbf16, #tpu.memory_space<vmem>>, %arg11: memref<8x128xf32, #tpu.memory_space<vmem>>) attributes {dimension_semantics = [#tpu.dimension_semantics<parallel>], iteration_bounds = array<i64: 1>, scalar_prefetch = 0 : i64, scratch_operands = 0 : i64, tpu.core_type = #tpu.core_type<tc>, window_params = [{transform_indices = @transform_0, window_bounds = array<i64: 9, 8, 576>}, {pipeline_mode = #tpu.pipeline_mode<synchronous>, transform_indices = @transform_1, window_bounds = array<i64: 4, 256, 64>}, {pipeline_mode = #tpu.pipeline_mode<synchronous>, transform_indices = @transform_2, window_bounds = array<i64: 1, 64>}, {pipeline_mode = #tpu.pipeline_mode<synchronous>, transform_indices = @transform_3, window_bounds = array<i64: 64, 32>}, {pipeline_mode = #tpu.pipeline_mode<synchronous>, transform_indices = @transform_4, window_bounds = array<i64: 1, 32>}, {pipeline_mode = #tpu.pipeline_mode<synchronous>, transform_indices = @transform_5, window_bounds = array<i64: 32, 16>}, {pipeline_mode = #tpu.pipeline_mode<synchronous>, transform_indices = @transform_6, window_bounds = array<i64: 1, 16>}, {pipeline_mode = #tpu.pipeline_mode<synchronous>, transform_indices = @transform_7, window_bounds = array<i64: 16, 8>}, {pipeline_mode = #tpu.pipeline_mode<synchronous>, transform_indices = @transform_8, window_bounds = array<i64: 1, 8>}, {pipeline_mode = #tpu.pipeline_mode<synchronous>, transform_indices = @transform_9, window_bounds = array<i64: 9, 8, 128>}, {transform_indices = @transform_10, window_bounds = array<i64: 8, 128>}]} {
    %c0 = arith.constant 0 : index
    %c0_0 = arith.constant 0 : index
    %0 = vector.load %arg3[%c0, %c0_0] : memref<1x64xf32, #tpu.memory_space<vmem>>, vector<1x64xf32>
    %c0_1 = arith.constant 0 : index
    %c0_2 = arith.constant 0 : index
    %1 = vector.load %arg5[%c0_1, %c0_2] : memref<1x32xf32, #tpu.memory_space<vmem>>, vector<1x32xf32>
    %c0_3 = arith.constant 0 : index
    %c0_4 = arith.constant 0 : index
    %2 = vector.load %arg7[%c0_3, %c0_4] : memref<1x16xf32, #tpu.memory_space<vmem>>, vector<1x16xf32>
    %c0_5 = arith.constant 0 : index
    %c0_6 = arith.constant 0 : index
    %3 = vector.load %arg9[%c0_5, %c0_6] : memref<1x8xf32, #tpu.memory_space<vmem>>, vector<1x8xf32>
    %c0_7 = arith.constant 0 : index
    %c0_8 = arith.constant 0 : index
    %4 = vector.load %arg4[%c0_7, %c0_8] : memref<64x32xbf16, #tpu.memory_space<vmem>>, vector<64x32xbf16>
    %c0_9 = arith.constant 0 : index
    %c0_10 = arith.constant 0 : index
    %5 = vector.load %arg6[%c0_9, %c0_10] : memref<32x16xbf16, #tpu.memory_space<vmem>>, vector<32x16xbf16>
    %c0_11 = arith.constant 0 : index
    %c0_12 = arith.constant 0 : index
    %6 = vector.load %arg8[%c0_11, %c0_12] : memref<16x8xbf16, #tpu.memory_space<vmem>>, vector<16x8xbf16>
    %c0_13 = arith.constant 0 : index
    %c0_14 = arith.constant 0 : index
    %c0_15 = arith.constant 0 : index
    %7 = vector.load %arg1[%c0_13, %c0_14, %c0_15] : memref<9x8x576xbf16, #tpu.memory_space<vmem>>, vector<1x8x256xbf16>
    %8 = vector.shape_cast %7 : vector<1x8x256xbf16> to vector<8x256xbf16>
    %c0_16 = arith.constant 0 : index
    %c0_17 = arith.constant 0 : index
    %c0_18 = arith.constant 0 : index
    %9 = vector.load %arg2[%c0_16, %c0_17, %c0_18] : memref<4x256x64xbf16, #tpu.memory_space<vmem>>, vector<1x256x64xbf16>
    %10 = vector.shape_cast %9 : vector<1x256x64xbf16> to vector<256x64xbf16>
    %cst = arith.constant dense<0.000000e+00> : vector<8x64xf32>
    %11 = tpu.matmul %8, %10, %cst {dimension_numbers = #tpu.dot_dimension_numbers<[1], [0], [0], [1], [0, 0, 1, 1], [], []>} : vector<8x256xbf16>, vector<256x64xbf16>, vector<8x64xf32> -> vector<8x64xf32>
    %c1 = arith.constant 1 : index
    %c0_19 = arith.constant 0 : index
    %c0_20 = arith.constant 0 : index
    %12 = vector.load %arg1[%c1, %c0_19, %c0_20] : memref<9x8x576xbf16, #tpu.memory_space<vmem>>, vector<1x8x256xbf16>
    %13 = vector.shape_cast %12 : vector<1x8x256xbf16> to vector<8x256xbf16>
    %c1_21 = arith.constant 1 : index
    %c0_22 = arith.constant 0 : index
    %c0_23 = arith.constant 0 : index
    %14 = vector.load %arg2[%c1_21, %c0_22, %c0_23] : memref<4x256x64xbf16, #tpu.memory_space<vmem>>, vector<1x256x64xbf16>
    %15 = vector.shape_cast %14 : vector<1x256x64xbf16> to vector<256x64xbf16>
    %cst_24 = arith.constant dense<0.000000e+00> : vector<8x64xf32>
    %16 = tpu.matmul %13, %15, %cst_24 {dimension_numbers = #tpu.dot_dimension_numbers<[1], [0], [0], [1], [0, 0, 1, 1], [], []>} : vector<8x256xbf16>, vector<256x64xbf16>, vector<8x64xf32> -> vector<8x64xf32>
    %17 = arith.addf %11, %16 : vector<8x64xf32>
    %c2 = arith.constant 2 : index
    %c0_25 = arith.constant 0 : index
    %c0_26 = arith.constant 0 : index
    %18 = vector.load %arg1[%c2, %c0_25, %c0_26] : memref<9x8x576xbf16, #tpu.memory_space<vmem>>, vector<1x8x256xbf16>
    %19 = vector.shape_cast %18 : vector<1x8x256xbf16> to vector<8x256xbf16>
    %c2_27 = arith.constant 2 : index
    %c0_28 = arith.constant 0 : index
    %c0_29 = arith.constant 0 : index
    %20 = vector.load %arg2[%c2_27, %c0_28, %c0_29] : memref<4x256x64xbf16, #tpu.memory_space<vmem>>, vector<1x256x64xbf16>
    %21 = vector.shape_cast %20 : vector<1x256x64xbf16> to vector<256x64xbf16>
    %cst_30 = arith.constant dense<0.000000e+00> : vector<8x64xf32>
    %22 = tpu.matmul %19, %21, %cst_30 {dimension_numbers = #tpu.dot_dimension_numbers<[1], [0], [0], [1], [0, 0, 1, 1], [], []>} : vector<8x256xbf16>, vector<256x64xbf16>, vector<8x64xf32> -> vector<8x64xf32>
    %23 = arith.addf %17, %22 : vector<8x64xf32>
    %c3 = arith.constant 3 : index
    %c0_31 = arith.constant 0 : index
    %c0_32 = arith.constant 0 : index
    %24 = vector.load %arg1[%c3, %c0_31, %c0_32] : memref<9x8x576xbf16, #tpu.memory_space<vmem>>, vector<1x8x256xbf16>
    %25 = vector.shape_cast %24 : vector<1x8x256xbf16> to vector<8x256xbf16>
    %c3_33 = arith.constant 3 : index
    %c0_34 = arith.constant 0 : index
    %c0_35 = arith.constant 0 : index
    %26 = vector.load %arg2[%c3_33, %c0_34, %c0_35] : memref<4x256x64xbf16, #tpu.memory_space<vmem>>, vector<1x256x64xbf16>
    %27 = vector.shape_cast %26 : vector<1x256x64xbf16> to vector<256x64xbf16>
    %cst_36 = arith.constant dense<0.000000e+00> : vector<8x64xf32>
    %28 = tpu.matmul %25, %27, %cst_36 {dimension_numbers = #tpu.dot_dimension_numbers<[1], [0], [0], [1], [0, 0, 1, 1], [], []>} : vector<8x256xbf16>, vector<256x64xbf16>, vector<8x64xf32> -> vector<8x64xf32>
    %29 = arith.addf %23, %28 : vector<8x64xf32>
    %30 = vector.broadcast %0 : vector<1x64xf32> to vector<8x64xf32>
    %31 = arith.addf %29, %30 : vector<8x64xf32>
    %cst_37 = arith.constant 0.000000e+00 : f32
    %32 = vector.broadcast %cst_37 : f32 to vector<8x64xf32>
    %33 = arith.cmpf ogt, %31, %32 : vector<8x64xf32>
    %cst_38 = arith.constant 0.00999999977 : f32
    %34 = vector.broadcast %cst_38 : f32 to vector<8x64xf32>
    %35 = arith.mulf %34, %31 : vector<8x64xf32>
    %36 = arith.select %33, %31, %35 : vector<8x64xi1>, vector<8x64xf32>
    %37 = arith.truncf %36 : vector<8x64xf32> to vector<8x64xbf16>
    %cst_39 = arith.constant dense<0.000000e+00> : vector<8x32xf32>
    %38 = tpu.matmul %37, %4, %cst_39 {dimension_numbers = #tpu.dot_dimension_numbers<[1], [0], [0], [1], [0, 0, 1, 1], [], []>} : vector<8x64xbf16>, vector<64x32xbf16>, vector<8x32xf32> -> vector<8x32xf32>
    %39 = vector.broadcast %1 : vector<1x32xf32> to vector<8x32xf32>
    %40 = arith.addf %38, %39 : vector<8x32xf32>
    %cst_40 = arith.constant 0.000000e+00 : f32
    %41 = vector.broadcast %cst_40 : f32 to vector<8x32xf32>
    %42 = arith.cmpf ogt, %40, %41 : vector<8x32xf32>
    %cst_41 = arith.constant 0.00999999977 : f32
    %43 = vector.broadcast %cst_41 : f32 to vector<8x32xf32>
    %44 = arith.mulf %43, %40 : vector<8x32xf32>
    %45 = arith.select %42, %40, %44 : vector<8x32xi1>, vector<8x32xf32>
    %46 = arith.truncf %45 : vector<8x32xf32> to vector<8x32xbf16>
    %cst_42 = arith.constant dense<0.000000e+00> : vector<8x16xf32>
    %47 = tpu.matmul %46, %5, %cst_42 {dimension_numbers = #tpu.dot_dimension_numbers<[1], [0], [0], [1], [0, 0, 1, 1], [], []>} : vector<8x32xbf16>, vector<32x16xbf16>, vector<8x16xf32> -> vector<8x16xf32>
    %48 = vector.broadcast %2 : vector<1x16xf32> to vector<8x16xf32>
    %49 = arith.addf %47, %48 : vector<8x16xf32>
    %cst_43 = arith.constant 0.000000e+00 : f32
    %50 = vector.broadcast %cst_43 : f32 to vector<8x16xf32>
    %51 = arith.cmpf ogt, %49, %50 : vector<8x16xf32>
    %cst_44 = arith.constant 0.00999999977 : f32
    %52 = vector.broadcast %cst_44 : f32 to vector<8x16xf32>
    %53 = arith.mulf %52, %49 : vector<8x16xf32>
    %54 = arith.select %51, %49, %53 : vector<8x16xi1>, vector<8x16xf32>
    %55 = arith.truncf %54 : vector<8x16xf32> to vector<8x16xbf16>
    %cst_45 = arith.constant dense<0.000000e+00> : vector<8x8xf32>
    %56 = tpu.matmul %55, %6, %cst_45 {dimension_numbers = #tpu.dot_dimension_numbers<[1], [0], [0], [1], [0, 0, 1, 1], [], []>} : vector<8x16xbf16>, vector<16x8xbf16>, vector<8x8xf32> -> vector<8x8xf32>
    %57 = vector.broadcast %3 : vector<1x8xf32> to vector<8x8xf32>
    %58 = arith.addf %56, %57 : vector<8x8xf32>
    %cst_46 = arith.constant 0.000000e+00 : f32
    %59 = vector.broadcast %cst_46 : f32 to vector<8x8xf32>
    %60 = arith.cmpf ogt, %58, %59 : vector<8x8xf32>
    %cst_47 = arith.constant 0.00999999977 : f32
    %61 = vector.broadcast %cst_47 : f32 to vector<8x8xf32>
    %62 = arith.mulf %61, %58 : vector<8x8xf32>
    %63 = arith.select %60, %58, %62 : vector<8x8xi1>, vector<8x8xf32>
    %64 = arith.truncf %63 : vector<8x8xf32> to vector<8x8xbf16>
    %c0_48 = arith.constant 0 : index
    %c0_49 = arith.constant 0 : index
    %c0_50 = arith.constant 0 : index
    %65 = vector.load %arg10[%c0_48, %c0_49, %c0_50] : memref<9x8x128xbf16, #tpu.memory_space<vmem>>, vector<1x8x128xbf16>
    %66 = vector.shape_cast %65 : vector<1x8x128xbf16> to vector<8x128xbf16>
    %cst_51 = arith.constant dense<0.000000e+00> : vector<8x128xf32>
    %67 = tpu.matmul %64, %66, %cst_51 {dimension_numbers = #tpu.dot_dimension_numbers<[1], [0], [0], [1], [0, 0, 1, 1], [], []>} : vector<8x8xbf16>, vector<8x128xbf16>, vector<8x128xf32> -> vector<8x128xf32>
    %c0_52 = arith.constant 0 : index
    %c0_53 = arith.constant 0 : index
    %c128 = arith.constant 128 : index
    %68 = vector.load %arg1[%c0_52, %c0_53, %c128] : memref<9x8x576xbf16, #tpu.memory_space<vmem>>, vector<1x8x256xbf16>
    %69 = vector.shape_cast %68 : vector<1x8x256xbf16> to vector<8x256xbf16>
    %c0_54 = arith.constant 0 : index
    %c0_55 = arith.constant 0 : index
    %c0_56 = arith.constant 0 : index
    %70 = vector.load %arg2[%c0_54, %c0_55, %c0_56] : memref<4x256x64xbf16, #tpu.memory_space<vmem>>, vector<1x256x64xbf16>
    %71 = vector.shape_cast %70 : vector<1x256x64xbf16> to vector<256x64xbf16>
    %cst_57 = arith.constant dense<0.000000e+00> : vector<8x64xf32>
    %72 = tpu.matmul %69, %71, %cst_57 {dimension_numbers = #tpu.dot_dimension_numbers<[1], [0], [0], [1], [0, 0, 1, 1], [], []>} : vector<8x256xbf16>, vector<256x64xbf16>, vector<8x64xf32> -> vector<8x64xf32>
    %c1_58 = arith.constant 1 : index
    %c0_59 = arith.constant 0 : index
    %c128_60 = arith.constant 128 : index
    %73 = vector.load %arg1[%c1_58, %c0_59, %c128_60] : memref<9x8x576xbf16, #tpu.memory_space<vmem>>, vector<1x8x256xbf16>
    %74 = vector.shape_cast %73 : vector<1x8x256xbf16> to vector<8x256xbf16>
    %c1_61 = arith.constant 1 : index
    %c0_62 = arith.constant 0 : index
    %c0_63 = arith.constant 0 : index
    %75 = vector.load %arg2[%c1_61, %c0_62, %c0_63] : memref<4x256x64xbf16, #tpu.memory_space<vmem>>, vector<1x256x64xbf16>
    %76 = vector.shape_cast %75 : vector<1x256x64xbf16> to vector<256x64xbf16>
    %cst_64 = arith.constant dense<0.000000e+00> : vector<8x64xf32>
    %77 = tpu.matmul %74, %76, %cst_64 {dimension_numbers = #tpu.dot_dimension_numbers<[1], [0], [0], [1], [0, 0, 1, 1], [], []>} : vector<8x256xbf16>, vector<256x64xbf16>, vector<8x64xf32> -> vector<8x64xf32>
    %78 = arith.addf %72, %77 : vector<8x64xf32>
    %c2_65 = arith.constant 2 : index
    %c0_66 = arith.constant 0 : index
    %c128_67 = arith.constant 128 : index
    %79 = vector.load %arg1[%c2_65, %c0_66, %c128_67] : memref<9x8x576xbf16, #tpu.memory_space<vmem>>, vector<1x8x256xbf16>
    %80 = vector.shape_cast %79 : vector<1x8x256xbf16> to vector<8x256xbf16>
    %c2_68 = arith.constant 2 : index
    %c0_69 = arith.constant 0 : index
    %c0_70 = arith.constant 0 : index
    %81 = vector.load %arg2[%c2_68, %c0_69, %c0_70] : memref<4x256x64xbf16, #tpu.memory_space<vmem>>, vector<1x256x64xbf16>
    %82 = vector.shape_cast %81 : vector<1x256x64xbf16> to vector<256x64xbf16>
    %cst_71 = arith.constant dense<0.000000e+00> : vector<8x64xf32>
    %83 = tpu.matmul %80, %82, %cst_71 {dimension_numbers = #tpu.dot_dimension_numbers<[1], [0], [0], [1], [0, 0, 1, 1], [], []>} : vector<8x256xbf16>, vector<256x64xbf16>, vector<8x64xf32> -> vector<8x64xf32>
    %84 = arith.addf %78, %83 : vector<8x64xf32>
    %c3_72 = arith.constant 3 : index
    %c0_73 = arith.constant 0 : index
    %c128_74 = arith.constant 128 : index
    %85 = vector.load %arg1[%c3_72, %c0_73, %c128_74] : memref<9x8x576xbf16, #tpu.memory_space<vmem>>, vector<1x8x256xbf16>
    %86 = vector.shape_cast %85 : vector<1x8x256xbf16> to vector<8x256xbf16>
    %c3_75 = arith.constant 3 : index
    %c0_76 = arith.constant 0 : index
    %c0_77 = arith.constant 0 : index
    %87 = vector.load %arg2[%c3_75, %c0_76, %c0_77] : memref<4x256x64xbf16, #tpu.memory_space<vmem>>, vector<1x256x64xbf16>
    %88 = vector.shape_cast %87 : vector<1x256x64xbf16> to vector<256x64xbf16>
    %cst_78 = arith.constant dense<0.000000e+00> : vector<8x64xf32>
    %89 = tpu.matmul %86, %88, %cst_78 {dimension_numbers = #tpu.dot_dimension_numbers<[1], [0], [0], [1], [0, 0, 1, 1], [], []>} : vector<8x256xbf16>, vector<256x64xbf16>, vector<8x64xf32> -> vector<8x64xf32>
    %90 = arith.addf %84, %89 : vector<8x64xf32>
    %91 = vector.broadcast %0 : vector<1x64xf32> to vector<8x64xf32>
    %92 = arith.addf %90, %91 : vector<8x64xf32>
    %cst_79 = arith.constant 0.000000e+00 : f32
    %93 = vector.broadcast %cst_79 : f32 to vector<8x64xf32>
    %94 = arith.cmpf ogt, %92, %93 : vector<8x64xf32>
    %cst_80 = arith.constant 0.00999999977 : f32
    %95 = vector.broadcast %cst_80 : f32 to vector<8x64xf32>
    %96 = arith.mulf %95, %92 : vector<8x64xf32>
    %97 = arith.select %94, %92, %96 : vector<8x64xi1>, vector<8x64xf32>
    %98 = arith.truncf %97 : vector<8x64xf32> to vector<8x64xbf16>
    %cst_81 = arith.constant dense<0.000000e+00> : vector<8x32xf32>
    %99 = tpu.matmul %98, %4, %cst_81 {dimension_numbers = #tpu.dot_dimension_numbers<[1], [0], [0], [1], [0, 0, 1, 1], [], []>} : vector<8x64xbf16>, vector<64x32xbf16>, vector<8x32xf32> -> vector<8x32xf32>
    %100 = vector.broadcast %1 : vector<1x32xf32> to vector<8x32xf32>
    %101 = arith.addf %99, %100 : vector<8x32xf32>
    %cst_82 = arith.constant 0.000000e+00 : f32
    %102 = vector.broadcast %cst_82 : f32 to vector<8x32xf32>
    %103 = arith.cmpf ogt, %101, %102 : vector<8x32xf32>
    %cst_83 = arith.constant 0.00999999977 : f32
    %104 = vector.broadcast %cst_83 : f32 to vector<8x32xf32>
    %105 = arith.mulf %104, %101 : vector<8x32xf32>
    %106 = arith.select %103, %101, %105 : vector<8x32xi1>, vector<8x32xf32>
    %107 = arith.truncf %106 : vector<8x32xf32> to vector<8x32xbf16>
    %cst_84 = arith.constant dense<0.000000e+00> : vector<8x16xf32>
    %108 = tpu.matmul %107, %5, %cst_84 {dimension_numbers = #tpu.dot_dimension_numbers<[1], [0], [0], [1], [0, 0, 1, 1], [], []>} : vector<8x32xbf16>, vector<32x16xbf16>, vector<8x16xf32> -> vector<8x16xf32>
    %109 = vector.broadcast %2 : vector<1x16xf32> to vector<8x16xf32>
    %110 = arith.addf %108, %109 : vector<8x16xf32>
    %cst_85 = arith.constant 0.000000e+00 : f32
    %111 = vector.broadcast %cst_85 : f32 to vector<8x16xf32>
    %112 = arith.cmpf ogt, %110, %111 : vector<8x16xf32>
    %cst_86 = arith.constant 0.00999999977 : f32
    %113 = vector.broadcast %cst_86 : f32 to vector<8x16xf32>
    %114 = arith.mulf %113, %110 : vector<8x16xf32>
    %115 = arith.select %112, %110, %114 : vector<8x16xi1>, vector<8x16xf32>
    %116 = arith.truncf %115 : vector<8x16xf32> to vector<8x16xbf16>
    %cst_87 = arith.constant dense<0.000000e+00> : vector<8x8xf32>
    %117 = tpu.matmul %116, %6, %cst_87 {dimension_numbers = #tpu.dot_dimension_numbers<[1], [0], [0], [1], [0, 0, 1, 1], [], []>} : vector<8x16xbf16>, vector<16x8xbf16>, vector<8x8xf32> -> vector<8x8xf32>
    %118 = vector.broadcast %3 : vector<1x8xf32> to vector<8x8xf32>
    %119 = arith.addf %117, %118 : vector<8x8xf32>
    %cst_88 = arith.constant 0.000000e+00 : f32
    %120 = vector.broadcast %cst_88 : f32 to vector<8x8xf32>
    %121 = arith.cmpf ogt, %119, %120 : vector<8x8xf32>
    %cst_89 = arith.constant 0.00999999977 : f32
    %122 = vector.broadcast %cst_89 : f32 to vector<8x8xf32>
    %123 = arith.mulf %122, %119 : vector<8x8xf32>
    %124 = arith.select %121, %119, %123 : vector<8x8xi1>, vector<8x8xf32>
    %125 = arith.truncf %124 : vector<8x8xf32> to vector<8x8xbf16>
    %c1_90 = arith.constant 1 : index
    %c0_91 = arith.constant 0 : index
    %c0_92 = arith.constant 0 : index
    %126 = vector.load %arg10[%c1_90, %c0_91, %c0_92] : memref<9x8x128xbf16, #tpu.memory_space<vmem>>, vector<1x8x128xbf16>
    %127 = vector.shape_cast %126 : vector<1x8x128xbf16> to vector<8x128xbf16>
    %cst_93 = arith.constant dense<0.000000e+00> : vector<8x128xf32>
    %128 = tpu.matmul %125, %127, %cst_93 {dimension_numbers = #tpu.dot_dimension_numbers<[1], [0], [0], [1], [0, 0, 1, 1], [], []>} : vector<8x8xbf16>, vector<8x128xbf16>, vector<8x128xf32> -> vector<8x128xf32>
    %129 = arith.addf %67, %128 : vector<8x128xf32>
    %c0_94 = arith.constant 0 : index
    %c0_95 = arith.constant 0 : index
    %c256 = arith.constant 256 : index
    %130 = vector.load %arg1[%c0_94, %c0_95, %c256] : memref<9x8x576xbf16, #tpu.memory_space<vmem>>, vector<1x8x256xbf16>
    %131 = vector.shape_cast %130 : vector<1x8x256xbf16> to vector<8x256xbf16>
    %c0_96 = arith.constant 0 : index
    %c0_97 = arith.constant 0 : index
    %c0_98 = arith.constant 0 : index
    %132 = vector.load %arg2[%c0_96, %c0_97, %c0_98] : memref<4x256x64xbf16, #tpu.memory_space<vmem>>, vector<1x256x64xbf16>
    %133 = vector.shape_cast %132 : vector<1x256x64xbf16> to vector<256x64xbf16>
    %cst_99 = arith.constant dense<0.000000e+00> : vector<8x64xf32>
    %134 = tpu.matmul %131, %133, %cst_99 {dimension_numbers = #tpu.dot_dimension_numbers<[1], [0], [0], [1], [0, 0, 1, 1], [], []>} : vector<8x256xbf16>, vector<256x64xbf16>, vector<8x64xf32> -> vector<8x64xf32>
    %c1_100 = arith.constant 1 : index
    %c0_101 = arith.constant 0 : index
    %c256_102 = arith.constant 256 : index
    %135 = vector.load %arg1[%c1_100, %c0_101, %c256_102] : memref<9x8x576xbf16, #tpu.memory_space<vmem>>, vector<1x8x256xbf16>
    %136 = vector.shape_cast %135 : vector<1x8x256xbf16> to vector<8x256xbf16>
    %c1_103 = arith.constant 1 : index
    %c0_104 = arith.constant 0 : index
    %c0_105 = arith.constant 0 : index
    %137 = vector.load %arg2[%c1_103, %c0_104, %c0_105] : memref<4x256x64xbf16, #tpu.memory_space<vmem>>, vector<1x256x64xbf16>
    %138 = vector.shape_cast %137 : vector<1x256x64xbf16> to vector<256x64xbf16>
    %cst_106 = arith.constant dense<0.000000e+00> : vector<8x64xf32>
    %139 = tpu.matmul %136, %138, %cst_106 {dimension_numbers = #tpu.dot_dimension_numbers<[1], [0], [0], [1], [0, 0, 1, 1], [], []>} : vector<8x256xbf16>, vector<256x64xbf16>, vector<8x64xf32> -> vector<8x64xf32>
    %140 = arith.addf %134, %139 : vector<8x64xf32>
    %c2_107 = arith.constant 2 : index
    %c0_108 = arith.constant 0 : index
    %c256_109 = arith.constant 256 : index
    %141 = vector.load %arg1[%c2_107, %c0_108, %c256_109] : memref<9x8x576xbf16, #tpu.memory_space<vmem>>, vector<1x8x256xbf16>
    %142 = vector.shape_cast %141 : vector<1x8x256xbf16> to vector<8x256xbf16>
    %c2_110 = arith.constant 2 : index
    %c0_111 = arith.constant 0 : index
    %c0_112 = arith.constant 0 : index
    %143 = vector.load %arg2[%c2_110, %c0_111, %c0_112] : memref<4x256x64xbf16, #tpu.memory_space<vmem>>, vector<1x256x64xbf16>
    %144 = vector.shape_cast %143 : vector<1x256x64xbf16> to vector<256x64xbf16>
    %cst_113 = arith.constant dense<0.000000e+00> : vector<8x64xf32>
    %145 = tpu.matmul %142, %144, %cst_113 {dimension_numbers = #tpu.dot_dimension_numbers<[1], [0], [0], [1], [0, 0, 1, 1], [], []>} : vector<8x256xbf16>, vector<256x64xbf16>, vector<8x64xf32> -> vector<8x64xf32>
    %146 = arith.addf %140, %145 : vector<8x64xf32>
    %c3_114 = arith.constant 3 : index
    %c0_115 = arith.constant 0 : index
    %c256_116 = arith.constant 256 : index
    %147 = vector.load %arg1[%c3_114, %c0_115, %c256_116] : memref<9x8x576xbf16, #tpu.memory_space<vmem>>, vector<1x8x256xbf16>
    %148 = vector.shape_cast %147 : vector<1x8x256xbf16> to vector<8x256xbf16>
    %c3_117 = arith.constant 3 : index
    %c0_118 = arith.constant 0 : index
    %c0_119 = arith.constant 0 : index
    %149 = vector.load %arg2[%c3_117, %c0_118, %c0_119] : memref<4x256x64xbf16, #tpu.memory_space<vmem>>, vector<1x256x64xbf16>
    %150 = vector.shape_cast %149 : vector<1x256x64xbf16> to vector<256x64xbf16>
    %cst_120 = arith.constant dense<0.000000e+00> : vector<8x64xf32>
    %151 = tpu.matmul %148, %150, %cst_120 {dimension_numbers = #tpu.dot_dimension_numbers<[1], [0], [0], [1], [0, 0, 1, 1], [], []>} : vector<8x256xbf16>, vector<256x64xbf16>, vector<8x64xf32> -> vector<8x64xf32>
    %152 = arith.addf %146, %151 : vector<8x64xf32>
    %153 = vector.broadcast %0 : vector<1x64xf32> to vector<8x64xf32>
    %154 = arith.addf %152, %153 : vector<8x64xf32>
    %cst_121 = arith.constant 0.000000e+00 : f32
    %155 = vector.broadcast %cst_121 : f32 to vector<8x64xf32>
    %156 = arith.cmpf ogt, %154, %155 : vector<8x64xf32>
    %cst_122 = arith.constant 0.00999999977 : f32
    %157 = vector.broadcast %cst_122 : f32 to vector<8x64xf32>
    %158 = arith.mulf %157, %154 : vector<8x64xf32>
    %159 = arith.select %156, %154, %158 : vector<8x64xi1>, vector<8x64xf32>
    %160 = arith.truncf %159 : vector<8x64xf32> to vector<8x64xbf16>
    %cst_123 = arith.constant dense<0.000000e+00> : vector<8x32xf32>
    %161 = tpu.matmul %160, %4, %cst_123 {dimension_numbers = #tpu.dot_dimension_numbers<[1], [0], [0], [1], [0, 0, 1, 1], [], []>} : vector<8x64xbf16>, vector<64x32xbf16>, vector<8x32xf32> -> vector<8x32xf32>
    %162 = vector.broadcast %1 : vector<1x32xf32> to vector<8x32xf32>
    %163 = arith.addf %161, %162 : vector<8x32xf32>
    %cst_124 = arith.constant 0.000000e+00 : f32
    %164 = vector.broadcast %cst_124 : f32 to vector<8x32xf32>
    %165 = arith.cmpf ogt, %163, %164 : vector<8x32xf32>
    %cst_125 = arith.constant 0.00999999977 : f32
    %166 = vector.broadcast %cst_125 : f32 to vector<8x32xf32>
    %167 = arith.mulf %166, %163 : vector<8x32xf32>
    %168 = arith.select %165, %163, %167 : vector<8x32xi1>, vector<8x32xf32>
    %169 = arith.truncf %168 : vector<8x32xf32> to vector<8x32xbf16>
    %cst_126 = arith.constant dense<0.000000e+00> : vector<8x16xf32>
    %170 = tpu.matmul %169, %5, %cst_126 {dimension_numbers = #tpu.dot_dimension_numbers<[1], [0], [0], [1], [0, 0, 1, 1], [], []>} : vector<8x32xbf16>, vector<32x16xbf16>, vector<8x16xf32> -> vector<8x16xf32>
    %171 = vector.broadcast %2 : vector<1x16xf32> to vector<8x16xf32>
    %172 = arith.addf %170, %171 : vector<8x16xf32>
    %cst_127 = arith.constant 0.000000e+00 : f32
    %173 = vector.broadcast %cst_127 : f32 to vector<8x16xf32>
    %174 = arith.cmpf ogt, %172, %173 : vector<8x16xf32>
    %cst_128 = arith.constant 0.00999999977 : f32
    %175 = vector.broadcast %cst_128 : f32 to vector<8x16xf32>
    %176 = arith.mulf %175, %172 : vector<8x16xf32>
    %177 = arith.select %174, %172, %176 : vector<8x16xi1>, vector<8x16xf32>
    %178 = arith.truncf %177 : vector<8x16xf32> to vector<8x16xbf16>
    %cst_129 = arith.constant dense<0.000000e+00> : vector<8x8xf32>
    %179 = tpu.matmul %178, %6, %cst_129 {dimension_numbers = #tpu.dot_dimension_numbers<[1], [0], [0], [1], [0, 0, 1, 1], [], []>} : vector<8x16xbf16>, vector<16x8xbf16>, vector<8x8xf32> -> vector<8x8xf32>
    %180 = vector.broadcast %3 : vector<1x8xf32> to vector<8x8xf32>
    %181 = arith.addf %179, %180 : vector<8x8xf32>
    %cst_130 = arith.constant 0.000000e+00 : f32
    %182 = vector.broadcast %cst_130 : f32 to vector<8x8xf32>
    %183 = arith.cmpf ogt, %181, %182 : vector<8x8xf32>
    %cst_131 = arith.constant 0.00999999977 : f32
    %184 = vector.broadcast %cst_131 : f32 to vector<8x8xf32>
    %185 = arith.mulf %184, %181 : vector<8x8xf32>
    %186 = arith.select %183, %181, %185 : vector<8x8xi1>, vector<8x8xf32>
    %187 = arith.truncf %186 : vector<8x8xf32> to vector<8x8xbf16>
    %c2_132 = arith.constant 2 : index
    %c0_133 = arith.constant 0 : index
    %c0_134 = arith.constant 0 : index
    %188 = vector.load %arg10[%c2_132, %c0_133, %c0_134] : memref<9x8x128xbf16, #tpu.memory_space<vmem>>, vector<1x8x128xbf16>
    %189 = vector.shape_cast %188 : vector<1x8x128xbf16> to vector<8x128xbf16>
    %cst_135 = arith.constant dense<0.000000e+00> : vector<8x128xf32>
    %190 = tpu.matmul %187, %189, %cst_135 {dimension_numbers = #tpu.dot_dimension_numbers<[1], [0], [0], [1], [0, 0, 1, 1], [], []>} : vector<8x8xbf16>, vector<8x128xbf16>, vector<8x128xf32> -> vector<8x128xf32>
    %191 = arith.addf %129, %190 : vector<8x128xf32>
    %c2_136 = arith.constant 2 : index
    %c0_137 = arith.constant 0 : index
    %c0_138 = arith.constant 0 : index
    %192 = vector.load %arg1[%c2_136, %c0_137, %c0_138] : memref<9x8x576xbf16, #tpu.memory_space<vmem>>, vector<1x8x256xbf16>
    %193 = vector.shape_cast %192 : vector<1x8x256xbf16> to vector<8x256xbf16>
    %c0_139 = arith.constant 0 : index
    %c0_140 = arith.constant 0 : index
    %c0_141 = arith.constant 0 : index
    %194 = vector.load %arg2[%c0_139, %c0_140, %c0_141] : memref<4x256x64xbf16, #tpu.memory_space<vmem>>, vector<1x256x64xbf16>
    %195 = vector.shape_cast %194 : vector<1x256x64xbf16> to vector<256x64xbf16>
    %cst_142 = arith.constant dense<0.000000e+00> : vector<8x64xf32>
    %196 = tpu.matmul %193, %195, %cst_142 {dimension_numbers = #tpu.dot_dimension_numbers<[1], [0], [0], [1], [0, 0, 1, 1], [], []>} : vector<8x256xbf16>, vector<256x64xbf16>, vector<8x64xf32> -> vector<8x64xf32>
    %c3_143 = arith.constant 3 : index
    %c0_144 = arith.constant 0 : index
    %c0_145 = arith.constant 0 : index
    %197 = vector.load %arg1[%c3_143, %c0_144, %c0_145] : memref<9x8x576xbf16, #tpu.memory_space<vmem>>, vector<1x8x256xbf16>
    %198 = vector.shape_cast %197 : vector<1x8x256xbf16> to vector<8x256xbf16>
    %c1_146 = arith.constant 1 : index
    %c0_147 = arith.constant 0 : index
    %c0_148 = arith.constant 0 : index
    %199 = vector.load %arg2[%c1_146, %c0_147, %c0_148] : memref<4x256x64xbf16, #tpu.memory_space<vmem>>, vector<1x256x64xbf16>
    %200 = vector.shape_cast %199 : vector<1x256x64xbf16> to vector<256x64xbf16>
    %cst_149 = arith.constant dense<0.000000e+00> : vector<8x64xf32>
    %201 = tpu.matmul %198, %200, %cst_149 {dimension_numbers = #tpu.dot_dimension_numbers<[1], [0], [0], [1], [0, 0, 1, 1], [], []>} : vector<8x256xbf16>, vector<256x64xbf16>, vector<8x64xf32> -> vector<8x64xf32>
    %202 = arith.addf %196, %201 : vector<8x64xf32>
    %c4 = arith.constant 4 : index
    %c0_150 = arith.constant 0 : index
    %c0_151 = arith.constant 0 : index
    %203 = vector.load %arg1[%c4, %c0_150, %c0_151] : memref<9x8x576xbf16, #tpu.memory_space<vmem>>, vector<1x8x256xbf16>
    %204 = vector.shape_cast %203 : vector<1x8x256xbf16> to vector<8x256xbf16>
    %c2_152 = arith.constant 2 : index
    %c0_153 = arith.constant 0 : index
    %c0_154 = arith.constant 0 : index
    %205 = vector.load %arg2[%c2_152, %c0_153, %c0_154] : memref<4x256x64xbf16, #tpu.memory_space<vmem>>, vector<1x256x64xbf16>
    %206 = vector.shape_cast %205 : vector<1x256x64xbf16> to vector<256x64xbf16>
    %cst_155 = arith.constant dense<0.000000e+00> : vector<8x64xf32>
    %207 = tpu.matmul %204, %206, %cst_155 {dimension_numbers = #tpu.dot_dimension_numbers<[1], [0], [0], [1], [0, 0, 1, 1], [], []>} : vector<8x256xbf16>, vector<256x64xbf16>, vector<8x64xf32> -> vector<8x64xf32>
    %208 = arith.addf %202, %207 : vector<8x64xf32>
    %c5 = arith.constant 5 : index
    %c0_156 = arith.constant 0 : index
    %c0_157 = arith.constant 0 : index
    %209 = vector.load %arg1[%c5, %c0_156, %c0_157] : memref<9x8x576xbf16, #tpu.memory_space<vmem>>, vector<1x8x256xbf16>
    %210 = vector.shape_cast %209 : vector<1x8x256xbf16> to vector<8x256xbf16>
    %c3_158 = arith.constant 3 : index
    %c0_159 = arith.constant 0 : index
    %c0_160 = arith.constant 0 : index
    %211 = vector.load %arg2[%c3_158, %c0_159, %c0_160] : memref<4x256x64xbf16, #tpu.memory_space<vmem>>, vector<1x256x64xbf16>
    %212 = vector.shape_cast %211 : vector<1x256x64xbf16> to vector<256x64xbf16>
    %cst_161 = arith.constant dense<0.000000e+00> : vector<8x64xf32>
    %213 = tpu.matmul %210, %212, %cst_161 {dimension_numbers = #tpu.dot_dimension_numbers<[1], [0], [0], [1], [0, 0, 1, 1], [], []>} : vector<8x256xbf16>, vector<256x64xbf16>, vector<8x64xf32> -> vector<8x64xf32>
    %214 = arith.addf %208, %213 : vector<8x64xf32>
    %215 = vector.broadcast %0 : vector<1x64xf32> to vector<8x64xf32>
    %216 = arith.addf %214, %215 : vector<8x64xf32>
    %cst_162 = arith.constant 0.000000e+00 : f32
    %217 = vector.broadcast %cst_162 : f32 to vector<8x64xf32>
    %218 = arith.cmpf ogt, %216, %217 : vector<8x64xf32>
    %cst_163 = arith.constant 0.00999999977 : f32
    %219 = vector.broadcast %cst_163 : f32 to vector<8x64xf32>
    %220 = arith.mulf %219, %216 : vector<8x64xf32>
    %221 = arith.select %218, %216, %220 : vector<8x64xi1>, vector<8x64xf32>
    %222 = arith.truncf %221 : vector<8x64xf32> to vector<8x64xbf16>
    %cst_164 = arith.constant dense<0.000000e+00> : vector<8x32xf32>
    %223 = tpu.matmul %222, %4, %cst_164 {dimension_numbers = #tpu.dot_dimension_numbers<[1], [0], [0], [1], [0, 0, 1, 1], [], []>} : vector<8x64xbf16>, vector<64x32xbf16>, vector<8x32xf32> -> vector<8x32xf32>
    %224 = vector.broadcast %1 : vector<1x32xf32> to vector<8x32xf32>
    %225 = arith.addf %223, %224 : vector<8x32xf32>
    %cst_165 = arith.constant 0.000000e+00 : f32
    %226 = vector.broadcast %cst_165 : f32 to vector<8x32xf32>
    %227 = arith.cmpf ogt, %225, %226 : vector<8x32xf32>
    %cst_166 = arith.constant 0.00999999977 : f32
    %228 = vector.broadcast %cst_166 : f32 to vector<8x32xf32>
    %229 = arith.mulf %228, %225 : vector<8x32xf32>
    %230 = arith.select %227, %225, %229 : vector<8x32xi1>, vector<8x32xf32>
    %231 = arith.truncf %230 : vector<8x32xf32> to vector<8x32xbf16>
    %cst_167 = arith.constant dense<0.000000e+00> : vector<8x16xf32>
    %232 = tpu.matmul %231, %5, %cst_167 {dimension_numbers = #tpu.dot_dimension_numbers<[1], [0], [0], [1], [0, 0, 1, 1], [], []>} : vector<8x32xbf16>, vector<32x16xbf16>, vector<8x16xf32> -> vector<8x16xf32>
    %233 = vector.broadcast %2 : vector<1x16xf32> to vector<8x16xf32>
    %234 = arith.addf %232, %233 : vector<8x16xf32>
    %cst_168 = arith.constant 0.000000e+00 : f32
    %235 = vector.broadcast %cst_168 : f32 to vector<8x16xf32>
    %236 = arith.cmpf ogt, %234, %235 : vector<8x16xf32>
    %cst_169 = arith.constant 0.00999999977 : f32
    %237 = vector.broadcast %cst_169 : f32 to vector<8x16xf32>
    %238 = arith.mulf %237, %234 : vector<8x16xf32>
    %239 = arith.select %236, %234, %238 : vector<8x16xi1>, vector<8x16xf32>
    %240 = arith.truncf %239 : vector<8x16xf32> to vector<8x16xbf16>
    %cst_170 = arith.constant dense<0.000000e+00> : vector<8x8xf32>
    %241 = tpu.matmul %240, %6, %cst_170 {dimension_numbers = #tpu.dot_dimension_numbers<[1], [0], [0], [1], [0, 0, 1, 1], [], []>} : vector<8x16xbf16>, vector<16x8xbf16>, vector<8x8xf32> -> vector<8x8xf32>
    %242 = vector.broadcast %3 : vector<1x8xf32> to vector<8x8xf32>
    %243 = arith.addf %241, %242 : vector<8x8xf32>
    %cst_171 = arith.constant 0.000000e+00 : f32
    %244 = vector.broadcast %cst_171 : f32 to vector<8x8xf32>
    %245 = arith.cmpf ogt, %243, %244 : vector<8x8xf32>
    %cst_172 = arith.constant 0.00999999977 : f32
    %246 = vector.broadcast %cst_172 : f32 to vector<8x8xf32>
    %247 = arith.mulf %246, %243 : vector<8x8xf32>
    %248 = arith.select %245, %243, %247 : vector<8x8xi1>, vector<8x8xf32>
    %249 = arith.truncf %248 : vector<8x8xf32> to vector<8x8xbf16>
    %c3_173 = arith.constant 3 : index
    %c0_174 = arith.constant 0 : index
    %c0_175 = arith.constant 0 : index
    %250 = vector.load %arg10[%c3_173, %c0_174, %c0_175] : memref<9x8x128xbf16, #tpu.memory_space<vmem>>, vector<1x8x128xbf16>
    %251 = vector.shape_cast %250 : vector<1x8x128xbf16> to vector<8x128xbf16>
    %cst_176 = arith.constant dense<0.000000e+00> : vector<8x128xf32>
    %252 = tpu.matmul %249, %251, %cst_176 {dimension_numbers = #tpu.dot_dimension_numbers<[1], [0], [0], [1], [0, 0, 1, 1], [], []>} : vector<8x8xbf16>, vector<8x128xbf16>, vector<8x128xf32> -> vector<8x128xf32>
    %253 = arith.addf %191, %252 : vector<8x128xf32>
    %c2_177 = arith.constant 2 : index
    %c0_178 = arith.constant 0 : index
    %c128_179 = arith.constant 128 : index
    %254 = vector.load %arg1[%c2_177, %c0_178, %c128_179] : memref<9x8x576xbf16, #tpu.memory_space<vmem>>, vector<1x8x256xbf16>
    %255 = vector.shape_cast %254 : vector<1x8x256xbf16> to vector<8x256xbf16>
    %c0_180 = arith.constant 0 : index
    %c0_181 = arith.constant 0 : index
    %c0_182 = arith.constant 0 : index
    %256 = vector.load %arg2[%c0_180, %c0_181, %c0_182] : memref<4x256x64xbf16, #tpu.memory_space<vmem>>, vector<1x256x64xbf16>
    %257 = vector.shape_cast %256 : vector<1x256x64xbf16> to vector<256x64xbf16>
    %cst_183 = arith.constant dense<0.000000e+00> : vector<8x64xf32>
    %258 = tpu.matmul %255, %257, %cst_183 {dimension_numbers = #tpu.dot_dimension_numbers<[1], [0], [0], [1], [0, 0, 1, 1], [], []>} : vector<8x256xbf16>, vector<256x64xbf16>, vector<8x64xf32> -> vector<8x64xf32>
    %c3_184 = arith.constant 3 : index
    %c0_185 = arith.constant 0 : index
    %c128_186 = arith.constant 128 : index
    %259 = vector.load %arg1[%c3_184, %c0_185, %c128_186] : memref<9x8x576xbf16, #tpu.memory_space<vmem>>, vector<1x8x256xbf16>
    %260 = vector.shape_cast %259 : vector<1x8x256xbf16> to vector<8x256xbf16>
    %c1_187 = arith.constant 1 : index
    %c0_188 = arith.constant 0 : index
    %c0_189 = arith.constant 0 : index
    %261 = vector.load %arg2[%c1_187, %c0_188, %c0_189] : memref<4x256x64xbf16, #tpu.memory_space<vmem>>, vector<1x256x64xbf16>
    %262 = vector.shape_cast %261 : vector<1x256x64xbf16> to vector<256x64xbf16>
    %cst_190 = arith.constant dense<0.000000e+00> : vector<8x64xf32>
    %263 = tpu.matmul %260, %262, %cst_190 {dimension_numbers = #tpu.dot_dimension_numbers<[1], [0], [0], [1], [0, 0, 1, 1], [], []>} : vector<8x256xbf16>, vector<256x64xbf16>, vector<8x64xf32> -> vector<8x64xf32>
    %264 = arith.addf %258, %263 : vector<8x64xf32>
    %c4_191 = arith.constant 4 : index
    %c0_192 = arith.constant 0 : index
    %c128_193 = arith.constant 128 : index
    %265 = vector.load %arg1[%c4_191, %c0_192, %c128_193] : memref<9x8x576xbf16, #tpu.memory_space<vmem>>, vector<1x8x256xbf16>
    %266 = vector.shape_cast %265 : vector<1x8x256xbf16> to vector<8x256xbf16>
    %c2_194 = arith.constant 2 : index
    %c0_195 = arith.constant 0 : index
    %c0_196 = arith.constant 0 : index
    %267 = vector.load %arg2[%c2_194, %c0_195, %c0_196] : memref<4x256x64xbf16, #tpu.memory_space<vmem>>, vector<1x256x64xbf16>
    %268 = vector.shape_cast %267 : vector<1x256x64xbf16> to vector<256x64xbf16>
    %cst_197 = arith.constant dense<0.000000e+00> : vector<8x64xf32>
    %269 = tpu.matmul %266, %268, %cst_197 {dimension_numbers = #tpu.dot_dimension_numbers<[1], [0], [0], [1], [0, 0, 1, 1], [], []>} : vector<8x256xbf16>, vector<256x64xbf16>, vector<8x64xf32> -> vector<8x64xf32>
    %270 = arith.addf %264, %269 : vector<8x64xf32>
    %c5_198 = arith.constant 5 : index
    %c0_199 = arith.constant 0 : index
    %c128_200 = arith.constant 128 : index
    %271 = vector.load %arg1[%c5_198, %c0_199, %c128_200] : memref<9x8x576xbf16, #tpu.memory_space<vmem>>, vector<1x8x256xbf16>
    %272 = vector.shape_cast %271 : vector<1x8x256xbf16> to vector<8x256xbf16>
    %c3_201 = arith.constant 3 : index
    %c0_202 = arith.constant 0 : index
    %c0_203 = arith.constant 0 : index
    %273 = vector.load %arg2[%c3_201, %c0_202, %c0_203] : memref<4x256x64xbf16, #tpu.memory_space<vmem>>, vector<1x256x64xbf16>
    %274 = vector.shape_cast %273 : vector<1x256x64xbf16> to vector<256x64xbf16>
    %cst_204 = arith.constant dense<0.000000e+00> : vector<8x64xf32>
    %275 = tpu.matmul %272, %274, %cst_204 {dimension_numbers = #tpu.dot_dimension_numbers<[1], [0], [0], [1], [0, 0, 1, 1], [], []>} : vector<8x256xbf16>, vector<256x64xbf16>, vector<8x64xf32> -> vector<8x64xf32>
    %276 = arith.addf %270, %275 : vector<8x64xf32>
    %277 = vector.broadcast %0 : vector<1x64xf32> to vector<8x64xf32>
    %278 = arith.addf %276, %277 : vector<8x64xf32>
    %cst_205 = arith.constant 0.000000e+00 : f32
    %279 = vector.broadcast %cst_205 : f32 to vector<8x64xf32>
    %280 = arith.cmpf ogt, %278, %279 : vector<8x64xf32>
    %cst_206 = arith.constant 0.00999999977 : f32
    %281 = vector.broadcast %cst_206 : f32 to vector<8x64xf32>
    %282 = arith.mulf %281, %278 : vector<8x64xf32>
    %283 = arith.select %280, %278, %282 : vector<8x64xi1>, vector<8x64xf32>
    %284 = arith.truncf %283 : vector<8x64xf32> to vector<8x64xbf16>
    %cst_207 = arith.constant dense<0.000000e+00> : vector<8x32xf32>
    %285 = tpu.matmul %284, %4, %cst_207 {dimension_numbers = #tpu.dot_dimension_numbers<[1], [0], [0], [1], [0, 0, 1, 1], [], []>} : vector<8x64xbf16>, vector<64x32xbf16>, vector<8x32xf32> -> vector<8x32xf32>
    %286 = vector.broadcast %1 : vector<1x32xf32> to vector<8x32xf32>
    %287 = arith.addf %285, %286 : vector<8x32xf32>
    %cst_208 = arith.constant 0.000000e+00 : f32
    %288 = vector.broadcast %cst_208 : f32 to vector<8x32xf32>
    %289 = arith.cmpf ogt, %287, %288 : vector<8x32xf32>
    %cst_209 = arith.constant 0.00999999977 : f32
    %290 = vector.broadcast %cst_209 : f32 to vector<8x32xf32>
    %291 = arith.mulf %290, %287 : vector<8x32xf32>
    %292 = arith.select %289, %287, %291 : vector<8x32xi1>, vector<8x32xf32>
    %293 = arith.truncf %292 : vector<8x32xf32> to vector<8x32xbf16>
    %cst_210 = arith.constant dense<0.000000e+00> : vector<8x16xf32>
    %294 = tpu.matmul %293, %5, %cst_210 {dimension_numbers = #tpu.dot_dimension_numbers<[1], [0], [0], [1], [0, 0, 1, 1], [], []>} : vector<8x32xbf16>, vector<32x16xbf16>, vector<8x16xf32> -> vector<8x16xf32>
    %295 = vector.broadcast %2 : vector<1x16xf32> to vector<8x16xf32>
    %296 = arith.addf %294, %295 : vector<8x16xf32>
    %cst_211 = arith.constant 0.000000e+00 : f32
    %297 = vector.broadcast %cst_211 : f32 to vector<8x16xf32>
    %298 = arith.cmpf ogt, %296, %297 : vector<8x16xf32>
    %cst_212 = arith.constant 0.00999999977 : f32
    %299 = vector.broadcast %cst_212 : f32 to vector<8x16xf32>
    %300 = arith.mulf %299, %296 : vector<8x16xf32>
    %301 = arith.select %298, %296, %300 : vector<8x16xi1>, vector<8x16xf32>
    %302 = arith.truncf %301 : vector<8x16xf32> to vector<8x16xbf16>
    %cst_213 = arith.constant dense<0.000000e+00> : vector<8x8xf32>
    %303 = tpu.matmul %302, %6, %cst_213 {dimension_numbers = #tpu.dot_dimension_numbers<[1], [0], [0], [1], [0, 0, 1, 1], [], []>} : vector<8x16xbf16>, vector<16x8xbf16>, vector<8x8xf32> -> vector<8x8xf32>
    %304 = vector.broadcast %3 : vector<1x8xf32> to vector<8x8xf32>
    %305 = arith.addf %303, %304 : vector<8x8xf32>
    %cst_214 = arith.constant 0.000000e+00 : f32
    %306 = vector.broadcast %cst_214 : f32 to vector<8x8xf32>
    %307 = arith.cmpf ogt, %305, %306 : vector<8x8xf32>
    %cst_215 = arith.constant 0.00999999977 : f32
    %308 = vector.broadcast %cst_215 : f32 to vector<8x8xf32>
    %309 = arith.mulf %308, %305 : vector<8x8xf32>
    %310 = arith.select %307, %305, %309 : vector<8x8xi1>, vector<8x8xf32>
    %311 = arith.truncf %310 : vector<8x8xf32> to vector<8x8xbf16>
    %c4_216 = arith.constant 4 : index
    %c0_217 = arith.constant 0 : index
    %c0_218 = arith.constant 0 : index
    %312 = vector.load %arg10[%c4_216, %c0_217, %c0_218] : memref<9x8x128xbf16, #tpu.memory_space<vmem>>, vector<1x8x128xbf16>
    %313 = vector.shape_cast %312 : vector<1x8x128xbf16> to vector<8x128xbf16>
    %cst_219 = arith.constant dense<0.000000e+00> : vector<8x128xf32>
    %314 = tpu.matmul %311, %313, %cst_219 {dimension_numbers = #tpu.dot_dimension_numbers<[1], [0], [0], [1], [0, 0, 1, 1], [], []>} : vector<8x8xbf16>, vector<8x128xbf16>, vector<8x128xf32> -> vector<8x128xf32>
    %315 = arith.addf %253, %314 : vector<8x128xf32>
    %c2_220 = arith.constant 2 : index
    %c0_221 = arith.constant 0 : index
    %c256_222 = arith.constant 256 : index
    %316 = vector.load %arg1[%c2_220, %c0_221, %c256_222] : memref<9x8x576xbf16, #tpu.memory_space<vmem>>, vector<1x8x256xbf16>
    %317 = vector.shape_cast %316 : vector<1x8x256xbf16> to vector<8x256xbf16>
    %c0_223 = arith.constant 0 : index
    %c0_224 = arith.constant 0 : index
    %c0_225 = arith.constant 0 : index
    %318 = vector.load %arg2[%c0_223, %c0_224, %c0_225] : memref<4x256x64xbf16, #tpu.memory_space<vmem>>, vector<1x256x64xbf16>
    %319 = vector.shape_cast %318 : vector<1x256x64xbf16> to vector<256x64xbf16>
    %cst_226 = arith.constant dense<0.000000e+00> : vector<8x64xf32>
    %320 = tpu.matmul %317, %319, %cst_226 {dimension_numbers = #tpu.dot_dimension_numbers<[1], [0], [0], [1], [0, 0, 1, 1], [], []>} : vector<8x256xbf16>, vector<256x64xbf16>, vector<8x64xf32> -> vector<8x64xf32>
    %c3_227 = arith.constant 3 : index
    %c0_228 = arith.constant 0 : index
    %c256_229 = arith.constant 256 : index
    %321 = vector.load %arg1[%c3_227, %c0_228, %c256_229] : memref<9x8x576xbf16, #tpu.memory_space<vmem>>, vector<1x8x256xbf16>
    %322 = vector.shape_cast %321 : vector<1x8x256xbf16> to vector<8x256xbf16>
    %c1_230 = arith.constant 1 : index
    %c0_231 = arith.constant 0 : index
    %c0_232 = arith.constant 0 : index
    %323 = vector.load %arg2[%c1_230, %c0_231, %c0_232] : memref<4x256x64xbf16, #tpu.memory_space<vmem>>, vector<1x256x64xbf16>
    %324 = vector.shape_cast %323 : vector<1x256x64xbf16> to vector<256x64xbf16>
    %cst_233 = arith.constant dense<0.000000e+00> : vector<8x64xf32>
    %325 = tpu.matmul %322, %324, %cst_233 {dimension_numbers = #tpu.dot_dimension_numbers<[1], [0], [0], [1], [0, 0, 1, 1], [], []>} : vector<8x256xbf16>, vector<256x64xbf16>, vector<8x64xf32> -> vector<8x64xf32>
    %326 = arith.addf %320, %325 : vector<8x64xf32>
    %c4_234 = arith.constant 4 : index
    %c0_235 = arith.constant 0 : index
    %c256_236 = arith.constant 256 : index
    %327 = vector.load %arg1[%c4_234, %c0_235, %c256_236] : memref<9x8x576xbf16, #tpu.memory_space<vmem>>, vector<1x8x256xbf16>
    %328 = vector.shape_cast %327 : vector<1x8x256xbf16> to vector<8x256xbf16>
    %c2_237 = arith.constant 2 : index
    %c0_238 = arith.constant 0 : index
    %c0_239 = arith.constant 0 : index
    %329 = vector.load %arg2[%c2_237, %c0_238, %c0_239] : memref<4x256x64xbf16, #tpu.memory_space<vmem>>, vector<1x256x64xbf16>
    %330 = vector.shape_cast %329 : vector<1x256x64xbf16> to vector<256x64xbf16>
    %cst_240 = arith.constant dense<0.000000e+00> : vector<8x64xf32>
    %331 = tpu.matmul %328, %330, %cst_240 {dimension_numbers = #tpu.dot_dimension_numbers<[1], [0], [0], [1], [0, 0, 1, 1], [], []>} : vector<8x256xbf16>, vector<256x64xbf16>, vector<8x64xf32> -> vector<8x64xf32>
    %332 = arith.addf %326, %331 : vector<8x64xf32>
    %c5_241 = arith.constant 5 : index
    %c0_242 = arith.constant 0 : index
    %c256_243 = arith.constant 256 : index
    %333 = vector.load %arg1[%c5_241, %c0_242, %c256_243] : memref<9x8x576xbf16, #tpu.memory_space<vmem>>, vector<1x8x256xbf16>
    %334 = vector.shape_cast %333 : vector<1x8x256xbf16> to vector<8x256xbf16>
    %c3_244 = arith.constant 3 : index
    %c0_245 = arith.constant 0 : index
    %c0_246 = arith.constant 0 : index
    %335 = vector.load %arg2[%c3_244, %c0_245, %c0_246] : memref<4x256x64xbf16, #tpu.memory_space<vmem>>, vector<1x256x64xbf16>
    %336 = vector.shape_cast %335 : vector<1x256x64xbf16> to vector<256x64xbf16>
    %cst_247 = arith.constant dense<0.000000e+00> : vector<8x64xf32>
    %337 = tpu.matmul %334, %336, %cst_247 {dimension_numbers = #tpu.dot_dimension_numbers<[1], [0], [0], [1], [0, 0, 1, 1], [], []>} : vector<8x256xbf16>, vector<256x64xbf16>, vector<8x64xf32> -> vector<8x64xf32>
    %338 = arith.addf %332, %337 : vector<8x64xf32>
    %339 = vector.broadcast %0 : vector<1x64xf32> to vector<8x64xf32>
    %340 = arith.addf %338, %339 : vector<8x64xf32>
    %cst_248 = arith.constant 0.000000e+00 : f32
    %341 = vector.broadcast %cst_248 : f32 to vector<8x64xf32>
    %342 = arith.cmpf ogt, %340, %341 : vector<8x64xf32>
    %cst_249 = arith.constant 0.00999999977 : f32
    %343 = vector.broadcast %cst_249 : f32 to vector<8x64xf32>
    %344 = arith.mulf %343, %340 : vector<8x64xf32>
    %345 = arith.select %342, %340, %344 : vector<8x64xi1>, vector<8x64xf32>
    %346 = arith.truncf %345 : vector<8x64xf32> to vector<8x64xbf16>
    %cst_250 = arith.constant dense<0.000000e+00> : vector<8x32xf32>
    %347 = tpu.matmul %346, %4, %cst_250 {dimension_numbers = #tpu.dot_dimension_numbers<[1], [0], [0], [1], [0, 0, 1, 1], [], []>} : vector<8x64xbf16>, vector<64x32xbf16>, vector<8x32xf32> -> vector<8x32xf32>
    %348 = vector.broadcast %1 : vector<1x32xf32> to vector<8x32xf32>
    %349 = arith.addf %347, %348 : vector<8x32xf32>
    %cst_251 = arith.constant 0.000000e+00 : f32
    %350 = vector.broadcast %cst_251 : f32 to vector<8x32xf32>
    %351 = arith.cmpf ogt, %349, %350 : vector<8x32xf32>
    %cst_252 = arith.constant 0.00999999977 : f32
    %352 = vector.broadcast %cst_252 : f32 to vector<8x32xf32>
    %353 = arith.mulf %352, %349 : vector<8x32xf32>
    %354 = arith.select %351, %349, %353 : vector<8x32xi1>, vector<8x32xf32>
    %355 = arith.truncf %354 : vector<8x32xf32> to vector<8x32xbf16>
    %cst_253 = arith.constant dense<0.000000e+00> : vector<8x16xf32>
    %356 = tpu.matmul %355, %5, %cst_253 {dimension_numbers = #tpu.dot_dimension_numbers<[1], [0], [0], [1], [0, 0, 1, 1], [], []>} : vector<8x32xbf16>, vector<32x16xbf16>, vector<8x16xf32> -> vector<8x16xf32>
    %357 = vector.broadcast %2 : vector<1x16xf32> to vector<8x16xf32>
    %358 = arith.addf %356, %357 : vector<8x16xf32>
    %cst_254 = arith.constant 0.000000e+00 : f32
    %359 = vector.broadcast %cst_254 : f32 to vector<8x16xf32>
    %360 = arith.cmpf ogt, %358, %359 : vector<8x16xf32>
    %cst_255 = arith.constant 0.00999999977 : f32
    %361 = vector.broadcast %cst_255 : f32 to vector<8x16xf32>
    %362 = arith.mulf %361, %358 : vector<8x16xf32>
    %363 = arith.select %360, %358, %362 : vector<8x16xi1>, vector<8x16xf32>
    %364 = arith.truncf %363 : vector<8x16xf32> to vector<8x16xbf16>
    %cst_256 = arith.constant dense<0.000000e+00> : vector<8x8xf32>
    %365 = tpu.matmul %364, %6, %cst_256 {dimension_numbers = #tpu.dot_dimension_numbers<[1], [0], [0], [1], [0, 0, 1, 1], [], []>} : vector<8x16xbf16>, vector<16x8xbf16>, vector<8x8xf32> -> vector<8x8xf32>
    %366 = vector.broadcast %3 : vector<1x8xf32> to vector<8x8xf32>
    %367 = arith.addf %365, %366 : vector<8x8xf32>
    %cst_257 = arith.constant 0.000000e+00 : f32
    %368 = vector.broadcast %cst_257 : f32 to vector<8x8xf32>
    %369 = arith.cmpf ogt, %367, %368 : vector<8x8xf32>
    %cst_258 = arith.constant 0.00999999977 : f32
    %370 = vector.broadcast %cst_258 : f32 to vector<8x8xf32>
    %371 = arith.mulf %370, %367 : vector<8x8xf32>
    %372 = arith.select %369, %367, %371 : vector<8x8xi1>, vector<8x8xf32>
    %373 = arith.truncf %372 : vector<8x8xf32> to vector<8x8xbf16>
    %c5_259 = arith.constant 5 : index
    %c0_260 = arith.constant 0 : index
    %c0_261 = arith.constant 0 : index
    %374 = vector.load %arg10[%c5_259, %c0_260, %c0_261] : memref<9x8x128xbf16, #tpu.memory_space<vmem>>, vector<1x8x128xbf16>
    %375 = vector.shape_cast %374 : vector<1x8x128xbf16> to vector<8x128xbf16>
    %cst_262 = arith.constant dense<0.000000e+00> : vector<8x128xf32>
    %376 = tpu.matmul %373, %375, %cst_262 {dimension_numbers = #tpu.dot_dimension_numbers<[1], [0], [0], [1], [0, 0, 1, 1], [], []>} : vector<8x8xbf16>, vector<8x128xbf16>, vector<8x128xf32> -> vector<8x128xf32>
    %377 = arith.addf %315, %376 : vector<8x128xf32>
    %c4_263 = arith.constant 4 : index
    %c0_264 = arith.constant 0 : index
    %c0_265 = arith.constant 0 : index
    %378 = vector.load %arg1[%c4_263, %c0_264, %c0_265] : memref<9x8x576xbf16, #tpu.memory_space<vmem>>, vector<1x8x256xbf16>
    %379 = vector.shape_cast %378 : vector<1x8x256xbf16> to vector<8x256xbf16>
    %c0_266 = arith.constant 0 : index
    %c0_267 = arith.constant 0 : index
    %c0_268 = arith.constant 0 : index
    %380 = vector.load %arg2[%c0_266, %c0_267, %c0_268] : memref<4x256x64xbf16, #tpu.memory_space<vmem>>, vector<1x256x64xbf16>
    %381 = vector.shape_cast %380 : vector<1x256x64xbf16> to vector<256x64xbf16>
    %cst_269 = arith.constant dense<0.000000e+00> : vector<8x64xf32>
    %382 = tpu.matmul %379, %381, %cst_269 {dimension_numbers = #tpu.dot_dimension_numbers<[1], [0], [0], [1], [0, 0, 1, 1], [], []>} : vector<8x256xbf16>, vector<256x64xbf16>, vector<8x64xf32> -> vector<8x64xf32>
    %c5_270 = arith.constant 5 : index
    %c0_271 = arith.constant 0 : index
    %c0_272 = arith.constant 0 : index
    %383 = vector.load %arg1[%c5_270, %c0_271, %c0_272] : memref<9x8x576xbf16, #tpu.memory_space<vmem>>, vector<1x8x256xbf16>
    %384 = vector.shape_cast %383 : vector<1x8x256xbf16> to vector<8x256xbf16>
    %c1_273 = arith.constant 1 : index
    %c0_274 = arith.constant 0 : index
    %c0_275 = arith.constant 0 : index
    %385 = vector.load %arg2[%c1_273, %c0_274, %c0_275] : memref<4x256x64xbf16, #tpu.memory_space<vmem>>, vector<1x256x64xbf16>
    %386 = vector.shape_cast %385 : vector<1x256x64xbf16> to vector<256x64xbf16>
    %cst_276 = arith.constant dense<0.000000e+00> : vector<8x64xf32>
    %387 = tpu.matmul %384, %386, %cst_276 {dimension_numbers = #tpu.dot_dimension_numbers<[1], [0], [0], [1], [0, 0, 1, 1], [], []>} : vector<8x256xbf16>, vector<256x64xbf16>, vector<8x64xf32> -> vector<8x64xf32>
    %388 = arith.addf %382, %387 : vector<8x64xf32>
    %c6 = arith.constant 6 : index
    %c0_277 = arith.constant 0 : index
    %c0_278 = arith.constant 0 : index
    %389 = vector.load %arg1[%c6, %c0_277, %c0_278] : memref<9x8x576xbf16, #tpu.memory_space<vmem>>, vector<1x8x256xbf16>
    %390 = vector.shape_cast %389 : vector<1x8x256xbf16> to vector<8x256xbf16>
    %c2_279 = arith.constant 2 : index
    %c0_280 = arith.constant 0 : index
    %c0_281 = arith.constant 0 : index
    %391 = vector.load %arg2[%c2_279, %c0_280, %c0_281] : memref<4x256x64xbf16, #tpu.memory_space<vmem>>, vector<1x256x64xbf16>
    %392 = vector.shape_cast %391 : vector<1x256x64xbf16> to vector<256x64xbf16>
    %cst_282 = arith.constant dense<0.000000e+00> : vector<8x64xf32>
    %393 = tpu.matmul %390, %392, %cst_282 {dimension_numbers = #tpu.dot_dimension_numbers<[1], [0], [0], [1], [0, 0, 1, 1], [], []>} : vector<8x256xbf16>, vector<256x64xbf16>, vector<8x64xf32> -> vector<8x64xf32>
    %394 = arith.addf %388, %393 : vector<8x64xf32>
    %c7 = arith.constant 7 : index
    %c0_283 = arith.constant 0 : index
    %c0_284 = arith.constant 0 : index
    %395 = vector.load %arg1[%c7, %c0_283, %c0_284] : memref<9x8x576xbf16, #tpu.memory_space<vmem>>, vector<1x8x256xbf16>
    %396 = vector.shape_cast %395 : vector<1x8x256xbf16> to vector<8x256xbf16>
    %c3_285 = arith.constant 3 : index
    %c0_286 = arith.constant 0 : index
    %c0_287 = arith.constant 0 : index
    %397 = vector.load %arg2[%c3_285, %c0_286, %c0_287] : memref<4x256x64xbf16, #tpu.memory_space<vmem>>, vector<1x256x64xbf16>
    %398 = vector.shape_cast %397 : vector<1x256x64xbf16> to vector<256x64xbf16>
    %cst_288 = arith.constant dense<0.000000e+00> : vector<8x64xf32>
    %399 = tpu.matmul %396, %398, %cst_288 {dimension_numbers = #tpu.dot_dimension_numbers<[1], [0], [0], [1], [0, 0, 1, 1], [], []>} : vector<8x256xbf16>, vector<256x64xbf16>, vector<8x64xf32> -> vector<8x64xf32>
    %400 = arith.addf %394, %399 : vector<8x64xf32>
    %401 = vector.broadcast %0 : vector<1x64xf32> to vector<8x64xf32>
    %402 = arith.addf %400, %401 : vector<8x64xf32>
    %cst_289 = arith.constant 0.000000e+00 : f32
    %403 = vector.broadcast %cst_289 : f32 to vector<8x64xf32>
    %404 = arith.cmpf ogt, %402, %403 : vector<8x64xf32>
    %cst_290 = arith.constant 0.00999999977 : f32
    %405 = vector.broadcast %cst_290 : f32 to vector<8x64xf32>
    %406 = arith.mulf %405, %402 : vector<8x64xf32>
    %407 = arith.select %404, %402, %406 : vector<8x64xi1>, vector<8x64xf32>
    %408 = arith.truncf %407 : vector<8x64xf32> to vector<8x64xbf16>
    %cst_291 = arith.constant dense<0.000000e+00> : vector<8x32xf32>
    %409 = tpu.matmul %408, %4, %cst_291 {dimension_numbers = #tpu.dot_dimension_numbers<[1], [0], [0], [1], [0, 0, 1, 1], [], []>} : vector<8x64xbf16>, vector<64x32xbf16>, vector<8x32xf32> -> vector<8x32xf32>
    %410 = vector.broadcast %1 : vector<1x32xf32> to vector<8x32xf32>
    %411 = arith.addf %409, %410 : vector<8x32xf32>
    %cst_292 = arith.constant 0.000000e+00 : f32
    %412 = vector.broadcast %cst_292 : f32 to vector<8x32xf32>
    %413 = arith.cmpf ogt, %411, %412 : vector<8x32xf32>
    %cst_293 = arith.constant 0.00999999977 : f32
    %414 = vector.broadcast %cst_293 : f32 to vector<8x32xf32>
    %415 = arith.mulf %414, %411 : vector<8x32xf32>
    %416 = arith.select %413, %411, %415 : vector<8x32xi1>, vector<8x32xf32>
    %417 = arith.truncf %416 : vector<8x32xf32> to vector<8x32xbf16>
    %cst_294 = arith.constant dense<0.000000e+00> : vector<8x16xf32>
    %418 = tpu.matmul %417, %5, %cst_294 {dimension_numbers = #tpu.dot_dimension_numbers<[1], [0], [0], [1], [0, 0, 1, 1], [], []>} : vector<8x32xbf16>, vector<32x16xbf16>, vector<8x16xf32> -> vector<8x16xf32>
    %419 = vector.broadcast %2 : vector<1x16xf32> to vector<8x16xf32>
    %420 = arith.addf %418, %419 : vector<8x16xf32>
    %cst_295 = arith.constant 0.000000e+00 : f32
    %421 = vector.broadcast %cst_295 : f32 to vector<8x16xf32>
    %422 = arith.cmpf ogt, %420, %421 : vector<8x16xf32>
    %cst_296 = arith.constant 0.00999999977 : f32
    %423 = vector.broadcast %cst_296 : f32 to vector<8x16xf32>
    %424 = arith.mulf %423, %420 : vector<8x16xf32>
    %425 = arith.select %422, %420, %424 : vector<8x16xi1>, vector<8x16xf32>
    %426 = arith.truncf %425 : vector<8x16xf32> to vector<8x16xbf16>
    %cst_297 = arith.constant dense<0.000000e+00> : vector<8x8xf32>
    %427 = tpu.matmul %426, %6, %cst_297 {dimension_numbers = #tpu.dot_dimension_numbers<[1], [0], [0], [1], [0, 0, 1, 1], [], []>} : vector<8x16xbf16>, vector<16x8xbf16>, vector<8x8xf32> -> vector<8x8xf32>
    %428 = vector.broadcast %3 : vector<1x8xf32> to vector<8x8xf32>
    %429 = arith.addf %427, %428 : vector<8x8xf32>
    %cst_298 = arith.constant 0.000000e+00 : f32
    %430 = vector.broadcast %cst_298 : f32 to vector<8x8xf32>
    %431 = arith.cmpf ogt, %429, %430 : vector<8x8xf32>
    %cst_299 = arith.constant 0.00999999977 : f32
    %432 = vector.broadcast %cst_299 : f32 to vector<8x8xf32>
    %433 = arith.mulf %432, %429 : vector<8x8xf32>
    %434 = arith.select %431, %429, %433 : vector<8x8xi1>, vector<8x8xf32>
    %435 = arith.truncf %434 : vector<8x8xf32> to vector<8x8xbf16>
    %c6_300 = arith.constant 6 : index
    %c0_301 = arith.constant 0 : index
    %c0_302 = arith.constant 0 : index
    %436 = vector.load %arg10[%c6_300, %c0_301, %c0_302] : memref<9x8x128xbf16, #tpu.memory_space<vmem>>, vector<1x8x128xbf16>
    %437 = vector.shape_cast %436 : vector<1x8x128xbf16> to vector<8x128xbf16>
    %cst_303 = arith.constant dense<0.000000e+00> : vector<8x128xf32>
    %438 = tpu.matmul %435, %437, %cst_303 {dimension_numbers = #tpu.dot_dimension_numbers<[1], [0], [0], [1], [0, 0, 1, 1], [], []>} : vector<8x8xbf16>, vector<8x128xbf16>, vector<8x128xf32> -> vector<8x128xf32>
    %439 = arith.addf %377, %438 : vector<8x128xf32>
    %c4_304 = arith.constant 4 : index
    %c0_305 = arith.constant 0 : index
    %c128_306 = arith.constant 128 : index
    %440 = vector.load %arg1[%c4_304, %c0_305, %c128_306] : memref<9x8x576xbf16, #tpu.memory_space<vmem>>, vector<1x8x256xbf16>
    %441 = vector.shape_cast %440 : vector<1x8x256xbf16> to vector<8x256xbf16>
    %c0_307 = arith.constant 0 : index
    %c0_308 = arith.constant 0 : index
    %c0_309 = arith.constant 0 : index
    %442 = vector.load %arg2[%c0_307, %c0_308, %c0_309] : memref<4x256x64xbf16, #tpu.memory_space<vmem>>, vector<1x256x64xbf16>
    %443 = vector.shape_cast %442 : vector<1x256x64xbf16> to vector<256x64xbf16>
    %cst_310 = arith.constant dense<0.000000e+00> : vector<8x64xf32>
    %444 = tpu.matmul %441, %443, %cst_310 {dimension_numbers = #tpu.dot_dimension_numbers<[1], [0], [0], [1], [0, 0, 1, 1], [], []>} : vector<8x256xbf16>, vector<256x64xbf16>, vector<8x64xf32> -> vector<8x64xf32>
    %c5_311 = arith.constant 5 : index
    %c0_312 = arith.constant 0 : index
    %c128_313 = arith.constant 128 : index
    %445 = vector.load %arg1[%c5_311, %c0_312, %c128_313] : memref<9x8x576xbf16, #tpu.memory_space<vmem>>, vector<1x8x256xbf16>
    %446 = vector.shape_cast %445 : vector<1x8x256xbf16> to vector<8x256xbf16>
    %c1_314 = arith.constant 1 : index
    %c0_315 = arith.constant 0 : index
    %c0_316 = arith.constant 0 : index
    %447 = vector.load %arg2[%c1_314, %c0_315, %c0_316] : memref<4x256x64xbf16, #tpu.memory_space<vmem>>, vector<1x256x64xbf16>
    %448 = vector.shape_cast %447 : vector<1x256x64xbf16> to vector<256x64xbf16>
    %cst_317 = arith.constant dense<0.000000e+00> : vector<8x64xf32>
    %449 = tpu.matmul %446, %448, %cst_317 {dimension_numbers = #tpu.dot_dimension_numbers<[1], [0], [0], [1], [0, 0, 1, 1], [], []>} : vector<8x256xbf16>, vector<256x64xbf16>, vector<8x64xf32> -> vector<8x64xf32>
    %450 = arith.addf %444, %449 : vector<8x64xf32>
    %c6_318 = arith.constant 6 : index
    %c0_319 = arith.constant 0 : index
    %c128_320 = arith.constant 128 : index
    %451 = vector.load %arg1[%c6_318, %c0_319, %c128_320] : memref<9x8x576xbf16, #tpu.memory_space<vmem>>, vector<1x8x256xbf16>
    %452 = vector.shape_cast %451 : vector<1x8x256xbf16> to vector<8x256xbf16>
    %c2_321 = arith.constant 2 : index
    %c0_322 = arith.constant 0 : index
    %c0_323 = arith.constant 0 : index
    %453 = vector.load %arg2[%c2_321, %c0_322, %c0_323] : memref<4x256x64xbf16, #tpu.memory_space<vmem>>, vector<1x256x64xbf16>
    %454 = vector.shape_cast %453 : vector<1x256x64xbf16> to vector<256x64xbf16>
    %cst_324 = arith.constant dense<0.000000e+00> : vector<8x64xf32>
    %455 = tpu.matmul %452, %454, %cst_324 {dimension_numbers = #tpu.dot_dimension_numbers<[1], [0], [0], [1], [0, 0, 1, 1], [], []>} : vector<8x256xbf16>, vector<256x64xbf16>, vector<8x64xf32> -> vector<8x64xf32>
    %456 = arith.addf %450, %455 : vector<8x64xf32>
    %c7_325 = arith.constant 7 : index
    %c0_326 = arith.constant 0 : index
    %c128_327 = arith.constant 128 : index
    %457 = vector.load %arg1[%c7_325, %c0_326, %c128_327] : memref<9x8x576xbf16, #tpu.memory_space<vmem>>, vector<1x8x256xbf16>
    %458 = vector.shape_cast %457 : vector<1x8x256xbf16> to vector<8x256xbf16>
    %c3_328 = arith.constant 3 : index
    %c0_329 = arith.constant 0 : index
    %c0_330 = arith.constant 0 : index
    %459 = vector.load %arg2[%c3_328, %c0_329, %c0_330] : memref<4x256x64xbf16, #tpu.memory_space<vmem>>, vector<1x256x64xbf16>
    %460 = vector.shape_cast %459 : vector<1x256x64xbf16> to vector<256x64xbf16>
    %cst_331 = arith.constant dense<0.000000e+00> : vector<8x64xf32>
    %461 = tpu.matmul %458, %460, %cst_331 {dimension_numbers = #tpu.dot_dimension_numbers<[1], [0], [0], [1], [0, 0, 1, 1], [], []>} : vector<8x256xbf16>, vector<256x64xbf16>, vector<8x64xf32> -> vector<8x64xf32>
    %462 = arith.addf %456, %461 : vector<8x64xf32>
    %463 = vector.broadcast %0 : vector<1x64xf32> to vector<8x64xf32>
    %464 = arith.addf %462, %463 : vector<8x64xf32>
    %cst_332 = arith.constant 0.000000e+00 : f32
    %465 = vector.broadcast %cst_332 : f32 to vector<8x64xf32>
    %466 = arith.cmpf ogt, %464, %465 : vector<8x64xf32>
    %cst_333 = arith.constant 0.00999999977 : f32
    %467 = vector.broadcast %cst_333 : f32 to vector<8x64xf32>
    %468 = arith.mulf %467, %464 : vector<8x64xf32>
    %469 = arith.select %466, %464, %468 : vector<8x64xi1>, vector<8x64xf32>
    %470 = arith.truncf %469 : vector<8x64xf32> to vector<8x64xbf16>
    %cst_334 = arith.constant dense<0.000000e+00> : vector<8x32xf32>
    %471 = tpu.matmul %470, %4, %cst_334 {dimension_numbers = #tpu.dot_dimension_numbers<[1], [0], [0], [1], [0, 0, 1, 1], [], []>} : vector<8x64xbf16>, vector<64x32xbf16>, vector<8x32xf32> -> vector<8x32xf32>
    %472 = vector.broadcast %1 : vector<1x32xf32> to vector<8x32xf32>
    %473 = arith.addf %471, %472 : vector<8x32xf32>
    %cst_335 = arith.constant 0.000000e+00 : f32
    %474 = vector.broadcast %cst_335 : f32 to vector<8x32xf32>
    %475 = arith.cmpf ogt, %473, %474 : vector<8x32xf32>
    %cst_336 = arith.constant 0.00999999977 : f32
    %476 = vector.broadcast %cst_336 : f32 to vector<8x32xf32>
    %477 = arith.mulf %476, %473 : vector<8x32xf32>
    %478 = arith.select %475, %473, %477 : vector<8x32xi1>, vector<8x32xf32>
    %479 = arith.truncf %478 : vector<8x32xf32> to vector<8x32xbf16>
    %cst_337 = arith.constant dense<0.000000e+00> : vector<8x16xf32>
    %480 = tpu.matmul %479, %5, %cst_337 {dimension_numbers = #tpu.dot_dimension_numbers<[1], [0], [0], [1], [0, 0, 1, 1], [], []>} : vector<8x32xbf16>, vector<32x16xbf16>, vector<8x16xf32> -> vector<8x16xf32>
    %481 = vector.broadcast %2 : vector<1x16xf32> to vector<8x16xf32>
    %482 = arith.addf %480, %481 : vector<8x16xf32>
    %cst_338 = arith.constant 0.000000e+00 : f32
    %483 = vector.broadcast %cst_338 : f32 to vector<8x16xf32>
    %484 = arith.cmpf ogt, %482, %483 : vector<8x16xf32>
    %cst_339 = arith.constant 0.00999999977 : f32
    %485 = vector.broadcast %cst_339 : f32 to vector<8x16xf32>
    %486 = arith.mulf %485, %482 : vector<8x16xf32>
    %487 = arith.select %484, %482, %486 : vector<8x16xi1>, vector<8x16xf32>
    %488 = arith.truncf %487 : vector<8x16xf32> to vector<8x16xbf16>
    %cst_340 = arith.constant dense<0.000000e+00> : vector<8x8xf32>
    %489 = tpu.matmul %488, %6, %cst_340 {dimension_numbers = #tpu.dot_dimension_numbers<[1], [0], [0], [1], [0, 0, 1, 1], [], []>} : vector<8x16xbf16>, vector<16x8xbf16>, vector<8x8xf32> -> vector<8x8xf32>
    %490 = vector.broadcast %3 : vector<1x8xf32> to vector<8x8xf32>
    %491 = arith.addf %489, %490 : vector<8x8xf32>
    %cst_341 = arith.constant 0.000000e+00 : f32
    %492 = vector.broadcast %cst_341 : f32 to vector<8x8xf32>
    %493 = arith.cmpf ogt, %491, %492 : vector<8x8xf32>
    %cst_342 = arith.constant 0.00999999977 : f32
    %494 = vector.broadcast %cst_342 : f32 to vector<8x8xf32>
    %495 = arith.mulf %494, %491 : vector<8x8xf32>
    %496 = arith.select %493, %491, %495 : vector<8x8xi1>, vector<8x8xf32>
    %497 = arith.truncf %496 : vector<8x8xf32> to vector<8x8xbf16>
    %c7_343 = arith.constant 7 : index
    %c0_344 = arith.constant 0 : index
    %c0_345 = arith.constant 0 : index
    %498 = vector.load %arg10[%c7_343, %c0_344, %c0_345] : memref<9x8x128xbf16, #tpu.memory_space<vmem>>, vector<1x8x128xbf16>
    %499 = vector.shape_cast %498 : vector<1x8x128xbf16> to vector<8x128xbf16>
    %cst_346 = arith.constant dense<0.000000e+00> : vector<8x128xf32>
    %500 = tpu.matmul %497, %499, %cst_346 {dimension_numbers = #tpu.dot_dimension_numbers<[1], [0], [0], [1], [0, 0, 1, 1], [], []>} : vector<8x8xbf16>, vector<8x128xbf16>, vector<8x128xf32> -> vector<8x128xf32>
    %501 = arith.addf %439, %500 : vector<8x128xf32>
    %c4_347 = arith.constant 4 : index
    %c0_348 = arith.constant 0 : index
    %c256_349 = arith.constant 256 : index
    %502 = vector.load %arg1[%c4_347, %c0_348, %c256_349] : memref<9x8x576xbf16, #tpu.memory_space<vmem>>, vector<1x8x256xbf16>
    %503 = vector.shape_cast %502 : vector<1x8x256xbf16> to vector<8x256xbf16>
    %c0_350 = arith.constant 0 : index
    %c0_351 = arith.constant 0 : index
    %c0_352 = arith.constant 0 : index
    %504 = vector.load %arg2[%c0_350, %c0_351, %c0_352] : memref<4x256x64xbf16, #tpu.memory_space<vmem>>, vector<1x256x64xbf16>
    %505 = vector.shape_cast %504 : vector<1x256x64xbf16> to vector<256x64xbf16>
    %cst_353 = arith.constant dense<0.000000e+00> : vector<8x64xf32>
    %506 = tpu.matmul %503, %505, %cst_353 {dimension_numbers = #tpu.dot_dimension_numbers<[1], [0], [0], [1], [0, 0, 1, 1], [], []>} : vector<8x256xbf16>, vector<256x64xbf16>, vector<8x64xf32> -> vector<8x64xf32>
    %c5_354 = arith.constant 5 : index
    %c0_355 = arith.constant 0 : index
    %c256_356 = arith.constant 256 : index
    %507 = vector.load %arg1[%c5_354, %c0_355, %c256_356] : memref<9x8x576xbf16, #tpu.memory_space<vmem>>, vector<1x8x256xbf16>
    %508 = vector.shape_cast %507 : vector<1x8x256xbf16> to vector<8x256xbf16>
    %c1_357 = arith.constant 1 : index
    %c0_358 = arith.constant 0 : index
    %c0_359 = arith.constant 0 : index
    %509 = vector.load %arg2[%c1_357, %c0_358, %c0_359] : memref<4x256x64xbf16, #tpu.memory_space<vmem>>, vector<1x256x64xbf16>
    %510 = vector.shape_cast %509 : vector<1x256x64xbf16> to vector<256x64xbf16>
    %cst_360 = arith.constant dense<0.000000e+00> : vector<8x64xf32>
    %511 = tpu.matmul %508, %510, %cst_360 {dimension_numbers = #tpu.dot_dimension_numbers<[1], [0], [0], [1], [0, 0, 1, 1], [], []>} : vector<8x256xbf16>, vector<256x64xbf16>, vector<8x64xf32> -> vector<8x64xf32>
    %512 = arith.addf %506, %511 : vector<8x64xf32>
    %c6_361 = arith.constant 6 : index
    %c0_362 = arith.constant 0 : index
    %c256_363 = arith.constant 256 : index
    %513 = vector.load %arg1[%c6_361, %c0_362, %c256_363] : memref<9x8x576xbf16, #tpu.memory_space<vmem>>, vector<1x8x256xbf16>
    %514 = vector.shape_cast %513 : vector<1x8x256xbf16> to vector<8x256xbf16>
    %c2_364 = arith.constant 2 : index
    %c0_365 = arith.constant 0 : index
    %c0_366 = arith.constant 0 : index
    %515 = vector.load %arg2[%c2_364, %c0_365, %c0_366] : memref<4x256x64xbf16, #tpu.memory_space<vmem>>, vector<1x256x64xbf16>
    %516 = vector.shape_cast %515 : vector<1x256x64xbf16> to vector<256x64xbf16>
    %cst_367 = arith.constant dense<0.000000e+00> : vector<8x64xf32>
    %517 = tpu.matmul %514, %516, %cst_367 {dimension_numbers = #tpu.dot_dimension_numbers<[1], [0], [0], [1], [0, 0, 1, 1], [], []>} : vector<8x256xbf16>, vector<256x64xbf16>, vector<8x64xf32> -> vector<8x64xf32>
    %518 = arith.addf %512, %517 : vector<8x64xf32>
    %c7_368 = arith.constant 7 : index
    %c0_369 = arith.constant 0 : index
    %c256_370 = arith.constant 256 : index
    %519 = vector.load %arg1[%c7_368, %c0_369, %c256_370] : memref<9x8x576xbf16, #tpu.memory_space<vmem>>, vector<1x8x256xbf16>
    %520 = vector.shape_cast %519 : vector<1x8x256xbf16> to vector<8x256xbf16>
    %c3_371 = arith.constant 3 : index
    %c0_372 = arith.constant 0 : index
    %c0_373 = arith.constant 0 : index
    %521 = vector.load %arg2[%c3_371, %c0_372, %c0_373] : memref<4x256x64xbf16, #tpu.memory_space<vmem>>, vector<1x256x64xbf16>
    %522 = vector.shape_cast %521 : vector<1x256x64xbf16> to vector<256x64xbf16>
    %cst_374 = arith.constant dense<0.000000e+00> : vector<8x64xf32>
    %523 = tpu.matmul %520, %522, %cst_374 {dimension_numbers = #tpu.dot_dimension_numbers<[1], [0], [0], [1], [0, 0, 1, 1], [], []>} : vector<8x256xbf16>, vector<256x64xbf16>, vector<8x64xf32> -> vector<8x64xf32>
    %524 = arith.addf %518, %523 : vector<8x64xf32>
    %525 = vector.broadcast %0 : vector<1x64xf32> to vector<8x64xf32>
    %526 = arith.addf %524, %525 : vector<8x64xf32>
    %cst_375 = arith.constant 0.000000e+00 : f32
    %527 = vector.broadcast %cst_375 : f32 to vector<8x64xf32>
    %528 = arith.cmpf ogt, %526, %527 : vector<8x64xf32>
    %cst_376 = arith.constant 0.00999999977 : f32
    %529 = vector.broadcast %cst_376 : f32 to vector<8x64xf32>
    %530 = arith.mulf %529, %526 : vector<8x64xf32>
    %531 = arith.select %528, %526, %530 : vector<8x64xi1>, vector<8x64xf32>
    %532 = arith.truncf %531 : vector<8x64xf32> to vector<8x64xbf16>
    %cst_377 = arith.constant dense<0.000000e+00> : vector<8x32xf32>
    %533 = tpu.matmul %532, %4, %cst_377 {dimension_numbers = #tpu.dot_dimension_numbers<[1], [0], [0], [1], [0, 0, 1, 1], [], []>} : vector<8x64xbf16>, vector<64x32xbf16>, vector<8x32xf32> -> vector<8x32xf32>
    %534 = vector.broadcast %1 : vector<1x32xf32> to vector<8x32xf32>
    %535 = arith.addf %533, %534 : vector<8x32xf32>
    %cst_378 = arith.constant 0.000000e+00 : f32
    %536 = vector.broadcast %cst_378 : f32 to vector<8x32xf32>
    %537 = arith.cmpf ogt, %535, %536 : vector<8x32xf32>
    %cst_379 = arith.constant 0.00999999977 : f32
    %538 = vector.broadcast %cst_379 : f32 to vector<8x32xf32>
    %539 = arith.mulf %538, %535 : vector<8x32xf32>
    %540 = arith.select %537, %535, %539 : vector<8x32xi1>, vector<8x32xf32>
    %541 = arith.truncf %540 : vector<8x32xf32> to vector<8x32xbf16>
    %cst_380 = arith.constant dense<0.000000e+00> : vector<8x16xf32>
    %542 = tpu.matmul %541, %5, %cst_380 {dimension_numbers = #tpu.dot_dimension_numbers<[1], [0], [0], [1], [0, 0, 1, 1], [], []>} : vector<8x32xbf16>, vector<32x16xbf16>, vector<8x16xf32> -> vector<8x16xf32>
    %543 = vector.broadcast %2 : vector<1x16xf32> to vector<8x16xf32>
    %544 = arith.addf %542, %543 : vector<8x16xf32>
    %cst_381 = arith.constant 0.000000e+00 : f32
    %545 = vector.broadcast %cst_381 : f32 to vector<8x16xf32>
    %546 = arith.cmpf ogt, %544, %545 : vector<8x16xf32>
    %cst_382 = arith.constant 0.00999999977 : f32
    %547 = vector.broadcast %cst_382 : f32 to vector<8x16xf32>
    %548 = arith.mulf %547, %544 : vector<8x16xf32>
    %549 = arith.select %546, %544, %548 : vector<8x16xi1>, vector<8x16xf32>
    %550 = arith.truncf %549 : vector<8x16xf32> to vector<8x16xbf16>
    %cst_383 = arith.constant dense<0.000000e+00> : vector<8x8xf32>
    %551 = tpu.matmul %550, %6, %cst_383 {dimension_numbers = #tpu.dot_dimension_numbers<[1], [0], [0], [1], [0, 0, 1, 1], [], []>} : vector<8x16xbf16>, vector<16x8xbf16>, vector<8x8xf32> -> vector<8x8xf32>
    %552 = vector.broadcast %3 : vector<1x8xf32> to vector<8x8xf32>
    %553 = arith.addf %551, %552 : vector<8x8xf32>
    %cst_384 = arith.constant 0.000000e+00 : f32
    %554 = vector.broadcast %cst_384 : f32 to vector<8x8xf32>
    %555 = arith.cmpf ogt, %553, %554 : vector<8x8xf32>
    %cst_385 = arith.constant 0.00999999977 : f32
    %556 = vector.broadcast %cst_385 : f32 to vector<8x8xf32>
    %557 = arith.mulf %556, %553 : vector<8x8xf32>
    %558 = arith.select %555, %553, %557 : vector<8x8xi1>, vector<8x8xf32>
    %559 = arith.truncf %558 : vector<8x8xf32> to vector<8x8xbf16>
    %c8 = arith.constant 8 : index
    %c0_386 = arith.constant 0 : index
    %c0_387 = arith.constant 0 : index
    %560 = vector.load %arg10[%c8, %c0_386, %c0_387] : memref<9x8x128xbf16, #tpu.memory_space<vmem>>, vector<1x8x128xbf16>
    %561 = vector.shape_cast %560 : vector<1x8x128xbf16> to vector<8x128xbf16>
    %cst_388 = arith.constant dense<0.000000e+00> : vector<8x128xf32>
    %562 = tpu.matmul %559, %561, %cst_388 {dimension_numbers = #tpu.dot_dimension_numbers<[1], [0], [0], [1], [0, 0, 1, 1], [], []>} : vector<8x8xbf16>, vector<8x128xbf16>, vector<8x128xf32> -> vector<8x128xf32>
    %563 = arith.addf %501, %562 : vector<8x128xf32>
    %c0_389 = arith.constant 0 : index
    %c0_390 = arith.constant 0 : index
    %564 = vector.load %arg11[%c0_389, %c0_390] : memref<8x128xf32, #tpu.memory_space<vmem>>, vector<8x128xf32>
    tpu.vector_store %arg11[%c0_389, %c0_390], %563 {strides = array<i32>} : memref<8x128xf32, #tpu.memory_space<vmem>>, vector<8x128xf32>,
    return
  }
  func.func @transform_0(%arg0: i32) -> (i32, i32, i32) {
    %c0_i32 = arith.constant 0 : i32
    %c0_i32_0 = arith.constant 0 : i32
    %c0_i32_1 = arith.constant 0 : i32
    return %c0_i32, %arg0, %c0_i32_0 : i32, i32, i32
  }
  func.func @transform_1(%arg0: i32) -> (i32, i32, i32) {
    %c0_i32 = arith.constant 0 : i32
    %c0_i32_0 = arith.constant 0 : i32
    %c0_i32_1 = arith.constant 0 : i32
    %c0_i32_2 = arith.constant 0 : i32
    return %c0_i32, %c0_i32_0, %c0_i32_1 : i32, i32, i32
  }
  func.func @transform_2(%arg0: i32) -> (i32, i32) {
    %c0_i32 = arith.constant 0 : i32
    %c0_i32_0 = arith.constant 0 : i32
    %c0_i32_1 = arith.constant 0 : i32
    return %c0_i32, %c0_i32_0 : i32, i32
  }
  func.func @transform_3(%arg0: i32) -> (i32, i32) {
    %c0_i32 = arith.constant 0 : i32
    %c0_i32_0 = arith.constant 0 : i32
    %c0_i32_1 = arith.constant 0 : i32
    return %c0_i32, %c0_i32_0 : i32, i32
  }
  func.func @transform_4(%arg0: i32) -> (i32, i32) {
    %c0_i32 = arith.constant 0 : i32
    %c0_i32_0 = arith.constant 0 : i32
    %c0_i32_1 = arith.constant 0 : i32
    return %c0_i32, %c0_i32_0 : i32, i32
  }
  func.func @transform_5(%arg0: i32) -> (i32, i32) {
    %c0_i32 = arith.constant 0 : i32
    %c0_i32_0 = arith.constant 0 : i32
    %c0_i32_1 = arith.constant 0 : i32
    return %c0_i32, %c0_i32_0 : i32, i32
  }
  func.func @transform_6(%arg0: i32) -> (i32, i32) {
    %c0_i32 = arith.constant 0 : i32
    %c0_i32_0 = arith.constant 0 : i32
    %c0_i32_1 = arith.constant 0 : i32
    return %c0_i32, %c0_i32_0 : i32, i32
  }
  func.func @transform_7(%arg0: i32) -> (i32, i32) {
    %c0_i32 = arith.constant 0 : i32
    %c0_i32_0 = arith.constant 0 : i32
    %c0_i32_1 = arith.constant 0 : i32
    return %c0_i32, %c0_i32_0 : i32, i32
  }
  func.func @transform_8(%arg0: i32) -> (i32, i32) {
    %c0_i32 = arith.constant 0 : i32
    %c0_i32_0 = arith.constant 0 : i32
    %c0_i32_1 = arith.constant 0 : i32
    return %c0_i32, %c0_i32_0 : i32, i32
  }
  func.func @transform_9(%arg0: i32) -> (i32, i32, i32) {
    %c0_i32 = arith.constant 0 : i32
    %c0_i32_0 = arith.constant 0 : i32
    %c0_i32_1 = arith.constant 0 : i32
    %c0_i32_2 = arith.constant 0 : i32
    return %c0_i32, %c0_i32_0, %c0_i32_1 : i32, i32, i32
  }
  func.func @transform_10(%arg0: i32) -> (i32, i32) {
    %c0_i32 = arith.constant 0 : i32
    %c0_i32_0 = arith.constant 0 : i32
    return %arg0, %c0_i32 : i32, i32
  }
}

</mosaic_0001>

<llo_original>
// kernel: featdisnet_forward.1
$region0: #{featdisnet_forward.1}
  #allocation0 [shape = 'u32[]', space=smem, size = 0x4, offset = 0x4, fixed_abs, tag = 'smem constant byte address 0x4 - core index']
  #allocation1 [shape = 'u32[144,128]{1,0:T(1,128)}', space=vmem, size = 0x12000, scoped, tag = 'internal scratch']
  %s0 = inlined_call_operand.vmem [shape: bf16[9,8,576], index: 0, kind: input, shape index: {}]
  %s1 = inlined_call_operand.vmem [shape: bf16[4,256,64], index: 1, kind: input, shape index: {}]
  %s2 = inlined_call_operand.vmem [shape: f32[1,64], index: 2, kind: input, shape index: {}]
  %s3 = inlined_call_operand.vmem [shape: bf16[64,32], index: 3, kind: input, shape index: {}]
  %s4 = inlined_call_operand.vmem [shape: f32[1,32], index: 4, kind: input, shape index: {}]
  %s5 = inlined_call_operand.vmem [shape: bf16[32,16], index: 5, kind: input, shape index: {}]
  %s6 = inlined_call_operand.vmem [shape: f32[1,16], index: 6, kind: input, shape index: {}]
  %s7 = inlined_call_operand.vmem [shape: bf16[16,8], index: 7, kind: input, shape index: {}]
  %s8 = inlined_call_operand.vmem [shape: f32[1,8], index: 8, kind: input, shape index: {}]
  %s9 = inlined_call_operand.vmem [shape: bf16[9,8,128], index: 9, kind: input, shape index: {}]
  %s10 = inlined_call_operand.vmem [shape: f32[8,128], index: 10, kind: output, shape index: {}]
  %s11 = sld [smem:[#allocation0]]
  $region50: #{featdisnet_forward.1} parent=0
    _
  %s13 = ssub.s32 1, %s11
  %s14 = scalar_select 0, %s13, %s11
  // Predicated region
  $region2: #{featdisnet_forward.1} parent=0 // pred_check
    _
  $region3: #{featdisnet_forward.1} parent=0 // pred_check_branch
    %16 = sbr.rel (0) target = $region5
  $region4: #{featdisnet_forward.1} parent=0 // pred_region
    _
  $region5: #{featdisnet_forward.1} parent=0 // pred_fallthru
    _
  // Predicated region
  $region6: #{featdisnet_forward.1} parent=0 // pred_check
    _
  $region7: #{featdisnet_forward.1} parent=0 // pred_check_branch
    %18 = sbr.rel (0) target = $region9
  $region8: #{featdisnet_forward.1} parent=0 // pred_region
    _
  $region9: #{featdisnet_forward.1} parent=0 // pred_fallthru
    _
  // Predicated region
  $region10: #{featdisnet_forward.1} parent=0 // pred_check
    _
  $region11: #{featdisnet_forward.1} parent=0 // pred_check_branch
    %20 = sbr.rel (0) target = $region13
  $region12: #{featdisnet_forward.1} parent=0 // pred_region
    _
  $region13: #{featdisnet_forward.1} parent=0 // pred_fallthru
    _
  // Predicated region
  $region14: #{featdisnet_forward.1} parent=0 // pred_check
    _
  $region15: #{featdisnet_forward.1} parent=0 // pred_check_branch
    %22 = sbr.rel (0) target = $region17
  $region16: #{featdisnet_forward.1} parent=0 // pred_region
    _
  $region17: #{featdisnet_forward.1} parent=0 // pred_fallthru
    _
  // Predicated region
  $region18: #{featdisnet_forward.1} parent=0 // pred_check
    _
  $region19: #{featdisnet_forward.1} parent=0 // pred_check_branch
    %24 = sbr.rel (0) target = $region21
  $region20: #{featdisnet_forward.1} parent=0 // pred_region
    _
  $region21: #{featdisnet_forward.1} parent=0 // pred_fallthru
    _
  // Predicated region
  $region22: #{featdisnet_forward.1} parent=0 // pred_check
    _
  $region23: #{featdisnet_forward.1} parent=0 // pred_check_branch
    %26 = sbr.rel (0) target = $region25
  $region24: #{featdisnet_forward.1} parent=0 // pred_region
    _
  $region25: #{featdisnet_forward.1} parent=0 // pred_fallthru
    _
  // Predicated region
  $region26: #{featdisnet_forward.1} parent=0 // pred_check
    _
  $region27: #{featdisnet_forward.1} parent=0 // pred_check_branch
    %28 = sbr.rel (0) target = $region29
  $region28: #{featdisnet_forward.1} parent=0 // pred_region
    _
  $region29: #{featdisnet_forward.1} parent=0 // pred_fallthru
    _
  // Predicated region
  $region30: #{featdisnet_forward.1} parent=0 // pred_check
    _
  $region31: #{featdisnet_forward.1} parent=0 // pred_check_branch
    %30 = sbr.rel (0) target = $region33
  $region32: #{featdisnet_forward.1} parent=0 // pred_region
    _
  $region33: #{featdisnet_forward.1} parent=0 // pred_fallthru
    _
  // Predicated region
  $region34: #{featdisnet_forward.1} parent=0 // pred_check
    _
  $region35: #{featdisnet_forward.1} parent=0 // pred_check_branch
    %32 = sbr.rel (0) target = $region37
  $region36: #{featdisnet_forward.1} parent=0 // pred_region
    _
  $region37: #{featdisnet_forward.1} parent=0 // pred_fallthru
    _
  // Predicated region
  $region38: #{featdisnet_forward.1} parent=0 // pred_check
    _
  $region39: #{featdisnet_forward.1} parent=0 // pred_check_branch
    %34 = sbr.rel (0) target = $region41
  $region40: #{featdisnet_forward.1} parent=0 // pred_region
    _
  $region41: #{featdisnet_forward.1} parent=0 // pred_fallthru
    _
  %v36 = vld [vmem:[%s2] sm:$0x1]
  %v37 = vld [vmem:[%s4] sm:$0x1]
  %v38 = vld [vmem:[%s6] sm:$0x1]
  %v39 = vld [vmem:[%s8] sm:$0x1]
  %v40 = vld [vmem:[%s3] sm:$0xf]
  %v41 = vld [vmem:[%s3 + $0x4] sm:$0xf]
  %v42 = vld [vmem:[%s3 + $0x8] sm:$0xf]
  %v43 = vld [vmem:[%s3 + $0xc] sm:$0xf]
  %v44 = vld [vmem:[%s3 + $0x10] sm:$0xf]
  %v45 = vld [vmem:[%s3 + $0x14] sm:$0xf]
  %v46 = vld [vmem:[%s3 + $0x18] sm:$0xf]
  %v47 = vld [vmem:[%s3 + $0x1c] sm:$0xf]
  %v48 = vld [vmem:[%s5] sm:$0xf]
  %v49 = vld [vmem:[%s5 + $0x4] sm:$0xf]
  %v50 = vld [vmem:[%s5 + $0x8] sm:$0xf]
  %v51 = vld [vmem:[%s5 + $0xc] sm:$0xf]
  %v52 = vld [vmem:[%s7] sm:$0xf]
  %v53 = vld [vmem:[%s7 + $0x4] sm:$0xf]
  %v54 = vld [vmem:[%s0] sm:$0xff]
  %v55 = vld [vmem:[%s1] sm:$0xf]
  %v56 = vld [vmem:[%s1 + $0x4] sm:$0xf]
  %v57 = vld [vmem:[%s1 + $0x8] sm:$0xf]
  %v58 = vld [vmem:[%s1 + $0xc] sm:$0xf]
  %v59 = vld [vmem:[%s1 + $0x10] sm:$0xf]
  %v60 = vld [vmem:[%s1 + $0x14] sm:$0xf]
  %v61 = vld [vmem:[%s1 + $0x18] sm:$0xf]
  %v62 = vld [vmem:[%s1 + $0x1c] sm:$0xf]
  %v63 = vld [vmem:[%s1 + $0x20] sm:$0xf]
  %v64 = vld [vmem:[%s1 + $0x24] sm:$0xf]
  %v65 = vld [vmem:[%s1 + $0x28] sm:$0xf]
  %v66 = vld [vmem:[%s1 + $0x2c] sm:$0xf]
  %v67 = vld [vmem:[%s1 + $0x30] sm:$0xf]
  %v68 = vld [vmem:[%s1 + $0x34] sm:$0xf]
  %v69 = vld [vmem:[%s1 + $0x38] sm:$0xf]
  %v70 = vld [vmem:[%s1 + $0x3c] sm:$0xf]
  %v71 = vld [vmem:[%s1 + $0x40] sm:$0xf]
  %v72 = vld [vmem:[%s1 + $0x44] sm:$0xf]
  %v73 = vld [vmem:[%s1 + $0x48] sm:$0xf]
  %v74 = vld [vmem:[%s1 + $0x4c] sm:$0xf]
  %v75 = vld [vmem:[%s1 + $0x50] sm:$0xf]
  %v76 = vld [vmem:[%s1 + $0x54] sm:$0xf]
  %v77 = vld [vmem:[%s1 + $0x58] sm:$0xf]
  %v78 = vld [vmem:[%s1 + $0x5c] sm:$0xf]
  %v79 = vld [vmem:[%s1 + $0x60] sm:$0xf]
  %v80 = vld [vmem:[%s1 + $0x64] sm:$0xf]
  %v81 = vld [vmem:[%s1 + $0x68] sm:$0xf]
  %v82 = vld [vmem:[%s1 + $0x6c] sm:$0xf]
  %v83 = vld [vmem:[%s1 + $0x70] sm:$0xf]
  %v84 = vld [vmem:[%s1 + $0x74] sm:$0xf]
  %v85 = vld [vmem:[%s1 + $0x78] sm:$0xf]
  %v86 = vld [vmem:[%s1 + $0x7c] sm:$0xf]
  %s87 = scalar_lea.vmem %s0, 20
  %v88 = vld [vmem:[%s87] sm:$0xff]
  %s89 = scalar_lea.vmem %s1, 128
  %v90 = vld [vmem:[%s89] sm:$0xf]
  %v91 = vld [vmem:[%s89 + $0x4] sm:$0xf]
  %v92 = vld [vmem:[%s89 + $0x8] sm:$0xf]
  %v93 = vld [vmem:[%s89 + $0xc] sm:$0xf]
  %v94 = vld [vmem:[%s89 + $0x10] sm:$0xf]
  %v95 = vld [vmem:[%s89 + $0x14] sm:$0xf]
  %v96 = vld [vmem:[%s89 + $0x18] sm:$0xf]
  %v97 = vld [vmem:[%s89 + $0x1c] sm:$0xf]
  %v98 = vld [vmem:[%s89 + $0x20] sm:$0xf]
  %v99 = vld [vmem:[%s89 + $0x24] sm:$0xf]
  %v100 = vld [vmem:[%s89 + $0x28] sm:$0xf]
  %v101 = vld [vmem:[%s89 + $0x2c] sm:$0xf]
  %v102 = vld [vmem:[%s89 + $0x30] sm:$0xf]
  %v103 = vld [vmem:[%s89 + $0x34] sm:$0xf]
  %v104 = vld [vmem:[%s89 + $0x38] sm:$0xf]
  %v105 = vld [vmem:[%s89 + $0x3c] sm:$0xf]
  %v106 = vld [vmem:[%s89 + $0x40] sm:$0xf]
  %v107 = vld [vmem:[%s89 + $0x44] sm:$0xf]
  %v108 = vld [vmem:[%s89 + $0x48] sm:$0xf]
  %v109 = vld [vmem:[%s89 + $0x4c] sm:$0xf]
  %v110 = vld [vmem:[%s89 + $0x50] sm:$0xf]
  %v111 = vld [vmem:[%s89 + $0x54] sm:$0xf]
  %v112 = vld [vmem:[%s89 + $0x58] sm:$0xf]
  %v113 = vld [vmem:[%s89 + $0x5c] sm:$0xf]
  %v114 = vld [vmem:[%s89 + $0x60] sm:$0xf]
  %v115 = vld [vmem:[%s89 + $0x64] sm:$0xf]
  %v116 = vld [vmem:[%s89 + $0x68] sm:$0xf]
  %v117 = vld [vmem:[%s89 + $0x6c] sm:$0xf]
  %v118 = vld [vmem:[%s89 + $0x70] sm:$0xf]
  %v119 = vld [vmem:[%s89 + $0x74] sm:$0xf]
  %v120 = vld [vmem:[%s89 + $0x78] sm:$0xf]
  %v121 = vld [vmem:[%s89 + $0x7c] sm:$0xf]
  %v123 = vunpack.c.l.b16 %v88
  %v124 = vunpack.c.h.b16 %v88
  %v125 = vpack.c.b16 %v123, %v123
  %v126 = vpack.c.b16 %v124, %v124
  %v161 = vunpack.c.l.b16 %v90
  %v162 = vunpack.c.l.b16 %v91
  %v163 = vunpack.c.l.b16 %v92
  %v164 = vunpack.c.l.b16 %v93
  %v165 = vunpack.c.l.b16 %v94
  %v166 = vunpack.c.l.b16 %v95
  %v167 = vunpack.c.l.b16 %v96
  %v168 = vunpack.c.l.b16 %v97
  %v169 = vunpack.c.l.b16 %v98
  %v170 = vunpack.c.l.b16 %v99
  %v171 = vunpack.c.l.b16 %v100
  %v172 = vunpack.c.l.b16 %v101
  %v173 = vunpack.c.l.b16 %v102
  %v174 = vunpack.c.l.b16 %v103
  %v175 = vunpack.c.l.b16 %v104
  %v176 = vunpack.c.l.b16 %v105
  %v177 = vunpack.c.l.b16 %v106
  %v178 = vunpack.c.l.b16 %v107
  %v179 = vunpack.c.l.b16 %v108
  %v180 = vunpack.c.l.b16 %v109
  %v181 = vunpack.c.l.b16 %v110
  %v182 = vunpack.c.l.b16 %v111
  %v183 = vunpack.c.l.b16 %v112
  %v184 = vunpack.c.l.b16 %v113
  %v185 = vunpack.c.l.b16 %v114
  %v186 = vunpack.c.l.b16 %v115
  %v187 = vunpack.c.l.b16 %v116
  %v188 = vunpack.c.l.b16 %v117
  %v189 = vunpack.c.l.b16 %v118
  %v190 = vunpack.c.l.b16 %v119
  %v191 = vunpack.c.l.b16 %v120
  %v192 = vunpack.c.l.b16 %v121
  %v193 = vpack.c.b16 %v162, %v161
  %v194 = vpack.c.b16 %v164, %v163
  %v195 = vpack.c.b16 %v166, %v165
  %v196 = vpack.c.b16 %v168, %v167
  %v197 = vpack.c.b16 %v170, %v169
  %v198 = vpack.c.b16 %v172, %v171
  %v199 = vpack.c.b16 %v174, %v173
  %v200 = vpack.c.b16 %v176, %v175
  %v201 = vpack.c.b16 %v178, %v177
  %v202 = vpack.c.b16 %v180, %v179
  %v203 = vpack.c.b16 %v182, %v181
  %v204 = vpack.c.b16 %v184, %v183
  %v205 = vpack.c.b16 %v186, %v185
  %v206 = vpack.c.b16 %v188, %v187
  %v207 = vpack.c.b16 %v190, %v189
  %v208 = vpack.c.b16 %v192, %v191
  %225 = vmatprep.subr.bf16.mxu0 0
  %226 = vmatpush1.bf16.msra.mxu0 %v200
  %227 = vmatprep.subr.bf16.mxu0 0
  %228 = vmatpush1.bf16.msra.mxu0 %v199
  %229 = vmatprep.subr.bf16.mxu0 0
  %230 = vmatpush1.bf16.msra.mxu0 %v198
  %231 = vmatprep.subr.bf16.mxu0 0
  %232 = vmatpush1.bf16.msra.mxu0 %v197
  %233 = vmatprep.subr.bf16.mxu0 0
  %234 = vmatpush1.bf16.msra.mxu0 %v196
  %235 = vmatprep.subr.bf16.mxu0 0
  %236 = vmatpush1.bf16.msra.mxu0 %v195
  %237 = vmatprep.subr.bf16.mxu0 0
  %238 = vmatpush1.bf16.msra.mxu0 %v194
  %239 = vmatprep.subr.bf16.mxu0 0
  %240 = vmatpush1.bf16.msra.mxu0 %v193
  %241 = vmatprep.subr.bf16.mxu0 0
  %242 = vmatpush2.bf16.msra.mxu0 %v208
  %243 = vmatprep.subr.bf16.mxu0 0
  %244 = vmatpush2.bf16.msra.mxu0 %v207
  %245 = vmatprep.subr.bf16.mxu0 0
  %246 = vmatpush2.bf16.msra.mxu0 %v206
  %247 = vmatprep.subr.bf16.mxu0 0
  %248 = vmatpush2.bf16.msra.mxu0 %v205
  %249 = vmatprep.subr.bf16.mxu0 0
  %250 = vmatpush2.bf16.msra.mxu0 %v204
  %251 = vmatprep.subr.bf16.mxu0 0
  %252 = vmatpush2.bf16.msra.mxu0 %v203
  %253 = vmatprep.subr.bf16.mxu0 0
  %254 = vmatpush2.bf16.msra.mxu0 %v202
  %255 = vmatprep.subr.bf16.mxu0 0
  %256 = vmatpush2.bf16.msra.mxu0 %v201
  %257 = vmatprep.mubr.bf16.mxu0 %v126
  %258 = vmatmul.mubr.bf16.gmra.mxu0 %v125
  %v259 = vpop.f32.mrf.mxu0
  %v260 = vadd.f32 0.0, %v259
  %v261 = vpop.f32.mrf.mxu0
  %v262 = vpop.f32.mrf.mxu0
  %v263 = vpop.f32.mrf.mxu0
  %264 = vdwg.mxu0
  %v266 = vunpack.c.l.b16 %v54
  %v267 = vunpack.c.h.b16 %v54
  %v268 = vpack.c.b16 %v266, %v266
  %v269 = vpack.c.b16 %v267, %v267
  %v304 = vunpack.c.l.b16 %v55
  %v305 = vunpack.c.l.b16 %v56
  %v306 = vunpack.c.l.b16 %v57
  %v307 = vunpack.c.l.b16 %v58
  %v308 = vunpack.c.l.b16 %v59
  %v309 = vunpack.c.l.b16 %v60
  %v310 = vunpack.c.l.b16 %v61
  %v311 = vunpack.c.l.b16 %v62
  %v312 = vunpack.c.l.b16 %v63
  %v313 = vunpack.c.l.b16 %v64
  %v314 = vunpack.c.l.b16 %v65
  %v315 = vunpack.c.l.b16 %v66
  %v316 = vunpack.c.l.b16 %v67
  %v317 = vunpack.c.l.b16 %v68
  %v318 = vunpack.c.l.b16 %v69
  %v319 = vunpack.c.l.b16 %v70
  %v320 = vunpack.c.l.b16 %v71
  %v321 = vunpack.c.l.b16 %v72
  %v322 = vunpack.c.l.b16 %v73
  %v323 = vunpack.c.l.b16 %v74
  %v324 = vunpack.c.l.b16 %v75
  %v325 = vunpack.c.l.b16 %v76
  %v326 = vunpack.c.l.b16 %v77
  %v327 = vunpack.c.l.b16 %v78
  %v328 = vunpack.c.l.b16 %v79
  %v329 = vunpack.c.l.b16 %v80
  %v330 = vunpack.c.l.b16 %v81
  %v331 = vunpack.c.l.b16 %v82
  %v332 = vunpack.c.l.b16 %v83
  %v333 = vunpack.c.l.b16 %v84
  %v334 = vunpack.c.l.b16 %v85
  %v335 = vunpack.c.l.b16 %v86
  %v336 = vpack.c.b16 %v305, %v304
  %v337 = vpack.c.b16 %v307, %v306
  %v338 = vpack.c.b16 %v309, %v308
  %v339 = vpack.c.b16 %v311, %v310
  %v340 = vpack.c.b16 %v313, %v312
  %v341 = vpack.c.b16 %v315, %v314
  %v342 = vpack.c.b16 %v317, %v316
  %v343 = vpack.c.b16 %v319, %v318
  %v344 = vpack.c.b16 %v321, %v320
  %v345 = vpack.c.b16 %v323, %v322
  %v346 = vpack.c.b16 %v325, %v324
  %v347 = vpack.c.b16 %v327, %v326
  %v348 = vpack.c.b16 %v329, %v328
  %v349 = vpack.c.b16 %v331, %v330
  %v350 = vpack.c.b16 %v333, %v332
  %v351 = vpack.c.b16 %v335, %v334
  %368 = vmatprep.subr.bf16.mxu0 0
  %369 = vmatpush1.bf16.msra.mxu0 %v343
  %370 = vmatprep.subr.bf16.mxu0 0
  %371 = vmatpush1.bf16.msra.mxu0 %v342
  %372 = vmatprep.subr.bf16.mxu0 0
  %373 = vmatpush1.bf16.msra.mxu0 %v341
  %374 = vmatprep.subr.bf16.mxu0 0
  %375 = vmatpush1.bf16.msra.mxu0 %v340
  %376 = vmatprep.subr.bf16.mxu0 0
  %377 = vmatpush1.bf16.msra.mxu0 %v339
  %378 = vmatprep.subr.bf16.mxu0 0
  %379 = vmatpush1.bf16.msra.mxu0 %v338
  %380 = vmatprep.subr.bf16.mxu0 0
  %381 = vmatpush1.bf16.msra.mxu0 %v337
  %382 = vmatprep.subr.bf16.mxu0 0
  %383 = vmatpush1.bf16.msra.mxu0 %v336
  %384 = vmatprep.subr.bf16.mxu0 0
  %385 = vmatpush2.bf16.msra.mxu0 %v351
  %386 = vmatprep.subr.bf16.mxu0 0
  %387 = vmatpush2.bf16.msra.mxu0 %v350
  %388 = vmatprep.subr.bf16.mxu0 0
  %389 = vmatpush2.bf16.msra.mxu0 %v349
  %390 = vmatprep.subr.bf16.mxu0 0
  %391 = vmatpush2.bf16.msra.mxu0 %v348
  %392 = vmatprep.subr.bf16.mxu0 0
  %393 = vmatpush2.bf16.msra.mxu0 %v347
  %394 = vmatprep.subr.bf16.mxu0 0
  %395 = vmatpush2.bf16.msra.mxu0 %v346
  %396 = vmatprep.subr.bf16.mxu0 0
  %397 = vmatpush2.bf16.msra.mxu0 %v345
  %398 = vmatprep.subr.bf16.mxu0 0
  %399 = vmatpush2.bf16.msra.mxu0 %v344
  %400 = vmatprep.mubr.bf16.mxu0 %v269
  %401 = vmatmul.mubr.bf16.gmra.mxu0 %v268
  %v402 = vpop.f32.mrf.mxu0
  %v403 = vadd.f32 %v260, %v402
  %v404 = vpop.f32.mrf.mxu0
  %v405 = vpop.f32.mrf.mxu0
  %v406 = vpop.f32.mrf.mxu0
  %407 = vdwg.mxu0
  %s408 = scalar_lea.vmem %s0, 40
  %v409 = vld [vmem:[%s408] sm:$0xff]
  %s410 = scalar_lea.vmem %s1, 256
  %v411 = vld [vmem:[%s410] sm:$0xf]
  %v412 = vld [vmem:[%s410 + $0x4] sm:$0xf]
  %v413 = vld [vmem:[%s410 + $0x8] sm:$0xf]
  %v414 = vld [vmem:[%s410 + $0xc] sm:$0xf]
  %v415 = vld [vmem:[%s410 + $0x10] sm:$0xf]
  %v416 = vld [vmem:[%s410 + $0x14] sm:$0xf]
  %v417 = vld [vmem:[%s410 + $0x18] sm:$0xf]
  %v418 = vld [vmem:[%s410 + $0x1c] sm:$0xf]
  %v419 = vld [vmem:[%s410 + $0x20] sm:$0xf]
  %v420 = vld [vmem:[%s410 + $0x24] sm:$0xf]
  %v421 = vld [vmem:[%s410 + $0x28] sm:$0xf]
  %v422 = vld [vmem:[%s410 + $0x2c] sm:$0xf]
  %v423 = vld [vmem:[%s410 + $0x30] sm:$0xf]
  %v424 = vld [vmem:[%s410 + $0x34] sm:$0xf]
  %v425 = vld [vmem:[%s410 + $0x38] sm:$0xf]
  %v426 = vld [vmem:[%s410 + $0x3c] sm:$0xf]
  %v427 = vld [vmem:[%s410 + $0x40] sm:$0xf]
  %v428 = vld [vmem:[%s410 + $0x44] sm:$0xf]
  %v429 = vld [vmem:[%s410 + $0x48] sm:$0xf]
  %v430 = vld [vmem:[%s410 + $0x4c] sm:$0xf]
  %v431 = vld [vmem:[%s410 + $0x50] sm:$0xf]
  %v432 = vld [vmem:[%s410 + $0x54] sm:$0xf]
  %v433 = vld [vmem:[%s410 + $0x58] sm:$0xf]
  %v434 = vld [vmem:[%s410 + $0x5c] sm:$0xf]
  %v435 = vld [vmem:[%s410 + $0x60] sm:$0xf]
  %v436 = vld [vmem:[%s410 + $0x64] sm:$0xf]
  %v437 = vld [vmem:[%s410 + $0x68] sm:$0xf]
  %v438 = vld [vmem:[%s410 + $0x6c] sm:$0xf]
  %v439 = vld [vmem:[%s410 + $0x70] sm:$0xf]
  %v440 = vld [vmem:[%s410 + $0x74] sm:$0xf]
  %v441 = vld [vmem:[%s410 + $0x78] sm:$0xf]
  %v442 = vld [vmem:[%s410 + $0x7c] sm:$0xf]
  %v444 = vunpack.c.l.b16 %v409
  %v445 = vunpack.c.h.b16 %v409
  %v446 = vpack.c.b16 %v444, %v444
  %v447 = vpack.c.b16 %v445, %v445
  %v482 = vunpack.c.l.b16 %v411
  %v483 = vunpack.c.l.b16 %v412
  %v484 = vunpack.c.l.b16 %v413
  %v485 = vunpack.c.l.b16 %v414
  %v486 = vunpack.c.l.b16 %v415
  %v487 = vunpack.c.l.b16 %v416
  %v488 = vunpack.c.l.b16 %v417
  %v489 = vunpack.c.l.b16 %v418
  %v490 = vunpack.c.l.b16 %v419
  %v491 = vunpack.c.l.b16 %v420
  %v492 = vunpack.c.l.b16 %v421
  %v493 = vunpack.c.l.b16 %v422
  %v494 = vunpack.c.l.b16 %v423
  %v495 = vunpack.c.l.b16 %v424
  %v496 = vunpack.c.l.b16 %v425
  %v497 = vunpack.c.l.b16 %v426
  %v498 = vunpack.c.l.b16 %v427
  %v499 = vunpack.c.l.b16 %v428
  %v500 = vunpack.c.l.b16 %v429
  %v501 = vunpack.c.l.b16 %v430
  %v502 = vunpack.c.l.b16 %v431
  %v503 = vunpack.c.l.b16 %v432
  %v504 = vunpack.c.l.b16 %v433
  %v505 = vunpack.c.l.b16 %v434
  %v506 = vunpack.c.l.b16 %v435
  %v507 = vunpack.c.l.b16 %v436
  %v508 = vunpack.c.l.b16 %v437
  %v509 = vunpack.c.l.b16 %v438
  %v510 = vunpack.c.l.b16 %v439
  %v511 = vunpack.c.l.b16 %v440
  %v512 = vunpack.c.l.b16 %v441
  %v513 = vunpack.c.l.b16 %v442
  %v514 = vpack.c.b16 %v483, %v482
  %v515 = vpack.c.b16 %v485, %v484
  %v516 = vpack.c.b16 %v487, %v486
  %v517 = vpack.c.b16 %v489, %v488
  %v518 = vpack.c.b16 %v491, %v490
  %v519 = vpack.c.b16 %v493, %v492
  %v520 = vpack.c.b16 %v495, %v494
  %v521 = vpack.c.b16 %v497, %v496
  %v522 = vpack.c.b16 %v499, %v498
  %v523 = vpack.c.b16 %v501, %v500
  %v524 = vpack.c.b16 %v503, %v502
  %v525 = vpack.c.b16 %v505, %v504
  %v526 = vpack.c.b16 %v507, %v506
  %v527 = vpack.c.b16 %v509, %v508
  %v528 = vpack.c.b16 %v511, %v510
  %v529 = vpack.c.b16 %v513, %v512
  %546 = vmatprep.subr.bf16.mxu0 0
  %547 = vmatpush1.bf16.msra.mxu0 %v521
  %548 = vmatprep.subr.bf16.mxu0 0
  %549 = vmatpush1.bf16.msra.mxu0 %v520
  %550 = vmatprep.subr.bf16.mxu0 0
  %551 = vmatpush1.bf16.msra.mxu0 %v519
  %552 = vmatprep.subr.bf16.mxu0 0
  %553 = vmatpush1.bf16.msra.mxu0 %v518
  %554 = vmatprep.subr.bf16.mxu0 0
  %555 = vmatpush1.bf16.msra.mxu0 %v517
  %556 = vmatprep.subr.bf16.mxu0 0
  %557 = vmatpush1.bf16.msra.mxu0 %v516
  %558 = vmatprep.subr.bf16.mxu0 0
  %559 = vmatpush1.bf16.msra.mxu0 %v515
  %560 = vmatprep.subr.bf16.mxu0 0
  %561 = vmatpush1.bf16.msra.mxu0 %v514
  %562 = vmatprep.subr.bf16.mxu0 0
  %563 = vmatpush2.bf16.msra.mxu0 %v529
  %564 = vmatprep.subr.bf16.mxu0 0
  %565 = vmatpush2.bf16.msra.mxu0 %v528
  %566 = vmatprep.subr.bf16.mxu0 0
  %567 = vmatpush2.bf16.msra.mxu0 %v527
  %568 = vmatprep.subr.bf16.mxu0 0
  %569 = vmatpush2.bf16.msra.mxu0 %v526
  %570 = vmatprep.subr.bf16.mxu0 0
  %571 = vmatpush2.bf16.msra.mxu0 %v525
  %572 = vmatprep.subr.bf16.mxu0 0
  %573 = vmatpush2.bf16.msra.mxu0 %v524
  %574 = vmatprep.subr.bf16.mxu0 0
  %575 = vmatpush2.bf16.msra.mxu0 %v523
  %576 = vmatprep.subr.bf16.mxu0 0
  %577 = vmatpush2.bf16.msra.mxu0 %v522
  %578 = vmatprep.mubr.bf16.mxu0 %v447
  %579 = vmatmul.mubr.bf16.gmra.mxu0 %v446
  %v580 = vpop.f32.mrf.mxu0
  %v581 = vadd.f32 0.0, %v580
  %v582 = vpop.f32.mrf.mxu0
  %v583 = vpop.f32.mrf.mxu0
  %v584 = vpop.f32.mrf.mxu0
  %585 = vdwg.mxu0
  %v586 = vadd.f32 %v403, %v581
  %s587 = scalar_lea.vmem %s0, 60
  %v588 = vld [vmem:[%s587] sm:$0xff]
  %s589 = scalar_lea.vmem %s1, 384
  %v590 = vld [vmem:[%s589] sm:$0xf]
  %v591 = vld [vmem:[%s589 + $0x4] sm:$0xf]
  %v592 = vld [vmem:[%s589 + $0x8] sm:$0xf]
  %v593 = vld [vmem:[%s589 + $0xc] sm:$0xf]
  %v594 = vld [vmem:[%s589 + $0x10] sm:$0xf]
  %v595 = vld [vmem:[%s589 + $0x14] sm:$0xf]
  %v596 = vld [vmem:[%s589 + $0x18] sm:$0xf]
  %v597 = vld [vmem:[%s589 + $0x1c] sm:$0xf]
  %v598 = vld [vmem:[%s589 + $0x20] sm:$0xf]
  %v599 = vld [vmem:[%s589 + $0x24] sm:$0xf]
  %v600 = vld [vmem:[%s589 + $0x28] sm:$0xf]
  %v601 = vld [vmem:[%s589 + $0x2c] sm:$0xf]
  %v602 = vld [vmem:[%s589 + $0x30] sm:$0xf]
  %v603 = vld [vmem:[%s589 + $0x34] sm:$0xf]
  %v604 = vld [vmem:[%s589 + $0x38] sm:$0xf]
  %v605 = vld [vmem:[%s589 + $0x3c] sm:$0xf]
  %v606 = vld [vmem:[%s589 + $0x40] sm:$0xf]
  %v607 = vld [vmem:[%s589 + $0x44] sm:$0xf]
  %v608 = vld [vmem:[%s589 + $0x48] sm:$0xf]
  %v609 = vld [vmem:[%s589 + $0x4c] sm:$0xf]
  %v610 = vld [vmem:[%s589 + $0x50] sm:$0xf]
  %v611 = vld [vmem:[%s589 + $0x54] sm:$0xf]
  %v612 = vld [vmem:[%s589 + $0x58] sm:$0xf]
  %v613 = vld [vmem:[%s589 + $0x5c] sm:$0xf]
  %v614 = vld [vmem:[%s589 + $0x60] sm:$0xf]
  %v615 = vld [vmem:[%s589 + $0x64] sm:$0xf]
  %v616 = vld [vmem:[%s589 + $0x68] sm:$0xf]
  %v617 = vld [vmem:[%s589 + $0x6c] sm:$0xf]
  %v618 = vld [vmem:[%s589 + $0x70] sm:$0xf]
  %v619 = vld [vmem:[%s589 + $0x74] sm:$0xf]
  %v620 = vld [vmem:[%s589 + $0x78] sm:$0xf]
  %v621 = vld [vmem:[%s589 + $0x7c] sm:$0xf]
  %v623 = vunpack.c.l.b16 %v588
  %v624 = vunpack.c.h.b16 %v588
  %v625 = vpack.c.b16 %v623, %v623
  %v626 = vpack.c.b16 %v624, %v624
  %v661 = vunpack.c.l.b16 %v590
  %v662 = vunpack.c.l.b16 %v591
  %v663 = vunpack.c.l.b16 %v592
  %v664 = vunpack.c.l.b16 %v593
  %v665 = vunpack.c.l.b16 %v594
  %v666 = vunpack.c.l.b16 %v595
  %v667 = vunpack.c.l.b16 %v596
  %v668 = vunpack.c.l.b16 %v597
  %v669 = vunpack.c.l.b16 %v598
  %v670 = vunpack.c.l.b16 %v599
  %v671 = vunpack.c.l.b16 %v600
  %v672 = vunpack.c.l.b16 %v601
  %v673 = vunpack.c.l.b16 %v602
  %v674 = vunpack.c.l.b16 %v603
  %v675 = vunpack.c.l.b16 %v604
  %v676 = vunpack.c.l.b16 %v605
  %v677 = vunpack.c.l.b16 %v606
  %v678 = vunpack.c.l.b16 %v607
  %v679 = vunpack.c.l.b16 %v608
  %v680 = vunpack.c.l.b16 %v609
  %v681 = vunpack.c.l.b16 %v610
  %v682 = vunpack.c.l.b16 %v611
  %v683 = vunpack.c.l.b16 %v612
  %v684 = vunpack.c.l.b16 %v613
  %v685 = vunpack.c.l.b16 %v614
  %v686 = vunpack.c.l.b16 %v615
  %v687 = vunpack.c.l.b16 %v616
  %v688 = vunpack.c.l.b16 %v617
  %v689 = vunpack.c.l.b16 %v618
  %v690 = vunpack.c.l.b16 %v619
  %v691 = vunpack.c.l.b16 %v620
  %v692 = vunpack.c.l.b16 %v621
  %v693 = vpack.c.b16 %v662, %v661
  %v694 = vpack.c.b16 %v664, %v663
  %v695 = vpack.c.b16 %v666, %v665
  %v696 = vpack.c.b16 %v668, %v667
  %v697 = vpack.c.b16 %v670, %v669
  %v698 = vpack.c.b16 %v672, %v671
  %v699 = vpack.c.b16 %v674, %v673
  %v700 = vpack.c.b16 %v676, %v675
  %v701 = vpack.c.b16 %v678, %v677
  %v702 = vpack.c.b16 %v680, %v679
  %v703 = vpack.c.b16 %v682, %v681
  %v704 = vpack.c.b16 %v684, %v683
  %v705 = vpack.c.b16 %v686, %v685
  %v706 = vpack.c.b16 %v688, %v687
  %v707 = vpack.c.b16 %v690, %v689
  %v708 = vpack.c.b16 %v692, %v691
  %725 = vmatprep.subr.bf16.mxu0 0
  %726 = vmatpush1.bf16.msra.mxu0 %v700
  %727 = vmatprep.subr.bf16.mxu0 0
  %728 = vmatpush1.bf16.msra.mxu0 %v699
  %729 = vmatprep.subr.bf16.mxu0 0
  %730 = vmatpush1.bf16.msra.mxu0 %v698
  %731 = vmatprep.subr.bf16.mxu0 0
  %732 = vmatpush1.bf16.msra.mxu0 %v697
  %733 = vmatprep.subr.bf16.mxu0 0
  %734 = vmatpush1.bf16.msra.mxu0 %v696
  %735 = vmatprep.subr.bf16.mxu0 0
  %736 = vmatpush1.bf16.msra.mxu0 %v695
  %737 = vmatprep.subr.bf16.mxu0 0
  %738 = vmatpush1.bf16.msra.mxu0 %v694
  %739 = vmatprep.subr.bf16.mxu0 0
  %740 = vmatpush1.bf16.msra.mxu0 %v693
  %741 = vmatprep.subr.bf16.mxu0 0
  %742 = vmatpush2.bf16.msra.mxu0 %v708
  %743 = vmatprep.subr.bf16.mxu0 0
  %744 = vmatpush2.bf16.msra.mxu0 %v707
  %745 = vmatprep.subr.bf16.mxu0 0
  %746 = vmatpush2.bf16.msra.mxu0 %v706
  %747 = vmatprep.subr.bf16.mxu0 0
  %748 = vmatpush2.bf16.msra.mxu0 %v705
  %749 = vmatprep.subr.bf16.mxu0 0
  %750 = vmatpush2.bf16.msra.mxu0 %v704
  %751 = vmatprep.subr.bf16.mxu0 0
  %752 = vmatpush2.bf16.msra.mxu0 %v703
  %753 = vmatprep.subr.bf16.mxu0 0
  %754 = vmatpush2.bf16.msra.mxu0 %v702
  %755 = vmatprep.subr.bf16.mxu0 0
  %756 = vmatpush2.bf16.msra.mxu0 %v701
  %757 = vmatprep.mubr.bf16.mxu0 %v626
  %758 = vmatmul.mubr.bf16.gmra.mxu0 %v625
  %v759 = vpop.f32.mrf.mxu0
  %v760 = vadd.f32 0.0, %v759
  %v761 = vpop.f32.mrf.mxu0
  %v762 = vpop.f32.mrf.mxu0
  %v763 = vpop.f32.mrf.mxu0
  %764 = vdwg.mxu0
  %v765 = vadd.f32 %v586, %v760
  %v767 = vlaneseq
  %v768 = vshrl.u32 %v767, 7
  %v769 = vsub.s32 0, %v768
  %v770 = vrot.slane %v36, %v769
  %v772 = vadd.f32 %v765, %v770
  %vm773 = vcmp.gt.f32.partialorder %v772, 0.0
  %v774 = vmul.f32 %v772, 0.01
  %v775 = vsel %vm773, %v772, %v774
  %v776 = vpack.c.bf16 %v775, %v775
  %v778 = vlaneseq
  %v779 = vshrl.u32 %v778, 7
  %v780 = vsub.s32 0, %v779
  %v781 = vrot.slane %v37, %v780
  %v791 = vunpack.c.l.b16 %v40
  %v792 = vunpack.c.l.b16 %v41
  %v793 = vunpack.c.l.b16 %v42
  %v794 = vunpack.c.l.b16 %v43
  %v795 = vunpack.c.l.b16 %v44
  %v796 = vunpack.c.l.b16 %v45
  %v797 = vunpack.c.l.b16 %v46
  %v798 = vunpack.c.l.b16 %v47
  %v799 = vpack.c.b16 %v792, %v791
  %v800 = vpack.c.b16 %v794, %v793
  %v801 = vpack.c.b16 %v796, %v795
  %v802 = vpack.c.b16 %v798, %v797
  %vm807 = vcmask 523264
  %v809 = vsel %vm807, %v776, 0
  %811 = vmatprep.subr.bf16.mxu0 0
  %812 = vmatpush1.bf16.msra.mxu0 0
  %813 = vmatprep.subr.bf16.mxu0 0
  %814 = vmatpush1.bf16.msra.mxu0 0
  %815 = vmatprep.subr.bf16.mxu0 0
  %816 = vmatpush1.bf16.msra.mxu0 0
  %817 = vmatprep.subr.bf16.mxu0 0
  %818 = vmatpush1.bf16.msra.mxu0 0
  %819 = vmatprep.subr.bf16.mxu0 0
  %820 = vmatpush1.bf16.msra.mxu0 %v802
  %821 = vmatprep.subr.bf16.mxu0 0
  %822 = vmatpush1.bf16.msra.mxu0 %v801
  %823 = vmatprep.subr.bf16.mxu0 0
  %824 = vmatpush1.bf16.msra.mxu0 %v800
  %825 = vmatprep.subr.bf16.mxu0 0
  %826 = vmatpush1.bf16.msra.mxu0 %v799
  %827 = vmatprep.subr.bf16.mxu0 0
  %828 = vmatpush2.bf16.msra.mxu0 0
  %829 = vmatprep.subr.bf16.mxu0 0
  %830 = vmatpush2.bf16.msra.mxu0 0
  %831 = vmatprep.subr.bf16.mxu0 0
  %832 = vmatpush2.bf16.msra.mxu0 0
  %833 = vmatprep.subr.bf16.mxu0 0
  %834 = vmatpush2.bf16.msra.mxu0 0
  %835 = vmatprep.subr.bf16.mxu0 0
  %836 = vmatpush2.bf16.msra.mxu0 0
  %837 = vmatprep.subr.bf16.mxu0 0
  %838 = vmatpush2.bf16.msra.mxu0 0
  %839 = vmatprep.subr.bf16.mxu0 0
  %840 = vmatpush2.bf16.msra.mxu0 0
  %841 = vmatprep.subr.bf16.mxu0 0
  %842 = vmatpush2.bf16.msra.mxu0 0
  %843 = vmatprep.mubr.bf16.mxu0 0
  %844 = vmatmul.mubr.bf16.gmra.mxu0 %v809
  %v845 = vpop.f32.mrf.mxu0
  %v846 = vadd.f32 %v781, %v845
  %v847 = vpop.f32.mrf.mxu0
  %v848 = vpop.f32.mrf.mxu0
  %v849 = vpop.f32.mrf.mxu0
  %850 = vdwg.mxu0
  %vm851 = vcmp.gt.f32.partialorder %v846, 0.0
  %v852 = vmul.f32 %v846, 0.01
  %v853 = vsel %vm851, %v846, %v852
  %v854 = vpack.c.bf16 %v853, %v853
  %v856 = vlaneseq
  %v857 = vshrl.u32 %v856, 7
  %v858 = vsub.s32 0, %v857
  %v859 = vrot.slane %v38, %v858
  %v865 = vunpack.c.l.b16 %v48
  %v866 = vunpack.c.l.b16 %v49
  %v867 = vunpack.c.l.b16 %v50
  %v868 = vunpack.c.l.b16 %v51
  %v869 = vpack.c.b16 %v866, %v865
  %v870 = vpack.c.b16 %v868, %v867
  %vm873 = vcmask 261120
  %v875 = vsel %vm873, %v854, 0
  %877 = vmatprep.subr.bf16.mxu0 0
  %878 = vmatpush1.bf16.msra.mxu0 0
  %879 = vmatprep.subr.bf16.mxu0 0
  %880 = vmatpush1.bf16.msra.mxu0 0
  %881 = vmatprep.subr.bf16.mxu0 0
  %882 = vmatpush1.bf16.msra.mxu0 0
  %883 = vmatprep.subr.bf16.mxu0 0
  %884 = vmatpush1.bf16.msra.mxu0 0
  %885 = vmatprep.subr.bf16.mxu0 0
  %886 = vmatpush1.bf16.msra.mxu0 0
  %887 = vmatprep.subr.bf16.mxu0 0
  %888 = vmatpush1.bf16.msra.mxu0 0
  %889 = vmatprep.subr.bf16.mxu0 0
  %890 = vmatpush1.bf16.msra.mxu0 %v870
  %891 = vmatprep.subr.bf16.mxu0 0
  %892 = vmatpush1.bf16.msra.mxu0 %v869
  %893 = vmatprep.subr.bf16.mxu0 0
  %894 = vmatpush2.bf16.msra.mxu0 0
  %895 = vmatprep.subr.bf16.mxu0 0
  %896 = vmatpush2.bf16.msra.mxu0 0
  %897 = vmatprep.subr.bf16.mxu0 0
  %898 = vmatpush2.bf16.msra.mxu0 0
  %899 = vmatprep.subr.bf16.mxu0 0
  %900 = vmatpush2.bf16.msra.mxu0 0
  %901 = vmatprep.subr.bf16.mxu0 0
  %902 = vmatpush2.bf16.msra.mxu0 0
  %903 = vmatprep.subr.bf16.mxu0 0
  %904 = vmatpush2.bf16.msra.mxu0 0
  %905 = vmatprep.subr.bf16.mxu0 0
  %906 = vmatpush2.bf16.msra.mxu0 0
  %907 = vmatprep.subr.bf16.mxu0 0
  %908 = vmatpush2.bf16.msra.mxu0 0
  %909 = vmatprep.mubr.bf16.mxu0 0
  %910 = vmatmul.mubr.bf16.gmra.mxu0 %v875
  %v911 = vpop.f32.mrf.mxu0
  %v912 = vadd.f32 %v859, %v911
  %v913 = vpop.f32.mrf.mxu0
  %v914 = vpop.f32.mrf.mxu0
  %v915 = vpop.f32.mrf.mxu0
  %916 = vdwg.mxu0
  %vm917 = vcmp.gt.f32.partialorder %v912, 0.0
  %v918 = vmul.f32 %v912, 0.01
  %v919 = vsel %vm917, %v912, %v918
  %v920 = vpack.c.bf16 %v919, %v919
  %v922 = vlaneseq
  %v923 = vshrl.u32 %v922, 7
  %v924 = vsub.s32 0, %v923
  %v925 = vrot.slane %v39, %v924
  %v929 = vunpack.c.l.b16 %v52
  %v930 = vunpack.c.l.b16 %v53
  %v931 = vpack.c.b16 %v930, %v929
  %vm933 = vcmask 130048
  %v935 = vsel %vm933, %v920, 0
  %937 = vmatprep.subr.bf16.mxu0 0
  %938 = vmatpush1.bf16.msra.mxu0 0
  %939 = vmatprep.subr.bf16.mxu0 0
  %940 = vmatpush1.bf16.msra.mxu0 0
  %941 = vmatprep.subr.bf16.mxu0 0
  %942 = vmatpush1.bf16.msra.mxu0 0
  %943 = vmatprep.subr.bf16.mxu0 0
  %944 = vmatpush1.bf16.msra.mxu0 0
  %945 = vmatprep.subr.bf16.mxu0 0
  %946 = vmatpush1.bf16.msra.mxu0 0
  %947 = vmatprep.subr.bf16.mxu0 0
  %948 = vmatpush1.bf16.msra.mxu0 0
  %949 = vmatprep.subr.bf16.mxu0 0
  %950 = vmatpush1.bf16.msra.mxu0 0
  %951 = vmatprep.subr.bf16.mxu0 0
  %952 = vmatpush1.bf16.msra.mxu0 %v931
  %953 = vmatprep.subr.bf16.mxu0 0
  %954 = vmatpush2.bf16.msra.mxu0 0
  %955 = vmatprep.subr.bf16.mxu0 0
  %956 = vmatpush2.bf16.msra.mxu0 0
  %957 = vmatprep.subr.bf16.mxu0 0
  %958 = vmatpush2.bf16.msra.mxu0 0
  %959 = vmatprep.subr.bf16.mxu0 0
  %960 = vmatpush2.bf16.msra.mxu0 0
  %961 = vmatprep.subr.bf16.mxu0 0
  %962 = vmatpush2.bf16.msra.mxu0 0
  %963 = vmatprep.subr.bf16.mxu0 0
  %964 = vmatpush2.bf16.msra.mxu0 0
  %965 = vmatprep.subr.bf16.mxu0 0
  %966 = vmatpush2.bf16.msra.mxu0 0
  %967 = vmatprep.subr.bf16.mxu0 0
  %968 = vmatpush2.bf16.msra.mxu0 0
  %969 = vmatprep.mubr.bf16.mxu0 0
  %970 = vmatmul.mubr.bf16.gmra.mxu0 %v935
  %v971 = vpop.f32.mrf.mxu0
  %v972 = vadd.f32 %v925, %v971
  %v973 = vpop.f32.mrf.mxu0
  %v974 = vpop.f32.mrf.mxu0
  %v975 = vpop.f32.mrf.mxu0
  %976 = vdwg.mxu0
  %vm977 = vcmp.gt.f32.partialorder %v972, 0.0
  %v978 = vmul.f32 %v972, 0.01
  %v979 = vsel %vm977, %v972, %v978
  %v980 = vpack.c.bf16 %v979, %v979
  %v981 = vld [vmem:[%s9] sm:$0xf]
  %v982 = vld [vmem:[%s0 + $0x4] sm:$0xff]
  %v983 = vld [vmem:[%s87 + $0x4] sm:$0xff]
  %v985 = vunpack.c.l.b16 %v983
  %v986 = vunpack.c.h.b16 %v983
  %v987 = vpack.c.b16 %v985, %v985
  %v988 = vpack.c.b16 %v986, %v986
  %991 = vmatprep.subr.bf16.mxu0 0
  %992 = vmatpush1.bf16.msra.mxu0 %v200
  %993 = vmatprep.subr.bf16.mxu0 0
  %994 = vmatpush1.bf16.msra.mxu0 %v199
  %995 = vmatprep.subr.bf16.mxu0 0
  %996 = vmatpush1.bf16.msra.mxu0 %v198
  %997 = vmatprep.subr.bf16.mxu0 0
  %998 = vmatpush1.bf16.msra.mxu0 %v197
  %999 = vmatprep.subr.bf16.mxu0 0
  %1000 = vmatpush1.bf16.msra.mxu0 %v196
  %1001 = vmatprep.subr.bf16.mxu0 0
  %1002 = vmatpush1.bf16.msra.mxu0 %v195
  %1003 = vmatprep.subr.bf16.mxu0 0
  %1004 = vmatpush1.bf16.msra.mxu0 %v194
  %1005 = vmatprep.subr.bf16.mxu0 0
  %1006 = vmatpush1.bf16.msra.mxu0 %v193
  %1007 = vmatprep.subr.bf16.mxu0 0
  %1008 = vmatpush2.bf16.msra.mxu0 %v208
  %1009 = vmatprep.subr.bf16.mxu0 0
  %1010 = vmatpush2.bf16.msra.mxu0 %v207
  %1011 = vmatprep.subr.bf16.mxu0 0
  %1012 = vmatpush2.bf16.msra.mxu0 %v206
  %1013 = vmatprep.subr.bf16.mxu0 0
  %1014 = vmatpush2.bf16.msra.mxu0 %v205
  %1015 = vmatprep.subr.bf16.mxu0 0
  %1016 = vmatpush2.bf16.msra.mxu0 %v204
  %1017 = vmatprep.subr.bf16.mxu0 0
  %1018 = vmatpush2.bf16.msra.mxu0 %v203
  %1019 = vmatprep.subr.bf16.mxu0 0
  %1020 = vmatpush2.bf16.msra.mxu0 %v202
  %1021 = vmatprep.subr.bf16.mxu0 0
  %1022 = vmatpush2.bf16.msra.mxu0 %v201
  %1023 = vmatprep.mubr.bf16.mxu0 %v988
  %1024 = vmatmul.mubr.bf16.gmra.mxu0 %v987
  %v1025 = vpop.f32.mrf.mxu0
  %v1026 = vadd.f32 0.0, %v1025
  %v1027 = vpop.f32.mrf.mxu0
  %v1028 = vpop.f32.mrf.mxu0
  %v1029 = vpop.f32.mrf.mxu0
  %1030 = vdwg.mxu0
  %v1032 = vunpack.c.l.b16 %v982
  %v1033 = vunpack.c.h.b16 %v982
  %v1034 = vpack.c.b16 %v1032, %v1032
  %v1035 = vpack.c.b16 %v1033, %v1033
  %1038 = vmatprep.subr.bf16.mxu0 0
  %1039 = vmatpush1.bf16.msra.mxu0 %v343
  %1040 = vmatprep.subr.bf16.mxu0 0
  %1041 = vmatpush1.bf16.msra.mxu0 %v342
  %1042 = vmatprep.subr.bf16.mxu0 0
  %1043 = vmatpush1.bf16.msra.mxu0 %v341
  %1044 = vmatprep.subr.bf16.mxu0 0
  %1045 = vmatpush1.bf16.msra.mxu0 %v340
  %1046 = vmatprep.subr.bf16.mxu0 0
  %1047 = vmatpush1.bf16.msra.mxu0 %v339
  %1048 = vmatprep.subr.bf16.mxu0 0
  %1049 = vmatpush1.bf16.msra.mxu0 %v338
  %1050 = vmatprep.subr.bf16.mxu0 0
  %1051 = vmatpush1.bf16.msra.mxu0 %v337
  %1052 = vmatprep.subr.bf16.mxu0 0
  %1053 = vmatpush1.bf16.msra.mxu0 %v336
  %1054 = vmatprep.subr.bf16.mxu0 0
  %1055 = vmatpush2.bf16.msra.mxu0 %v351
  %1056 = vmatprep.subr.bf16.mxu0 0
  %1057 = vmatpush2.bf16.msra.mxu0 %v350
  %1058 = vmatprep.subr.bf16.mxu0 0
  %1059 = vmatpush2.bf16.msra.mxu0 %v349
  %1060 = vmatprep.subr.bf16.mxu0 0
  %1061 = vmatpush2.bf16.msra.mxu0 %v348
  %1062 = vmatprep.subr.bf16.mxu0 0
  %1063 = vmatpush2.bf16.msra.mxu0 %v347
  %1064 = vmatprep.subr.bf16.mxu0 0
  %1065 = vmatpush2.bf16.msra.mxu0 %v346
  %1066 = vmatprep.subr.bf16.mxu0 0
  %1067 = vmatpush2.bf16.msra.mxu0 %v345
  %1068 = vmatprep.subr.bf16.mxu0 0
  %1069 = vmatpush2.bf16.msra.mxu0 %v344
  %1070 = vmatprep.mubr.bf16.mxu0 %v1035
  %1071 = vmatmul.mubr.bf16.gmra.mxu0 %v1034
  %v1072 = vpop.f32.mrf.mxu0
  %v1073 = vadd.f32 %v1026, %v1072
  %v1074 = vpop.f32.mrf.mxu0
  %v1075 = vpop.f32.mrf.mxu0
  %v1076 = vpop.f32.mrf.mxu0
  %1077 = vdwg.mxu0
  %v1078 = vld [vmem:[%s408 + $0x4] sm:$0xff]
  %v1080 = vunpack.c.l.b16 %v1078
  %v1081 = vunpack.c.h.b16 %v1078
  %v1082 = vpack.c.b16 %v1080, %v1080
  %v1083 = vpack.c.b16 %v1081, %v1081
  %1086 = vmatprep.subr.bf16.mxu0 0
  %1087 = vmatpush1.bf16.msra.mxu0 %v521
  %1088 = vmatprep.subr.bf16.mxu0 0
  %1089 = vmatpush1.bf16.msra.mxu0 %v520
  %1090 = vmatprep.subr.bf16.mxu0 0
  %1091 = vmatpush1.bf16.msra.mxu0 %v519
  %1092 = vmatprep.subr.bf16.mxu0 0
  %1093 = vmatpush1.bf16.msra.mxu0 %v518
  %1094 = vmatprep.subr.bf16.mxu0 0
  %1095 = vmatpush1.bf16.msra.mxu0 %v517
  %1096 = vmatprep.subr.bf16.mxu0 0
  %1097 = vmatpush1.bf16.msra.mxu0 %v516
  %1098 = vmatprep.subr.bf16.mxu0 0
  %1099 = vmatpush1.bf16.msra.mxu0 %v515
  %1100 = vmatprep.subr.bf16.mxu0 0
  %1101 = vmatpush1.bf16.msra.mxu0 %v514
  %1102 = vmatprep.subr.bf16.mxu0 0
  %1103 = vmatpush2.bf16.msra.mxu0 %v529
  %1104 = vmatprep.subr.bf16.mxu0 0
  %1105 = vmatpush2.bf16.msra.mxu0 %v528
  %1106 = vmatprep.subr.bf16.mxu0 0
  %1107 = vmatpush2.bf16.msra.mxu0 %v527
  %1108 = vmatprep.subr.bf16.mxu0 0
  %1109 = vmatpush2.bf16.msra.mxu0 %v526
  %1110 = vmatprep.subr.bf16.mxu0 0
  %1111 = vmatpush2.bf16.msra.mxu0 %v525
  %1112 = vmatprep.subr.bf16.mxu0 0
  %1113 = vmatpush2.bf16.msra.mxu0 %v524
  %1114 = vmatprep.subr.bf16.mxu0 0
  %1115 = vmatpush2.bf16.msra.mxu0 %v523
  %1116 = vmatprep.subr.bf16.mxu0 0
  %1117 = vmatpush2.bf16.msra.mxu0 %v522
  %1118 = vmatprep.mubr.bf16.mxu0 %v1083
  %1119 = vmatmul.mubr.bf16.gmra.mxu0 %v1082
  %v1120 = vpop.f32.mrf.mxu0
  %v1121 = vadd.f32 0.0, %v1120
  %v1122 = vpop.f32.mrf.mxu0
  %v1123 = vpop.f32.mrf.mxu0
  %v1124 = vpop.f32.mrf.mxu0
  %1125 = vdwg.mxu0
  %v1126 = vadd.f32 %v1073, %v1121
  %v1127 = vld [vmem:[%s587 + $0x4] sm:$0xff]
  %v1129 = vunpack.c.l.b16 %v1127
  %v1130 = vunpack.c.h.b16 %v1127
  %v1131 = vpack.c.b16 %v1129, %v1129
  %v1132 = vpack.c.b16 %v1130, %v1130
  %1135 = vmatprep.subr.bf16.mxu0 0
  %1136 = vmatpush1.bf16.msra.mxu0 %v700
  %1137 = vmatprep.subr.bf16.mxu0 0
  %1138 = vmatpush1.bf16.msra.mxu0 %v699
  %1139 = vmatprep.subr.bf16.mxu0 0
  %1140 = vmatpush1.bf16.msra.mxu0 %v698
  %1141 = vmatprep.subr.bf16.mxu0 0
  %1142 = vmatpush1.bf16.msra.mxu0 %v697
  %1143 = vmatprep.subr.bf16.mxu0 0
  %1144 = vmatpush1.bf16.msra.mxu0 %v696
  %1145 = vmatprep.subr.bf16.mxu0 0
  %1146 = vmatpush1.bf16.msra.mxu0 %v695
  %1147 = vmatprep.subr.bf16.mxu0 0
  %1148 = vmatpush1.bf16.msra.mxu0 %v694
  %1149 = vmatprep.subr.bf16.mxu0 0
  %1150 = vmatpush1.bf16.msra.mxu0 %v693
  %1151 = vmatprep.subr.bf16.mxu0 0
  %1152 = vmatpush2.bf16.msra.mxu0 %v708
  %1153 = vmatprep.subr.bf16.mxu0 0
  %1154 = vmatpush2.bf16.msra.mxu0 %v707
  %1155 = vmatprep.subr.bf16.mxu0 0
  %1156 = vmatpush2.bf16.msra.mxu0 %v706
  %1157 = vmatprep.subr.bf16.mxu0 0
  %1158 = vmatpush2.bf16.msra.mxu0 %v705
  %1159 = vmatprep.subr.bf16.mxu0 0
  %1160 = vmatpush2.bf16.msra.mxu0 %v704
  %1161 = vmatprep.subr.bf16.mxu0 0
  %1162 = vmatpush2.bf16.msra.mxu0 %v703
  %1163 = vmatprep.subr.bf16.mxu0 0
  %1164 = vmatpush2.bf16.msra.mxu0 %v702
  %1165 = vmatprep.subr.bf16.mxu0 0
  %1166 = vmatpush2.bf16.msra.mxu0 %v701
  %1167 = vmatprep.mubr.bf16.mxu0 %v1132
  %1168 = vmatmul.mubr.bf16.gmra.mxu0 %v1131
  %v1169 = vpop.f32.mrf.mxu0
  %v1170 = vadd.f32 0.0, %v1169
  %v1171 = vpop.f32.mrf.mxu0
  %v1172 = vpop.f32.mrf.mxu0
  %v1173 = vpop.f32.mrf.mxu0
  %1174 = vdwg.mxu0
  %v1175 = vadd.f32 %v1126, %v1170
  %v1176 = vadd.f32 %v1175, %v770
  %vm1177 = vcmp.gt.f32.partialorder %v1176, 0.0
  %v1178 = vmul.f32 %v1176, 0.01
  %v1179 = vsel %vm1177, %v1176, %v1178
  %v1180 = vpack.c.bf16 %v1179, %v1179
  %v1182 = vsel %vm807, %v1180, 0
  %1184 = vmatprep.subr.bf16.mxu0 0
  %1185 = vmatpush1.bf16.msra.mxu0 0
  %1186 = vmatprep.subr.bf16.mxu0 0
  %1187 = vmatpush1.bf16.msra.mxu0 0
  %1188 = vmatprep.subr.bf16.mxu0 0
  %1189 = vmatpush1.bf16.msra.mxu0 0
  %1190 = vmatprep.subr.bf16.mxu0 0
  %1191 = vmatpush1.bf16.msra.mxu0 0
  %1192 = vmatprep.subr.bf16.mxu0 0
  %1193 = vmatpush1.bf16.msra.mxu0 %v802
  %1194 = vmatprep.subr.bf16.mxu0 0
  %1195 = vmatpush1.bf16.msra.mxu0 %v801
  %1196 = vmatprep.subr.bf16.mxu0 0
  %1197 = vmatpush1.bf16.msra.mxu0 %v800
  %1198 = vmatprep.subr.bf16.mxu0 0
  %1199 = vmatpush1.bf16.msra.mxu0 %v799
  %1200 = vmatprep.subr.bf16.mxu0 0
  %1201 = vmatpush2.bf16.msra.mxu0 0
  %1202 = vmatprep.subr.bf16.mxu0 0
  %1203 = vmatpush2.bf16.msra.mxu0 0
  %1204 = vmatprep.subr.bf16.mxu0 0
  %1205 = vmatpush2.bf16.msra.mxu0 0
  %1206 = vmatprep.subr.bf16.mxu0 0
  %1207 = vmatpush2.bf16.msra.mxu0 0
  %1208 = vmatprep.subr.bf16.mxu0 0
  %1209 = vmatpush2.bf16.msra.mxu0 0
  %1210 = vmatprep.subr.bf16.mxu0 0
  %1211 = vmatpush2.bf16.msra.mxu0 0
  %1212 = vmatprep.subr.bf16.mxu0 0
  %1213 = vmatpush2.bf16.msra.mxu0 0
  %1214 = vmatprep.subr.bf16.mxu0 0
  %1215 = vmatpush2.bf16.msra.mxu0 0
  %1216 = vmatprep.mubr.bf16.mxu0 0
  %1217 = vmatmul.mubr.bf16.gmra.mxu0 %v1182
  %v1218 = vpop.f32.mrf.mxu0
  %v1219 = vadd.f32 %v781, %v1218
  %v1220 = vpop.f32.mrf.mxu0
  %v1221 = vpop.f32.mrf.mxu0
  %v1222 = vpop.f32.mrf.mxu0
  %1223 = vdwg.mxu0
  %vm1224 = vcmp.gt.f32.partialorder %v1219, 0.0
  %v1225 = vmul.f32 %v1219, 0.01
  %v1226 = vsel %vm1224, %v1219, %v1225
  %v1227 = vpack.c.bf16 %v1226, %v1226
  %v1229 = vsel %vm873, %v1227, 0
  %1231 = vmatprep.subr.bf16.mxu0 0
  %1232 = vmatpush1.bf16.msra.mxu0 0
  %1233 = vmatprep.subr.bf16.mxu0 0
  %1234 = vmatpush1.bf16.msra.mxu0 0
  %1235 = vmatprep.subr.bf16.mxu0 0
  %1236 = vmatpush1.bf16.msra.mxu0 0
  %1237 = vmatprep.subr.bf16.mxu0 0
  %1238 = vmatpush1.bf16.msra.mxu0 0
  %1239 = vmatprep.subr.bf16.mxu0 0
  %1240 = vmatpush1.bf16.msra.mxu0 0
  %1241 = vmatprep.subr.bf16.mxu0 0
  %1242 = vmatpush1.bf16.msra.mxu0 0
  %1243 = vmatprep.subr.bf16.mxu0 0
  %1244 = vmatpush1.bf16.msra.mxu0 %v870
  %1245 = vmatprep.subr.bf16.mxu0 0
  %1246 = vmatpush1.bf16.msra.mxu0 %v869
  %1247 = vmatprep.subr.bf16.mxu0 0
  %1248 = vmatpush2.bf16.msra.mxu0 0
  %1249 = vmatprep.subr.bf16.mxu0 0
  %1250 = vmatpush2.bf16.msra.mxu0 0
  %1251 = vmatprep.subr.bf16.mxu0 0
  %1252 = vmatpush2.bf16.msra.mxu0 0
  %1253 = vmatprep.subr.bf16.mxu0 0
  %1254 = vmatpush2.bf16.msra.mxu0 0
  %1255 = vmatprep.subr.bf16.mxu0 0
  %1256 = vmatpush2.bf16.msra.mxu0 0
  %1257 = vmatprep.subr.bf16.mxu0 0
  %1258 = vmatpush2.bf16.msra.mxu0 0
  %1259 = vmatprep.subr.bf16.mxu0 0
  %1260 = vmatpush2.bf16.msra.mxu0 0
  %1261 = vmatprep.subr.bf16.mxu0 0
  %1262 = vmatpush2.bf16.msra.mxu0 0
  %1263 = vmatprep.mubr.bf16.mxu0 0
  %1264 = vmatmul.mubr.bf16.gmra.mxu0 %v1229
  %v1265 = vpop.f32.mrf.mxu0
  %v1266 = vadd.f32 %v859, %v1265
  %v1267 = vpop.f32.mrf.mxu0
  %v1268 = vpop.f32.mrf.mxu0
  %v1269 = vpop.f32.mrf.mxu0
  %1270 = vdwg.mxu0
  %vm1271 = vcmp.gt.f32.partialorder %v1266, 0.0
  %v1272 = vmul.f32 %v1266, 0.01
  %v1273 = vsel %vm1271, %v1266, %v1272
  %v1274 = vpack.c.bf16 %v1273, %v1273
  %v1276 = vsel %vm933, %v1274, 0
  %1278 = vmatprep.subr.bf16.mxu0 0
  %1279 = vmatpush1.bf16.msra.mxu0 0
  %1280 = vmatprep.subr.bf16.mxu0 0
  %1281 = vmatpush1.bf16.msra.mxu0 0
  %1282 = vmatprep.subr.bf16.mxu0 0
  %1283 = vmatpush1.bf16.msra.mxu0 0
  %1284 = vmatprep.subr.bf16.mxu0 0
  %1285 = vmatpush1.bf16.msra.mxu0 0
  %1286 = vmatprep.subr.bf16.mxu0 0
  %1287 = vmatpush1.bf16.msra.mxu0 0
  %1288 = vmatprep.subr.bf16.mxu0 0
  %1289 = vmatpush1.bf16.msra.mxu0 0
  %1290 = vmatprep.subr.bf16.mxu0 0
  %1291 = vmatpush1.bf16.msra.mxu0 0
  %1292 = vmatprep.subr.bf16.mxu0 0
  %1293 = vmatpush1.bf16.msra.mxu0 %v931
  %1294 = vmatprep.subr.bf16.mxu0 0
  %1295 = vmatpush2.bf16.msra.mxu0 0
  %1296 = vmatprep.subr.bf16.mxu0 0
  %1297 = vmatpush2.bf16.msra.mxu0 0
  %1298 = vmatprep.subr.bf16.mxu0 0
  %1299 = vmatpush2.bf16.msra.mxu0 0
  %1300 = vmatprep.subr.bf16.mxu0 0
  %1301 = vmatpush2.bf16.msra.mxu0 0
  %1302 = vmatprep.subr.bf16.mxu0 0
  %1303 = vmatpush2.bf16.msra.mxu0 0
  %1304 = vmatprep.subr.bf16.mxu0 0
  %1305 = vmatpush2.bf16.msra.mxu0 0
  %1306 = vmatprep.subr.bf16.mxu0 0
  %1307 = vmatpush2.bf16.msra.mxu0 0
  %1308 = vmatprep.subr.bf16.mxu0 0
  %1309 = vmatpush2.bf16.msra.mxu0 0
  %1310 = vmatprep.mubr.bf16.mxu0 0
  %1311 = vmatmul.mubr.bf16.gmra.mxu0 %v1276
  %v1312 = vpop.f32.mrf.mxu0
  %v1313 = vadd.f32 %v925, %v1312
  %v1314 = vpop.f32.mrf.mxu0
  %v1315 = vpop.f32.mrf.mxu0
  %v1316 = vpop.f32.mrf.mxu0
  %1317 = vdwg.mxu0
  %vm1318 = vcmp.gt.f32.partialorder %v1313, 0.0
  %v1319 = vmul.f32 %v1313, 0.01
  %v1320 = vsel %vm1318, %v1313, %v1319
  %v1321 = vpack.c.bf16 %v1320, %v1320
  %s1322 = scalar_lea.vmem %s9, 4
  %v1323 = vld [vmem:[%s1322] sm:$0xf]
  %vm1324 = vcmask 64512
  %v1326 = vsel %vm1324, %v1321, 0
  %vm1328 = vcmask 1043456
  %v1330 = vsel %vm1328, %v1323, 0
  %1332 = vmatprep.subr.bf16.mxu0 0
  %1333 = vmatpush1.bf16.msra.mxu0 0
  %1334 = vmatprep.subr.bf16.mxu0 0
  %1335 = vmatpush1.bf16.msra.mxu0 0
  %1336 = vmatprep.subr.bf16.mxu0 0
  %1337 = vmatpush1.bf16.msra.mxu0 0
  %1338 = vmatprep.subr.bf16.mxu0 0
  %1339 = vmatpush1.bf16.msra.mxu0 0
  %1340 = vmatprep.subr.bf16.mxu0 0
  %1341 = vmatpush1.bf16.msra.mxu0 0
  %1342 = vmatprep.subr.bf16.mxu0 0
  %1343 = vmatpush1.bf16.msra.mxu0 0
  %1344 = vmatprep.subr.bf16.mxu0 0
  %1345 = vmatpush1.bf16.msra.mxu0 0
  %1346 = vmatprep.subr.bf16.mxu0 0
  %1347 = vmatpush1.bf16.msra.mxu0 %v1330
  %1348 = vmatprep.subr.bf16.mxu0 0
  %1349 = vmatpush2.bf16.msra.mxu0 0
  %1350 = vmatprep.subr.bf16.mxu0 0
  %1351 = vmatpush2.bf16.msra.mxu0 0
  %1352 = vmatprep.subr.bf16.mxu0 0
  %1353 = vmatpush2.bf16.msra.mxu0 0
  %1354 = vmatprep.subr.bf16.mxu0 0
  %1355 = vmatpush2.bf16.msra.mxu0 0
  %1356 = vmatprep.subr.bf16.mxu0 0
  %1357 = vmatpush2.bf16.msra.mxu0 0
  %1358 = vmatprep.subr.bf16.mxu0 0
  %1359 = vmatpush2.bf16.msra.mxu0 0
  %1360 = vmatprep.subr.bf16.mxu0 0
  %1361 = vmatpush2.bf16.msra.mxu0 0
  %1362 = vmatprep.subr.bf16.mxu0 0
  %1363 = vmatpush2.bf16.msra.mxu0 0
  %1364 = vmatprep.mubr.bf16.mxu0 0
  %1365 = vmatmul.mubr.bf16.gmra.mxu0 %v1326
  %v1366 = vpop.f32.mrf.mxu0
  %v1367 = vadd.f32 0.0, %v1366
  %v1368 = vpop.f32.mrf.mxu0
  %v1369 = vpop.f32.mrf.mxu0
  %v1370 = vpop.f32.mrf.mxu0
  %1371 = vdwg.mxu0
  %v1373 = vsel %vm1324, %v980, 0
  %v1376 = vsel %vm1328, %v981, 0
  %1378 = vmatprep.subr.bf16.mxu0 0
  %1379 = vmatpush1.bf16.msra.mxu0 0
  %1380 = vmatprep.subr.bf16.mxu0 0
  %1381 = vmatpush1.bf16.msra.mxu0 0
  %1382 = vmatprep.subr.bf16.mxu0 0
  %1383 = vmatpush1.bf16.msra.mxu0 0
  %1384 = vmatprep.subr.bf16.mxu0 0
  %1385 = vmatpush1.bf16.msra.mxu0 0
  %1386 = vmatprep.subr.bf16.mxu0 0
  %1387 = vmatpush1.bf16.msra.mxu0 0
  %1388 = vmatprep.subr.bf16.mxu0 0
  %1389 = vmatpush1.bf16.msra.mxu0 0
  %1390 = vmatprep.subr.bf16.mxu0 0
  %1391 = vmatpush1.bf16.msra.mxu0 0
  %1392 = vmatprep.subr.bf16.mxu0 0
  %1393 = vmatpush1.bf16.msra.mxu0 %v1376
  %1394 = vmatprep.subr.bf16.mxu0 0
  %1395 = vmatpush2.bf16.msra.mxu0 0
  %1396 = vmatprep.subr.bf16.mxu0 0
  %1397 = vmatpush2.bf16.msra.mxu0 0
  %1398 = vmatprep.subr.bf16.mxu0 0
  %1399 = vmatpush2.bf16.msra.mxu0 0
  %1400 = vmatprep.subr.bf16.mxu0 0
  %1401 = vmatpush2.bf16.msra.mxu0 0
  %1402 = vmatprep.subr.bf16.mxu0 0
  %1403 = vmatpush2.bf16.msra.mxu0 0
  %1404 = vmatprep.subr.bf16.mxu0 0
  %1405 = vmatpush2.bf16.msra.mxu0 0
  %1406 = vmatprep.subr.bf16.mxu0 0
  %1407 = vmatpush2.bf16.msra.mxu0 0
  %1408 = vmatprep.subr.bf16.mxu0 0
  %1409 = vmatpush2.bf16.msra.mxu0 0
  %1410 = vmatprep.mubr.bf16.mxu0 0
  %1411 = vmatmul.mubr.bf16.gmra.mxu0 %v1373
  %v1412 = vpop.f32.mrf.mxu0
  %v1413 = vadd.f32 %v1367, %v1412
  %v1414 = vpop.f32.mrf.mxu0
  %v1415 = vpop.f32.mrf.mxu0
  %v1416 = vpop.f32.mrf.mxu0
  %1417 = vdwg.mxu0
  %v1418 = vld [vmem:[%s0 + $0x8] sm:$0xff]
  %v1419 = vld [vmem:[%s87 + $0x8] sm:$0xff]
  %v1421 = vunpack.c.l.b16 %v1419
  %v1422 = vunpack.c.h.b16 %v1419
  %v1423 = vpack.c.b16 %v1421, %v1421
  %v1424 = vpack.c.b16 %v1422, %v1422
  %1427 = vmatprep.subr.bf16.mxu0 0
  %1428 = vmatpush1.bf16.msra.mxu0 %v200
  %1429 = vmatprep.subr.bf16.mxu0 0
  %1430 = vmatpush1.bf16.msra.mxu0 %v199
  %1431 = vmatprep.subr.bf16.mxu0 0
  %1432 = vmatpush1.bf16.msra.mxu0 %v198
  %1433 = vmatprep.subr.bf16.mxu0 0
  %1434 = vmatpush1.bf16.msra.mxu0 %v197
  %1435 = vmatprep.subr.bf16.mxu0 0
  %1436 = vmatpush1.bf16.msra.mxu0 %v196
  %1437 = vmatprep.subr.bf16.mxu0 0
  %1438 = vmatpush1.bf16.msra.mxu0 %v195
  %1439 = vmatprep.subr.bf16.mxu0 0
  %1440 = vmatpush1.bf16.msra.mxu0 %v194
  %1441 = vmatprep.subr.bf16.mxu0 0
  %1442 = vmatpush1.bf16.msra.mxu0 %v193
  %1443 = vmatprep.subr.bf16.mxu0 0
  %1444 = vmatpush2.bf16.msra.mxu0 %v208
  %1445 = vmatprep.subr.bf16.mxu0 0
  %1446 = vmatpush2.bf16.msra.mxu0 %v207
  %1447 = vmatprep.subr.bf16.mxu0 0
  %1448 = vmatpush2.bf16.msra.mxu0 %v206
  %1449 = vmatprep.subr.bf16.mxu0 0
  %1450 = vmatpush2.bf16.msra.mxu0 %v205
  %1451 = vmatprep.subr.bf16.mxu0 0
  %1452 = vmatpush2.bf16.msra.mxu0 %v204
  %1453 = vmatprep.subr.bf16.mxu0 0
  %1454 = vmatpush2.bf16.msra.mxu0 %v203
  %1455 = vmatprep.subr.bf16.mxu0 0
  %1456 = vmatpush2.bf16.msra.mxu0 %v202
  %1457 = vmatprep.subr.bf16.mxu0 0
  %1458 = vmatpush2.bf16.msra.mxu0 %v201
  %1459 = vmatprep.mubr.bf16.mxu0 %v1424
  %1460 = vmatmul.mubr.bf16.gmra.mxu0 %v1423
  %v1461 = vpop.f32.mrf.mxu0
  %v1462 = vadd.f32 0.0, %v1461
  %v1463 = vpop.f32.mrf.mxu0
  %v1464 = vpop.f32.mrf.mxu0
  %v1465 = vpop.f32.mrf.mxu0
  %1466 = vdwg.mxu0
  %v1468 = vunpack.c.l.b16 %v1418
  %v1469 = vunpack.c.h.b16 %v1418
  %v1470 = vpack.c.b16 %v1468, %v1468
  %v1471 = vpack.c.b16 %v1469, %v1469
  %1474 = vmatprep.subr.bf16.mxu0 0
  %1475 = vmatpush1.bf16.msra.mxu0 %v343
  %1476 = vmatprep.subr.bf16.mxu0 0
  %1477 = vmatpush1.bf16.msra.mxu0 %v342
  %1478 = vmatprep.subr.bf16.mxu0 0
  %1479 = vmatpush1.bf16.msra.mxu0 %v341
  %1480 = vmatprep.subr.bf16.mxu0 0
  %1481 = vmatpush1.bf16.msra.mxu0 %v340
  %1482 = vmatprep.subr.bf16.mxu0 0
  %1483 = vmatpush1.bf16.msra.mxu0 %v339
  %1484 = vmatprep.subr.bf16.mxu0 0
  %1485 = vmatpush1.bf16.msra.mxu0 %v338
  %1486 = vmatprep.subr.bf16.mxu0 0
  %1487 = vmatpush1.bf16.msra.mxu0 %v337
  %1488 = vmatprep.subr.bf16.mxu0 0
  %1489 = vmatpush1.bf16.msra.mxu0 %v336
  %1490 = vmatprep.subr.bf16.mxu0 0
  %1491 = vmatpush2.bf16.msra.mxu0 %v351
  %1492 = vmatprep.subr.bf16.mxu0 0
  %1493 = vmatpush2.bf16.msra.mxu0 %v350
  %1494 = vmatprep.subr.bf16.mxu0 0
  %1495 = vmatpush2.bf16.msra.mxu0 %v349
  %1496 = vmatprep.subr.bf16.mxu0 0
  %1497 = vmatpush2.bf16.msra.mxu0 %v348
  %1498 = vmatprep.subr.bf16.mxu0 0
  %1499 = vmatpush2.bf16.msra.mxu0 %v347
  %1500 = vmatprep.subr.bf16.mxu0 0
  %1501 = vmatpush2.bf16.msra.mxu0 %v346
  %1502 = vmatprep.subr.bf16.mxu0 0
  %1503 = vmatpush2.bf16.msra.mxu0 %v345
  %1504 = vmatprep.subr.bf16.mxu0 0
  %1505 = vmatpush2.bf16.msra.mxu0 %v344
  %1506 = vmatprep.mubr.bf16.mxu0 %v1471
  %1507 = vmatmul.mubr.bf16.gmra.mxu0 %v1470
  %v1508 = vpop.f32.mrf.mxu0
  %v1509 = vadd.f32 %v1462, %v1508
  %v1510 = vpop.f32.mrf.mxu0
  %v1511 = vpop.f32.mrf.mxu0
  %v1512 = vpop.f32.mrf.mxu0
  %1513 = vdwg.mxu0
  %v1514 = vld [vmem:[%s408 + $0x8] sm:$0xff]
  %v1516 = vunpack.c.l.b16 %v1514
  %v1517 = vunpack.c.h.b16 %v1514
  %v1518 = vpack.c.b16 %v1516, %v1516
  %v1519 = vpack.c.b16 %v1517, %v1517
  %1522 = vmatprep.subr.bf16.mxu0 0
  %1523 = vmatpush1.bf16.msra.mxu0 %v521
  %1524 = vmatprep.subr.bf16.mxu0 0
  %1525 = vmatpush1.bf16.msra.mxu0 %v520
  %1526 = vmatprep.subr.bf16.mxu0 0
  %1527 = vmatpush1.bf16.msra.mxu0 %v519
  %1528 = vmatprep.subr.bf16.mxu0 0
  %1529 = vmatpush1.bf16.msra.mxu0 %v518
  %1530 = vmatprep.subr.bf16.mxu0 0
  %1531 = vmatpush1.bf16.msra.mxu0 %v517
  %1532 = vmatprep.subr.bf16.mxu0 0
  %1533 = vmatpush1.bf16.msra.mxu0 %v516
  %1534 = vmatprep.subr.bf16.mxu0 0
  %1535 = vmatpush1.bf16.msra.mxu0 %v515
  %1536 = vmatprep.subr.bf16.mxu0 0
  %1537 = vmatpush1.bf16.msra.mxu0 %v514
  %1538 = vmatprep.subr.bf16.mxu0 0
  %1539 = vmatpush2.bf16.msra.mxu0 %v529
  %1540 = vmatprep.subr.bf16.mxu0 0
  %1541 = vmatpush2.bf16.msra.mxu0 %v528
  %1542 = vmatprep.subr.bf16.mxu0 0
  %1543 = vmatpush2.bf16.msra.mxu0 %v527
  %1544 = vmatprep.subr.bf16.mxu0 0
  %1545 = vmatpush2.bf16.msra.mxu0 %v526
  %1546 = vmatprep.subr.bf16.mxu0 0
  %1547 = vmatpush2.bf16.msra.mxu0 %v525
  %1548 = vmatprep.subr.bf16.mxu0 0
  %1549 = vmatpush2.bf16.msra.mxu0 %v524
  %1550 = vmatprep.subr.bf16.mxu0 0
  %1551 = vmatpush2.bf16.msra.mxu0 %v523
  %1552 = vmatprep.subr.bf16.mxu0 0
  %1553 = vmatpush2.bf16.msra.mxu0 %v522
  %1554 = vmatprep.mubr.bf16.mxu0 %v1519
  %1555 = vmatmul.mubr.bf16.gmra.mxu0 %v1518
  %v1556 = vpop.f32.mrf.mxu0
  %v1557 = vadd.f32 0.0, %v1556
  %v1558 = vpop.f32.mrf.mxu0
  %v1559 = vpop.f32.mrf.mxu0
  %v1560 = vpop.f32.mrf.mxu0
  %1561 = vdwg.mxu0
  %v1562 = vadd.f32 %v1509, %v1557
  %v1563 = vld [vmem:[%s587 + $0x8] sm:$0xff]
  %v1565 = vunpack.c.l.b16 %v1563
  %v1566 = vunpack.c.h.b16 %v1563
  %v1567 = vpack.c.b16 %v1565, %v1565
  %v1568 = vpack.c.b16 %v1566, %v1566
  %1571 = vmatprep.subr.bf16.mxu0 0
  %1572 = vmatpush1.bf16.msra.mxu0 %v700
  %1573 = vmatprep.subr.bf16.mxu0 0
  %1574 = vmatpush1.bf16.msra.mxu0 %v699
  %1575 = vmatprep.subr.bf16.mxu0 0
  %1576 = vmatpush1.bf16.msra.mxu0 %v698
  %1577 = vmatprep.subr.bf16.mxu0 0
  %1578 = vmatpush1.bf16.msra.mxu0 %v697
  %1579 = vmatprep.subr.bf16.mxu0 0
  %1580 = vmatpush1.bf16.msra.mxu0 %v696
  %1581 = vmatprep.subr.bf16.mxu0 0
  %1582 = vmatpush1.bf16.msra.mxu0 %v695
  %1583 = vmatprep.subr.bf16.mxu0 0
  %1584 = vmatpush1.bf16.msra.mxu0 %v694
  %1585 = vmatprep.subr.bf16.mxu0 0
  %1586 = vmatpush1.bf16.msra.mxu0 %v693
  %1587 = vmatprep.subr.bf16.mxu0 0
  %1588 = vmatpush2.bf16.msra.mxu0 %v708
  %1589 = vmatprep.subr.bf16.mxu0 0
  %1590 = vmatpush2.bf16.msra.mxu0 %v707
  %1591 = vmatprep.subr.bf16.mxu0 0
  %1592 = vmatpush2.bf16.msra.mxu0 %v706
  %1593 = vmatprep.subr.bf16.mxu0 0
  %1594 = vmatpush2.bf16.msra.mxu0 %v705
  %1595 = vmatprep.subr.bf16.mxu0 0
  %1596 = vmatpush2.bf16.msra.mxu0 %v704
  %1597 = vmatprep.subr.bf16.mxu0 0
  %1598 = vmatpush2.bf16.msra.mxu0 %v703
  %1599 = vmatprep.subr.bf16.mxu0 0
  %1600 = vmatpush2.bf16.msra.mxu0 %v702
  %1601 = vmatprep.subr.bf16.mxu0 0
  %1602 = vmatpush2.bf16.msra.mxu0 %v701
  %1603 = vmatprep.mubr.bf16.mxu0 %v1568
  %1604 = vmatmul.mubr.bf16.gmra.mxu0 %v1567
  %v1605 = vpop.f32.mrf.mxu0
  %v1606 = vadd.f32 0.0, %v1605
  %v1607 = vpop.f32.mrf.mxu0
  %v1608 = vpop.f32.mrf.mxu0
  %v1609 = vpop.f32.mrf.mxu0
  %1610 = vdwg.mxu0
  %v1611 = vadd.f32 %v1562, %v1606
  %v1612 = vadd.f32 %v1611, %v770
  %vm1613 = vcmp.gt.f32.partialorder %v1612, 0.0
  %v1614 = vmul.f32 %v1612, 0.01
  %v1615 = vsel %vm1613, %v1612, %v1614
  %v1616 = vpack.c.bf16 %v1615, %v1615
  %v1618 = vsel %vm807, %v1616, 0
  %1620 = vmatprep.subr.bf16.mxu0 0
  %1621 = vmatpush1.bf16.msra.mxu0 0
  %1622 = vmatprep.subr.bf16.mxu0 0
  %1623 = vmatpush1.bf16.msra.mxu0 0
  %1624 = vmatprep.subr.bf16.mxu0 0
  %1625 = vmatpush1.bf16.msra.mxu0 0
  %1626 = vmatprep.subr.bf16.mxu0 0
  %1627 = vmatpush1.bf16.msra.mxu0 0
  %1628 = vmatprep.subr.bf16.mxu0 0
  %1629 = vmatpush1.bf16.msra.mxu0 %v802
  %1630 = vmatprep.subr.bf16.mxu0 0
  %1631 = vmatpush1.bf16.msra.mxu0 %v801
  %1632 = vmatprep.subr.bf16.mxu0 0
  %1633 = vmatpush1.bf16.msra.mxu0 %v800
  %1634 = vmatprep.subr.bf16.mxu0 0
  %1635 = vmatpush1.bf16.msra.mxu0 %v799
  %1636 = vmatprep.subr.bf16.mxu0 0
  %1637 = vmatpush2.bf16.msra.mxu0 0
  %1638 = vmatprep.subr.bf16.mxu0 0
  %1639 = vmatpush2.bf16.msra.mxu0 0
  %1640 = vmatprep.subr.bf16.mxu0 0
  %1641 = vmatpush2.bf16.msra.mxu0 0
  %1642 = vmatprep.subr.bf16.mxu0 0
  %1643 = vmatpush2.bf16.msra.mxu0 0
  %1644 = vmatprep.subr.bf16.mxu0 0
  %1645 = vmatpush2.bf16.msra.mxu0 0
  %1646 = vmatprep.subr.bf16.mxu0 0
  %1647 = vmatpush2.bf16.msra.mxu0 0
  %1648 = vmatprep.subr.bf16.mxu0 0
  %1649 = vmatpush2.bf16.msra.mxu0 0
  %1650 = vmatprep.subr.bf16.mxu0 0
  %1651 = vmatpush2.bf16.msra.mxu0 0
  %1652 = vmatprep.mubr.bf16.mxu0 0
  %1653 = vmatmul.mubr.bf16.gmra.mxu0 %v1618
  %v1654 = vpop.f32.mrf.mxu0
  %v1655 = vadd.f32 %v781, %v1654
  %v1656 = vpop.f32.mrf.mxu0
  %v1657 = vpop.f32.mrf.mxu0
  %v1658 = vpop.f32.mrf.mxu0
  %1659 = vdwg.mxu0
  %vm1660 = vcmp.gt.f32.partialorder %v1655, 0.0
  %v1661 = vmul.f32 %v1655, 0.01
  %v1662 = vsel %vm1660, %v1655, %v1661
  %v1663 = vpack.c.bf16 %v1662, %v1662
  %v1665 = vsel %vm873, %v1663, 0
  %1667 = vmatprep.subr.bf16.mxu0 0
  %1668 = vmatpush1.bf16.msra.mxu0 0
  %1669 = vmatprep.subr.bf16.mxu0 0
  %1670 = vmatpush1.bf16.msra.mxu0 0
  %1671 = vmatprep.subr.bf16.mxu0 0
  %1672 = vmatpush1.bf16.msra.mxu0 0
  %1673 = vmatprep.subr.bf16.mxu0 0
  %1674 = vmatpush1.bf16.msra.mxu0 0
  %1675 = vmatprep.subr.bf16.mxu0 0
  %1676 = vmatpush1.bf16.msra.mxu0 0
  %1677 = vmatprep.subr.bf16.mxu0 0
  %1678 = vmatpush1.bf16.msra.mxu0 0
  %1679 = vmatprep.subr.bf16.mxu0 0
  %1680 = vmatpush1.bf16.msra.mxu0 %v870
  %1681 = vmatprep.subr.bf16.mxu0 0
  %1682 = vmatpush1.bf16.msra.mxu0 %v869
  %1683 = vmatprep.subr.bf16.mxu0 0
  %1684 = vmatpush2.bf16.msra.mxu0 0
  %1685 = vmatprep.subr.bf16.mxu0 0
  %1686 = vmatpush2.bf16.msra.mxu0 0
  %1687 = vmatprep.subr.bf16.mxu0 0
  %1688 = vmatpush2.bf16.msra.mxu0 0
  %1689 = vmatprep.subr.bf16.mxu0 0
  %1690 = vmatpush2.bf16.msra.mxu0 0
  %1691 = vmatprep.subr.bf16.mxu0 0
  %1692 = vmatpush2.bf16.msra.mxu0 0
  %1693 = vmatprep.subr.bf16.mxu0 0
  %1694 = vmatpush2.bf16.msra.mxu0 0
  %1695 = vmatprep.subr.bf16.mxu0 0
  %1696 = vmatpush2.bf16.msra.mxu0 0
  %1697 = vmatprep.subr.bf16.mxu0 0
  %1698 = vmatpush2.bf16.msra.mxu0 0
  %1699 = vmatprep.mubr.bf16.mxu0 0
  %1700 = vmatmul.mubr.bf16.gmra.mxu0 %v1665
  %v1701 = vpop.f32.mrf.mxu0
  %v1702 = vadd.f32 %v859, %v1701
  %v1703 = vpop.f32.mrf.mxu0
  %v1704 = vpop.f32.mrf.mxu0
  %v1705 = vpop.f32.mrf.mxu0
  %1706 = vdwg.mxu0
  %vm1707 = vcmp.gt.f32.partialorder %v1702, 0.0
  %v1708 = vmul.f32 %v1702, 0.01
  %v1709 = vsel %vm1707, %v1702, %v1708
  %v1710 = vpack.c.bf16 %v1709, %v1709
  %v1712 = vsel %vm933, %v1710, 0
  %1714 = vmatprep.subr.bf16.mxu0 0
  %1715 = vmatpush1.bf16.msra.mxu0 0
  %1716 = vmatprep.subr.bf16.mxu0 0
  %1717 = vmatpush1.bf16.msra.mxu0 0
  %1718 = vmatprep.subr.bf16.mxu0 0
  %1719 = vmatpush1.bf16.msra.mxu0 0
  %1720 = vmatprep.subr.bf16.mxu0 0
  %1721 = vmatpush1.bf16.msra.mxu0 0
  %1722 = vmatprep.subr.bf16.mxu0 0
  %1723 = vmatpush1.bf16.msra.mxu0 0
  %1724 = vmatprep.subr.bf16.mxu0 0
  %1725 = vmatpush1.bf16.msra.mxu0 0
  %1726 = vmatprep.subr.bf16.mxu0 0
  %1727 = vmatpush1.bf16.msra.mxu0 0
  %1728 = vmatprep.subr.bf16.mxu0 0
  %1729 = vmatpush1.bf16.msra.mxu0 %v931
  %1730 = vmatprep.subr.bf16.mxu0 0
  %1731 = vmatpush2.bf16.msra.mxu0 0
  %1732 = vmatprep.subr.bf16.mxu0 0
  %1733 = vmatpush2.bf16.msra.mxu0 0
  %1734 = vmatprep.subr.bf16.mxu0 0
  %1735 = vmatpush2.bf16.msra.mxu0 0
  %1736 = vmatprep.subr.bf16.mxu0 0
  %1737 = vmatpush2.bf16.msra.mxu0 0
  %1738 = vmatprep.subr.bf16.mxu0 0
  %1739 = vmatpush2.bf16.msra.mxu0 0
  %1740 = vmatprep.subr.bf16.mxu0 0
  %1741 = vmatpush2.bf16.msra.mxu0 0
  %1742 = vmatprep.subr.bf16.mxu0 0
  %1743 = vmatpush2.bf16.msra.mxu0 0
  %1744 = vmatprep.subr.bf16.mxu0 0
  %1745 = vmatpush2.bf16.msra.mxu0 0
  %1746 = vmatprep.mubr.bf16.mxu0 0
  %1747 = vmatmul.mubr.bf16.gmra.mxu0 %v1712
  %v1748 = vpop.f32.mrf.mxu0
  %v1749 = vadd.f32 %v925, %v1748
  %v1750 = vpop.f32.mrf.mxu0
  %v1751 = vpop.f32.mrf.mxu0
  %v1752 = vpop.f32.mrf.mxu0
  %1753 = vdwg.mxu0
  %vm1754 = vcmp.gt.f32.partialorder %v1749, 0.0
  %v1755 = vmul.f32 %v1749, 0.01
  %v1756 = vsel %vm1754, %v1749, %v1755
  %v1757 = vpack.c.bf16 %v1756, %v1756
  %s1758 = scalar_lea.vmem %s9, 8
  %v1759 = vld [vmem:[%s1758] sm:$0xf]
  %v1761 = vsel %vm1324, %v1757, 0
  %v1764 = vsel %vm1328, %v1759, 0
  %1766 = vmatprep.subr.bf16.mxu0 0
  %1767 = vmatpush1.bf16.msra.mxu0 0
  %1768 = vmatprep.subr.bf16.mxu0 0
  %1769 = vmatpush1.bf16.msra.mxu0 0
  %1770 = vmatprep.subr.bf16.mxu0 0
  %1771 = vmatpush1.bf16.msra.mxu0 0
  %1772 = vmatprep.subr.bf16.mxu0 0
  %1773 = vmatpush1.bf16.msra.mxu0 0
  %1774 = vmatprep.subr.bf16.mxu0 0
  %1775 = vmatpush1.bf16.msra.mxu0 0
  %1776 = vmatprep.subr.bf16.mxu0 0
  %1777 = vmatpush1.bf16.msra.mxu0 0
  %1778 = vmatprep.subr.bf16.mxu0 0
  %1779 = vmatpush1.bf16.msra.mxu0 0
  %1780 = vmatprep.subr.bf16.mxu0 0
  %1781 = vmatpush1.bf16.msra.mxu0 %v1764
  %1782 = vmatprep.subr.bf16.mxu0 0
  %1783 = vmatpush2.bf16.msra.mxu0 0
  %1784 = vmatprep.subr.bf16.mxu0 0
  %1785 = vmatpush2.bf16.msra.mxu0 0
  %1786 = vmatprep.subr.bf16.mxu0 0
  %1787 = vmatpush2.bf16.msra.mxu0 0
  %1788 = vmatprep.subr.bf16.mxu0 0
  %1789 = vmatpush2.bf16.msra.mxu0 0
  %1790 = vmatprep.subr.bf16.mxu0 0
  %1791 = vmatpush2.bf16.msra.mxu0 0
  %1792 = vmatprep.subr.bf16.mxu0 0
  %1793 = vmatpush2.bf16.msra.mxu0 0
  %1794 = vmatprep.subr.bf16.mxu0 0
  %1795 = vmatpush2.bf16.msra.mxu0 0
  %1796 = vmatprep.subr.bf16.mxu0 0
  %1797 = vmatpush2.bf16.msra.mxu0 0
  %1798 = vmatprep.mubr.bf16.mxu0 0
  %1799 = vmatmul.mubr.bf16.gmra.mxu0 %v1761
  %v1800 = vpop.f32.mrf.mxu0
  %v1801 = vadd.f32 0.0, %v1800
  %v1802 = vpop.f32.mrf.mxu0
  %v1803 = vpop.f32.mrf.mxu0
  %v1804 = vpop.f32.mrf.mxu0
  %1805 = vdwg.mxu0
  %v1806 = vadd.f32 %v1413, %v1801
  %1807 = vmatprep.subr.bf16.mxu0 0
  %1808 = vmatpush1.bf16.msra.mxu0 %v200
  %1809 = vmatprep.subr.bf16.mxu0 0
  %1810 = vmatpush1.bf16.msra.mxu0 %v199
  %1811 = vmatprep.subr.bf16.mxu0 0
  %1812 = vmatpush1.bf16.msra.mxu0 %v198
  %1813 = vmatprep.subr.bf16.mxu0 0
  %1814 = vmatpush1.bf16.msra.mxu0 %v197
  %1815 = vmatprep.subr.bf16.mxu0 0
  %1816 = vmatpush1.bf16.msra.mxu0 %v196
  %1817 = vmatprep.subr.bf16.mxu0 0
  %1818 = vmatpush1.bf16.msra.mxu0 %v195
  %1819 = vmatprep.subr.bf16.mxu0 0
  %1820 = vmatpush1.bf16.msra.mxu0 %v194
  %1821 = vmatprep.subr.bf16.mxu0 0
  %1822 = vmatpush1.bf16.msra.mxu0 %v193
  %1823 = vmatprep.subr.bf16.mxu0 0
  %1824 = vmatpush2.bf16.msra.mxu0 %v208
  %1825 = vmatprep.subr.bf16.mxu0 0
  %1826 = vmatpush2.bf16.msra.mxu0 %v207
  %1827 = vmatprep.subr.bf16.mxu0 0
  %1828 = vmatpush2.bf16.msra.mxu0 %v206
  %1829 = vmatprep.subr.bf16.mxu0 0
  %1830 = vmatpush2.bf16.msra.mxu0 %v205
  %1831 = vmatprep.subr.bf16.mxu0 0
  %1832 = vmatpush2.bf16.msra.mxu0 %v204
  %1833 = vmatprep.subr.bf16.mxu0 0
  %1834 = vmatpush2.bf16.msra.mxu0 %v203
  %1835 = vmatprep.subr.bf16.mxu0 0
  %1836 = vmatpush2.bf16.msra.mxu0 %v202
  %1837 = vmatprep.subr.bf16.mxu0 0
  %1838 = vmatpush2.bf16.msra.mxu0 %v201
  %1839 = vmatprep.mubr.bf16.mxu0 %v626
  %1840 = vmatmul.mubr.bf16.gmra.mxu0 %v625
  %v1841 = vpop.f32.mrf.mxu0
  %v1842 = vadd.f32 0.0, %v1841
  %v1843 = vpop.f32.mrf.mxu0
  %v1844 = vpop.f32.mrf.mxu0
  %v1845 = vpop.f32.mrf.mxu0
  %1846 = vdwg.mxu0
  %1847 = vmatprep.subr.bf16.mxu0 0
  %1848 = vmatpush1.bf16.msra.mxu0 %v343
  %1849 = vmatprep.subr.bf16.mxu0 0
  %1850 = vmatpush1.bf16.msra.mxu0 %v342
  %1851 = vmatprep.subr.bf16.mxu0 0
  %1852 = vmatpush1.bf16.msra.mxu0 %v341
  %1853 = vmatprep.subr.bf16.mxu0 0
  %1854 = vmatpush1.bf16.msra.mxu0 %v340
  %1855 = vmatprep.subr.bf16.mxu0 0
  %1856 = vmatpush1.bf16.msra.mxu0 %v339
  %1857 = vmatprep.subr.bf16.mxu0 0
  %1858 = vmatpush1.bf16.msra.mxu0 %v338
  %1859 = vmatprep.subr.bf16.mxu0 0
  %1860 = vmatpush1.bf16.msra.mxu0 %v337
  %1861 = vmatprep.subr.bf16.mxu0 0
  %1862 = vmatpush1.bf16.msra.mxu0 %v336
  %1863 = vmatprep.subr.bf16.mxu0 0
  %1864 = vmatpush2.bf16.msra.mxu0 %v351
  %1865 = vmatprep.subr.bf16.mxu0 0
  %1866 = vmatpush2.bf16.msra.mxu0 %v350
  %1867 = vmatprep.subr.bf16.mxu0 0
  %1868 = vmatpush2.bf16.msra.mxu0 %v349
  %1869 = vmatprep.subr.bf16.mxu0 0
  %1870 = vmatpush2.bf16.msra.mxu0 %v348
  %1871 = vmatprep.subr.bf16.mxu0 0
  %1872 = vmatpush2.bf16.msra.mxu0 %v347
  %1873 = vmatprep.subr.bf16.mxu0 0
  %1874 = vmatpush2.bf16.msra.mxu0 %v346
  %1875 = vmatprep.subr.bf16.mxu0 0
  %1876 = vmatpush2.bf16.msra.mxu0 %v345
  %1877 = vmatprep.subr.bf16.mxu0 0
  %1878 = vmatpush2.bf16.msra.mxu0 %v344
  %1879 = vmatprep.mubr.bf16.mxu0 %v447
  %1880 = vmatmul.mubr.bf16.gmra.mxu0 %v446
  %v1881 = vpop.f32.mrf.mxu0
  %v1882 = vadd.f32 %v1842, %v1881
  %v1883 = vpop.f32.mrf.mxu0
  %v1884 = vpop.f32.mrf.mxu0
  %v1885 = vpop.f32.mrf.mxu0
  %1886 = vdwg.mxu0
  %s1887 = scalar_lea.vmem %s0, 80
  %v1888 = vld [vmem:[%s1887] sm:$0xff]
  %v1890 = vunpack.c.l.b16 %v1888
  %v1891 = vunpack.c.h.b16 %v1888
  %v1892 = vpack.c.b16 %v1890, %v1890
  %v1893 = vpack.c.b16 %v1891, %v1891
  %1896 = vmatprep.subr.bf16.mxu0 0
  %1897 = vmatpush1.bf16.msra.mxu0 %v521
  %1898 = vmatprep.subr.bf16.mxu0 0
  %1899 = vmatpush1.bf16.msra.mxu0 %v520
  %1900 = vmatprep.subr.bf16.mxu0 0
  %1901 = vmatpush1.bf16.msra.mxu0 %v519
  %1902 = vmatprep.subr.bf16.mxu0 0
  %1903 = vmatpush1.bf16.msra.mxu0 %v518
  %1904 = vmatprep.subr.bf16.mxu0 0
  %1905 = vmatpush1.bf16.msra.mxu0 %v517
  %1906 = vmatprep.subr.bf16.mxu0 0
  %1907 = vmatpush1.bf16.msra.mxu0 %v516
  %1908 = vmatprep.subr.bf16.mxu0 0
  %1909 = vmatpush1.bf16.msra.mxu0 %v515
  %1910 = vmatprep.subr.bf16.mxu0 0
  %1911 = vmatpush1.bf16.msra.mxu0 %v514
  %1912 = vmatprep.subr.bf16.mxu0 0
  %1913 = vmatpush2.bf16.msra.mxu0 %v529
  %1914 = vmatprep.subr.bf16.mxu0 0
  %1915 = vmatpush2.bf16.msra.mxu0 %v528
  %1916 = vmatprep.subr.bf16.mxu0 0
  %1917 = vmatpush2.bf16.msra.mxu0 %v527
  %1918 = vmatprep.subr.bf16.mxu0 0
  %1919 = vmatpush2.bf16.msra.mxu0 %v526
  %1920 = vmatprep.subr.bf16.mxu0 0
  %1921 = vmatpush2.bf16.msra.mxu0 %v525
  %1922 = vmatprep.subr.bf16.mxu0 0
  %1923 = vmatpush2.bf16.msra.mxu0 %v524
  %1924 = vmatprep.subr.bf16.mxu0 0
  %1925 = vmatpush2.bf16.msra.mxu0 %v523
  %1926 = vmatprep.subr.bf16.mxu0 0
  %1927 = vmatpush2.bf16.msra.mxu0 %v522
  %1928 = vmatprep.mubr.bf16.mxu0 %v1893
  %1929 = vmatmul.mubr.bf16.gmra.mxu0 %v1892
  %v1930 = vpop.f32.mrf.mxu0
  %v1931 = vadd.f32 0.0, %v1930
  %v1932 = vpop.f32.mrf.mxu0
  %v1933 = vpop.f32.mrf.mxu0
  %v1934 = vpop.f32.mrf.mxu0
  %1935 = vdwg.mxu0
  %v1936 = vadd.f32 %v1882, %v1931
  %s1937 = scalar_lea.vmem %s0, 100
  %v1938 = vld [vmem:[%s1937] sm:$0xff]
  %v1940 = vunpack.c.l.b16 %v1938
  %v1941 = vunpack.c.h.b16 %v1938
  %v1942 = vpack.c.b16 %v1940, %v1940
  %v1943 = vpack.c.b16 %v1941, %v1941
  %1946 = vmatprep.subr.bf16.mxu0 0
  %1947 = vmatpush1.bf16.msra.mxu0 %v700
  %1948 = vmatprep.subr.bf16.mxu0 0
  %1949 = vmatpush1.bf16.msra.mxu0 %v699
  %1950 = vmatprep.subr.bf16.mxu0 0
  %1951 = vmatpush1.bf16.msra.mxu0 %v698
  %1952 = vmatprep.subr.bf16.mxu0 0
  %1953 = vmatpush1.bf16.msra.mxu0 %v697
  %1954 = vmatprep.subr.bf16.mxu0 0
  %1955 = vmatpush1.bf16.msra.mxu0 %v696
  %1956 = vmatprep.subr.bf16.mxu0 0
  %1957 = vmatpush1.bf16.msra.mxu0 %v695
  %1958 = vmatprep.subr.bf16.mxu0 0
  %1959 = vmatpush1.bf16.msra.mxu0 %v694
  %1960 = vmatprep.subr.bf16.mxu0 0
  %1961 = vmatpush1.bf16.msra.mxu0 %v693
  %1962 = vmatprep.subr.bf16.mxu0 0
  %1963 = vmatpush2.bf16.msra.mxu0 %v708
  %1964 = vmatprep.subr.bf16.mxu0 0
  %1965 = vmatpush2.bf16.msra.mxu0 %v707
  %1966 = vmatprep.subr.bf16.mxu0 0
  %1967 = vmatpush2.bf16.msra.mxu0 %v706
  %1968 = vmatprep.subr.bf16.mxu0 0
  %1969 = vmatpush2.bf16.msra.mxu0 %v705
  %1970 = vmatprep.subr.bf16.mxu0 0
  %1971 = vmatpush2.bf16.msra.mxu0 %v704
  %1972 = vmatprep.subr.bf16.mxu0 0
  %1973 = vmatpush2.bf16.msra.mxu0 %v703
  %1974 = vmatprep.subr.bf16.mxu0 0
  %1975 = vmatpush2.bf16.msra.mxu0 %v702
  %1976 = vmatprep.subr.bf16.mxu0 0
  %1977 = vmatpush2.bf16.msra.mxu0 %v701
  %1978 = vmatprep.mubr.bf16.mxu0 %v1943
  %1979 = vmatmul.mubr.bf16.gmra.mxu0 %v1942
  %v1980 = vpop.f32.mrf.mxu0
  %v1981 = vadd.f32 0.0, %v1980
  %v1982 = vpop.f32.mrf.mxu0
  %v1983 = vpop.f32.mrf.mxu0
  %v1984 = vpop.f32.mrf.mxu0
  %1985 = vdwg.mxu0
  %v1986 = vadd.f32 %v1936, %v1981
  %v1987 = vadd.f32 %v1986, %v770
  %vm1988 = vcmp.gt.f32.partialorder %v1987, 0.0
  %v1989 = vmul.f32 %v1987, 0.01
  %v1990 = vsel %vm1988, %v1987, %v1989
  %v1991 = vpack.c.bf16 %v1990, %v1990
  %v1993 = vsel %vm807, %v1991, 0
  %1995 = vmatprep.subr.bf16.mxu0 0
  %1996 = vmatpush1.bf16.msra.mxu0 0
  %1997 = vmatprep.subr.bf16.mxu0 0
  %1998 = vmatpush1.bf16.msra.mxu0 0
  %1999 = vmatprep.subr.bf16.mxu0 0
  %2000 = vmatpush1.bf16.msra.mxu0 0
  %2001 = vmatprep.subr.bf16.mxu0 0
  %2002 = vmatpush1.bf16.msra.mxu0 0
  %2003 = vmatprep.subr.bf16.mxu0 0
  %2004 = vmatpush1.bf16.msra.mxu0 %v802
  %2005 = vmatprep.subr.bf16.mxu0 0
  %2006 = vmatpush1.bf16.msra.mxu0 %v801
  %2007 = vmatprep.subr.bf16.mxu0 0
  %2008 = vmatpush1.bf16.msra.mxu0 %v800
  %2009 = vmatprep.subr.bf16.mxu0 0
  %2010 = vmatpush1.bf16.msra.mxu0 %v799
  %2011 = vmatprep.subr.bf16.mxu0 0
  %2012 = vmatpush2.bf16.msra.mxu0 0
  %2013 = vmatprep.subr.bf16.mxu0 0
  %2014 = vmatpush2.bf16.msra.mxu0 0
  %2015 = vmatprep.subr.bf16.mxu0 0
  %2016 = vmatpush2.bf16.msra.mxu0 0
  %2017 = vmatprep.subr.bf16.mxu0 0
  %2018 = vmatpush2.bf16.msra.mxu0 0
  %2019 = vmatprep.subr.bf16.mxu0 0
  %2020 = vmatpush2.bf16.msra.mxu0 0
  %2021 = vmatprep.subr.bf16.mxu0 0
  %2022 = vmatpush2.bf16.msra.mxu0 0
  %2023 = vmatprep.subr.bf16.mxu0 0
  %2024 = vmatpush2.bf16.msra.mxu0 0
  %2025 = vmatprep.subr.bf16.mxu0 0
  %2026 = vmatpush2.bf16.msra.mxu0 0
  %2027 = vmatprep.mubr.bf16.mxu0 0
  %2028 = vmatmul.mubr.bf16.gmra.mxu0 %v1993
  %v2029 = vpop.f32.mrf.mxu0
  %v2030 = vadd.f32 %v781, %v2029
  %v2031 = vpop.f32.mrf.mxu0
  %v2032 = vpop.f32.mrf.mxu0
  %v2033 = vpop.f32.mrf.mxu0
  %2034 = vdwg.mxu0
  %vm2035 = vcmp.gt.f32.partialorder %v2030, 0.0
  %v2036 = vmul.f32 %v2030, 0.01
  %v2037 = vsel %vm2035, %v2030, %v2036
  %v2038 = vpack.c.bf16 %v2037, %v2037
  %v2040 = vsel %vm873, %v2038, 0
  %2042 = vmatprep.subr.bf16.mxu0 0
  %2043 = vmatpush1.bf16.msra.mxu0 0
  %2044 = vmatprep.subr.bf16.mxu0 0
  %2045 = vmatpush1.bf16.msra.mxu0 0
  %2046 = vmatprep.subr.bf16.mxu0 0
  %2047 = vmatpush1.bf16.msra.mxu0 0
  %2048 = vmatprep.subr.bf16.mxu0 0
  %2049 = vmatpush1.bf16.msra.mxu0 0
  %2050 = vmatprep.subr.bf16.mxu0 0
  %2051 = vmatpush1.bf16.msra.mxu0 0
  %2052 = vmatprep.subr.bf16.mxu0 0
  %2053 = vmatpush1.bf16.msra.mxu0 0
  %2054 = vmatprep.subr.bf16.mxu0 0
  %2055 = vmatpush1.bf16.msra.mxu0 %v870
  %2056 = vmatprep.subr.bf16.mxu0 0
  %2057 = vmatpush1.bf16.msra.mxu0 %v869
  %2058 = vmatprep.subr.bf16.mxu0 0
  %2059 = vmatpush2.bf16.msra.mxu0 0
  %2060 = vmatprep.subr.bf16.mxu0 0
  %2061 = vmatpush2.bf16.msra.mxu0 0
  %2062 = vmatprep.subr.bf16.mxu0 0
  %2063 = vmatpush2.bf16.msra.mxu0 0
  %2064 = vmatprep.subr.bf16.mxu0 0
  %2065 = vmatpush2.bf16.msra.mxu0 0
  %2066 = vmatprep.subr.bf16.mxu0 0
  %2067 = vmatpush2.bf16.msra.mxu0 0
  %2068 = vmatprep.subr.bf16.mxu0 0
  %2069 = vmatpush2.bf16.msra.mxu0 0
  %2070 = vmatprep.subr.bf16.mxu0 0
  %2071 = vmatpush2.bf16.msra.mxu0 0
  %2072 = vmatprep.subr.bf16.mxu0 0
  %2073 = vmatpush2.bf16.msra.mxu0 0
  %2074 = vmatprep.mubr.bf16.mxu0 0
  %2075 = vmatmul.mubr.bf16.gmra.mxu0 %v2040
  %v2076 = vpop.f32.mrf.mxu0
  %v2077 = vadd.f32 %v859, %v2076
  %v2078 = vpop.f32.mrf.mxu0
  %v2079 = vpop.f32.mrf.mxu0
  %v2080 = vpop.f32.mrf.mxu0
  %2081 = vdwg.mxu0
  %vm2082 = vcmp.gt.f32.partialorder %v2077, 0.0
  %v2083 = vmul.f32 %v2077, 0.01
  %v2084 = vsel %vm2082, %v2077, %v2083
  %v2085 = vpack.c.bf16 %v2084, %v2084
  %v2087 = vsel %vm933, %v2085, 0
  %2089 = vmatprep.subr.bf16.mxu0 0
  %2090 = vmatpush1.bf16.msra.mxu0 0
  %2091 = vmatprep.subr.bf16.mxu0 0
  %2092 = vmatpush1.bf16.msra.mxu0 0
  %2093 = vmatprep.subr.bf16.mxu0 0
  %2094 = vmatpush1.bf16.msra.mxu0 0
  %2095 = vmatprep.subr.bf16.mxu0 0
  %2096 = vmatpush1.bf16.msra.mxu0 0
  %2097 = vmatprep.subr.bf16.mxu0 0
  %2098 = vmatpush1.bf16.msra.mxu0 0
  %2099 = vmatprep.subr.bf16.mxu0 0
  %2100 = vmatpush1.bf16.msra.mxu0 0
  %2101 = vmatprep.subr.bf16.mxu0 0
  %2102 = vmatpush1.bf16.msra.mxu0 0
  %2103 = vmatprep.subr.bf16.mxu0 0
  %2104 = vmatpush1.bf16.msra.mxu0 %v931
  %2105 = vmatprep.subr.bf16.mxu0 0
  %2106 = vmatpush2.bf16.msra.mxu0 0
  %2107 = vmatprep.subr.bf16.mxu0 0
  %2108 = vmatpush2.bf16.msra.mxu0 0
  %2109 = vmatprep.subr.bf16.mxu0 0
  %2110 = vmatpush2.bf16.msra.mxu0 0
  %2111 = vmatprep.subr.bf16.mxu0 0
  %2112 = vmatpush2.bf16.msra.mxu0 0
  %2113 = vmatprep.subr.bf16.mxu0 0
  %2114 = vmatpush2.bf16.msra.mxu0 0
  %2115 = vmatprep.subr.bf16.mxu0 0
  %2116 = vmatpush2.bf16.msra.mxu0 0
  %2117 = vmatprep.subr.bf16.mxu0 0
  %2118 = vmatpush2.bf16.msra.mxu0 0
  %2119 = vmatprep.subr.bf16.mxu0 0
  %2120 = vmatpush2.bf16.msra.mxu0 0
  %2121 = vmatprep.mubr.bf16.mxu0 0
  %2122 = vmatmul.mubr.bf16.gmra.mxu0 %v2087
  %v2123 = vpop.f32.mrf.mxu0
  %v2124 = vadd.f32 %v925, %v2123
  %v2125 = vpop.f32.mrf.mxu0
  %v2126 = vpop.f32.mrf.mxu0
  %v2127 = vpop.f32.mrf.mxu0
  %2128 = vdwg.mxu0
  %vm2129 = vcmp.gt.f32.partialorder %v2124, 0.0
  %v2130 = vmul.f32 %v2124, 0.01
  %v2131 = vsel %vm2129, %v2124, %v2130
  %v2132 = vpack.c.bf16 %v2131, %v2131
  %s2133 = scalar_lea.vmem %s9, 12
  %v2134 = vld [vmem:[%s2133] sm:$0xf]
  %v2136 = vsel %vm1324, %v2132, 0
  %v2139 = vsel %vm1328, %v2134, 0
  %2141 = vmatprep.subr.bf16.mxu0 0
  %2142 = vmatpush1.bf16.msra.mxu0 0
  %2143 = vmatprep.subr.bf16.mxu0 0
  %2144 = vmatpush1.bf16.msra.mxu0 0
  %2145 = vmatprep.subr.bf16.mxu0 0
  %2146 = vmatpush1.bf16.msra.mxu0 0
  %2147 = vmatprep.subr.bf16.mxu0 0
  %2148 = vmatpush1.bf16.msra.mxu0 0
  %2149 = vmatprep.subr.bf16.mxu0 0
  %2150 = vmatpush1.bf16.msra.mxu0 0
  %2151 = vmatprep.subr.bf16.mxu0 0
  %2152 = vmatpush1.bf16.msra.mxu0 0
  %2153 = vmatprep.subr.bf16.mxu0 0
  %2154 = vmatpush1.bf16.msra.mxu0 0
  %2155 = vmatprep.subr.bf16.mxu0 0
  %2156 = vmatpush1.bf16.msra.mxu0 %v2139
  %2157 = vmatprep.subr.bf16.mxu0 0
  %2158 = vmatpush2.bf16.msra.mxu0 0
  %2159 = vmatprep.subr.bf16.mxu0 0
  %2160 = vmatpush2.bf16.msra.mxu0 0
  %2161 = vmatprep.subr.bf16.mxu0 0
  %2162 = vmatpush2.bf16.msra.mxu0 0
  %2163 = vmatprep.subr.bf16.mxu0 0
  %2164 = vmatpush2.bf16.msra.mxu0 0
  %2165 = vmatprep.subr.bf16.mxu0 0
  %2166 = vmatpush2.bf16.msra.mxu0 0
  %2167 = vmatprep.subr.bf16.mxu0 0
  %2168 = vmatpush2.bf16.msra.mxu0 0
  %2169 = vmatprep.subr.bf16.mxu0 0
  %2170 = vmatpush2.bf16.msra.mxu0 0
  %2171 = vmatprep.subr.bf16.mxu0 0
  %2172 = vmatpush2.bf16.msra.mxu0 0
  %2173 = vmatprep.mubr.bf16.mxu0 0
  %2174 = vmatmul.mubr.bf16.gmra.mxu0 %v2136
  %v2175 = vpop.f32.mrf.mxu0
  %v2176 = vadd.f32 0.0, %v2175
  %v2177 = vpop.f32.mrf.mxu0
  %v2178 = vpop.f32.mrf.mxu0
  %v2179 = vpop.f32.mrf.mxu0
  %2180 = vdwg.mxu0
  %v2181 = vadd.f32 %v1806, %v2176
  %2182 = vmatprep.subr.bf16.mxu0 0
  %2183 = vmatpush1.bf16.msra.mxu0 %v200
  %2184 = vmatprep.subr.bf16.mxu0 0
  %2185 = vmatpush1.bf16.msra.mxu0 %v199
  %2186 = vmatprep.subr.bf16.mxu0 0
  %2187 = vmatpush1.bf16.msra.mxu0 %v198
  %2188 = vmatprep.subr.bf16.mxu0 0
  %2189 = vmatpush1.bf16.msra.mxu0 %v197
  %2190 = vmatprep.subr.bf16.mxu0 0
  %2191 = vmatpush1.bf16.msra.mxu0 %v196
  %2192 = vmatprep.subr.bf16.mxu0 0
  %2193 = vmatpush1.bf16.msra.mxu0 %v195
  %2194 = vmatprep.subr.bf16.mxu0 0
  %2195 = vmatpush1.bf16.msra.mxu0 %v194
  %2196 = vmatprep.subr.bf16.mxu0 0
  %2197 = vmatpush1.bf16.msra.mxu0 %v193
  %2198 = vmatprep.subr.bf16.mxu0 0
  %2199 = vmatpush2.bf16.msra.mxu0 %v208
  %2200 = vmatprep.subr.bf16.mxu0 0
  %2201 = vmatpush2.bf16.msra.mxu0 %v207
  %2202 = vmatprep.subr.bf16.mxu0 0
  %2203 = vmatpush2.bf16.msra.mxu0 %v206
  %2204 = vmatprep.subr.bf16.mxu0 0
  %2205 = vmatpush2.bf16.msra.mxu0 %v205
  %2206 = vmatprep.subr.bf16.mxu0 0
  %2207 = vmatpush2.bf16.msra.mxu0 %v204
  %2208 = vmatprep.subr.bf16.mxu0 0
  %2209 = vmatpush2.bf16.msra.mxu0 %v203
  %2210 = vmatprep.subr.bf16.mxu0 0
  %2211 = vmatpush2.bf16.msra.mxu0 %v202
  %2212 = vmatprep.subr.bf16.mxu0 0
  %2213 = vmatpush2.bf16.msra.mxu0 %v201
  %2214 = vmatprep.mubr.bf16.mxu0 %v1132
  %2215 = vmatmul.mubr.bf16.gmra.mxu0 %v1131
  %v2216 = vpop.f32.mrf.mxu0
  %v2217 = vadd.f32 0.0, %v2216
  %v2218 = vpop.f32.mrf.mxu0
  %v2219 = vpop.f32.mrf.mxu0
  %v2220 = vpop.f32.mrf.mxu0
  %2221 = vdwg.mxu0
  %2222 = vmatprep.subr.bf16.mxu0 0
  %2223 = vmatpush1.bf16.msra.mxu0 %v343
  %2224 = vmatprep.subr.bf16.mxu0 0
  %2225 = vmatpush1.bf16.msra.mxu0 %v342
  %2226 = vmatprep.subr.bf16.mxu0 0
  %2227 = vmatpush1.bf16.msra.mxu0 %v341
  %2228 = vmatprep.subr.bf16.mxu0 0
  %2229 = vmatpush1.bf16.msra.mxu0 %v340
  %2230 = vmatprep.subr.bf16.mxu0 0
  %2231 = vmatpush1.bf16.msra.mxu0 %v339
  %2232 = vmatprep.subr.bf16.mxu0 0
  %2233 = vmatpush1.bf16.msra.mxu0 %v338
  %2234 = vmatprep.subr.bf16.mxu0 0
  %2235 = vmatpush1.bf16.msra.mxu0 %v337
  %2236 = vmatprep.subr.bf16.mxu0 0
  %2237 = vmatpush1.bf16.msra.mxu0 %v336
  %2238 = vmatprep.subr.bf16.mxu0 0
  %2239 = vmatpush2.bf16.msra.mxu0 %v351
  %2240 = vmatprep.subr.bf16.mxu0 0
  %2241 = vmatpush2.bf16.msra.mxu0 %v350
  %2242 = vmatprep.subr.bf16.mxu0 0
  %2243 = vmatpush2.bf16.msra.mxu0 %v349
  %2244 = vmatprep.subr.bf16.mxu0 0
  %2245 = vmatpush2.bf16.msra.mxu0 %v348
  %2246 = vmatprep.subr.bf16.mxu0 0
  %2247 = vmatpush2.bf16.msra.mxu0 %v347
  %2248 = vmatprep.subr.bf16.mxu0 0
  %2249 = vmatpush2.bf16.msra.mxu0 %v346
  %2250 = vmatprep.subr.bf16.mxu0 0
  %2251 = vmatpush2.bf16.msra.mxu0 %v345
  %2252 = vmatprep.subr.bf16.mxu0 0
  %2253 = vmatpush2.bf16.msra.mxu0 %v344
  %2254 = vmatprep.mubr.bf16.mxu0 %v1083
  %2255 = vmatmul.mubr.bf16.gmra.mxu0 %v1082
  %v2256 = vpop.f32.mrf.mxu0
  %v2257 = vadd.f32 %v2217, %v2256
  %v2258 = vpop.f32.mrf.mxu0
  %v2259 = vpop.f32.mrf.mxu0
  %v2260 = vpop.f32.mrf.mxu0
  %2261 = vdwg.mxu0
  %v2262 = vld [vmem:[%s1887 + $0x4] sm:$0xff]
  %v2264 = vunpack.c.l.b16 %v2262
  %v2265 = vunpack.c.h.b16 %v2262
  %v2266 = vpack.c.b16 %v2264, %v2264
  %v2267 = vpack.c.b16 %v2265, %v2265
  %2270 = vmatprep.subr.bf16.mxu0 0
  %2271 = vmatpush1.bf16.msra.mxu0 %v521
  %2272 = vmatprep.subr.bf16.mxu0 0
  %2273 = vmatpush1.bf16.msra.mxu0 %v520
  %2274 = vmatprep.subr.bf16.mxu0 0
  %2275 = vmatpush1.bf16.msra.mxu0 %v519
  %2276 = vmatprep.subr.bf16.mxu0 0
  %2277 = vmatpush1.bf16.msra.mxu0 %v518
  %2278 = vmatprep.subr.bf16.mxu0 0
  %2279 = vmatpush1.bf16.msra.mxu0 %v517
  %2280 = vmatprep.subr.bf16.mxu0 0
  %2281 = vmatpush1.bf16.msra.mxu0 %v516
  %2282 = vmatprep.subr.bf16.mxu0 0
  %2283 = vmatpush1.bf16.msra.mxu0 %v515
  %2284 = vmatprep.subr.bf16.mxu0 0
  %2285 = vmatpush1.bf16.msra.mxu0 %v514
  %2286 = vmatprep.subr.bf16.mxu0 0
  %2287 = vmatpush2.bf16.msra.mxu0 %v529
  %2288 = vmatprep.subr.bf16.mxu0 0
  %2289 = vmatpush2.bf16.msra.mxu0 %v528
  %2290 = vmatprep.subr.bf16.mxu0 0
  %2291 = vmatpush2.bf16.msra.mxu0 %v527
  %2292 = vmatprep.subr.bf16.mxu0 0
  %2293 = vmatpush2.bf16.msra.mxu0 %v526
  %2294 = vmatprep.subr.bf16.mxu0 0
  %2295 = vmatpush2.bf16.msra.mxu0 %v525
  %2296 = vmatprep.subr.bf16.mxu0 0
  %2297 = vmatpush2.bf16.msra.mxu0 %v524
  %2298 = vmatprep.subr.bf16.mxu0 0
  %2299 = vmatpush2.bf16.msra.mxu0 %v523
  %2300 = vmatprep.subr.bf16.mxu0 0
  %2301 = vmatpush2.bf16.msra.mxu0 %v522
  %2302 = vmatprep.mubr.bf16.mxu0 %v2267
  %2303 = vmatmul.mubr.bf16.gmra.mxu0 %v2266
  %v2304 = vpop.f32.mrf.mxu0
  %v2305 = vadd.f32 0.0, %v2304
  %v2306 = vpop.f32.mrf.mxu0
  %v2307 = vpop.f32.mrf.mxu0
  %v2308 = vpop.f32.mrf.mxu0
  %2309 = vdwg.mxu0
  %v2310 = vadd.f32 %v2257, %v2305
  %v2311 = vld [vmem:[%s1937 + $0x4] sm:$0xff]
  %v2313 = vunpack.c.l.b16 %v2311
  %v2314 = vunpack.c.h.b16 %v2311
  %v2315 = vpack.c.b16 %v2313, %v2313
  %v2316 = vpack.c.b16 %v2314, %v2314
  %2319 = vmatprep.subr.bf16.mxu0 0
  %2320 = vmatpush1.bf16.msra.mxu0 %v700
  %2321 = vmatprep.subr.bf16.mxu0 0
  %2322 = vmatpush1.bf16.msra.mxu0 %v699
  %2323 = vmatprep.subr.bf16.mxu0 0
  %2324 = vmatpush1.bf16.msra.mxu0 %v698
  %2325 = vmatprep.subr.bf16.mxu0 0
  %2326 = vmatpush1.bf16.msra.mxu0 %v697
  %2327 = vmatprep.subr.bf16.mxu0 0
  %2328 = vmatpush1.bf16.msra.mxu0 %v696
  %2329 = vmatprep.subr.bf16.mxu0 0
  %2330 = vmatpush1.bf16.msra.mxu0 %v695
  %2331 = vmatprep.subr.bf16.mxu0 0
  %2332 = vmatpush1.bf16.msra.mxu0 %v694
  %2333 = vmatprep.subr.bf16.mxu0 0
  %2334 = vmatpush1.bf16.msra.mxu0 %v693
  %2335 = vmatprep.subr.bf16.mxu0 0
  %2336 = vmatpush2.bf16.msra.mxu0 %v708
  %2337 = vmatprep.subr.bf16.mxu0 0
  %2338 = vmatpush2.bf16.msra.mxu0 %v707
  %2339 = vmatprep.subr.bf16.mxu0 0
  %2340 = vmatpush2.bf16.msra.mxu0 %v706
  %2341 = vmatprep.subr.bf16.mxu0 0
  %2342 = vmatpush2.bf16.msra.mxu0 %v705
  %2343 = vmatprep.subr.bf16.mxu0 0
  %2344 = vmatpush2.bf16.msra.mxu0 %v704
  %2345 = vmatprep.subr.bf16.mxu0 0
  %2346 = vmatpush2.bf16.msra.mxu0 %v703
  %2347 = vmatprep.subr.bf16.mxu0 0
  %2348 = vmatpush2.bf16.msra.mxu0 %v702
  %2349 = vmatprep.subr.bf16.mxu0 0
  %2350 = vmatpush2.bf16.msra.mxu0 %v701
  %2351 = vmatprep.mubr.bf16.mxu0 %v2316
  %2352 = vmatmul.mubr.bf16.gmra.mxu0 %v2315
  %v2353 = vpop.f32.mrf.mxu0
  %v2354 = vadd.f32 0.0, %v2353
  %v2355 = vpop.f32.mrf.mxu0
  %v2356 = vpop.f32.mrf.mxu0
  %v2357 = vpop.f32.mrf.mxu0
  %2358 = vdwg.mxu0
  %v2359 = vadd.f32 %v2310, %v2354
  %v2360 = vadd.f32 %v2359, %v770
  %vm2361 = vcmp.gt.f32.partialorder %v2360, 0.0
  %v2362 = vmul.f32 %v2360, 0.01
  %v2363 = vsel %vm2361, %v2360, %v2362
  %v2364 = vpack.c.bf16 %v2363, %v2363
  %v2366 = vsel %vm807, %v2364, 0
  %2368 = vmatprep.subr.bf16.mxu0 0
  %2369 = vmatpush1.bf16.msra.mxu0 0
  %2370 = vmatprep.subr.bf16.mxu0 0
  %2371 = vmatpush1.bf16.msra.mxu0 0
  %2372 = vmatprep.subr.bf16.mxu0 0
  %2373 = vmatpush1.bf16.msra.mxu0 0
  %2374 = vmatprep.subr.bf16.mxu0 0
  %2375 = vmatpush1.bf16.msra.mxu0 0
  %2376 = vmatprep.subr.bf16.mxu0 0
  %2377 = vmatpush1.bf16.msra.mxu0 %v802
  %2378 = vmatprep.subr.bf16.mxu0 0
  %2379 = vmatpush1.bf16.msra.mxu0 %v801
  %2380 = vmatprep.subr.bf16.mxu0 0
  %2381 = vmatpush1.bf16.msra.mxu0 %v800
  %2382 = vmatprep.subr.bf16.mxu0 0
  %2383 = vmatpush1.bf16.msra.mxu0 %v799
  %2384 = vmatprep.subr.bf16.mxu0 0
  %2385 = vmatpush2.bf16.msra.mxu0 0
  %2386 = vmatprep.subr.bf16.mxu0 0
  %2387 = vmatpush2.bf16.msra.mxu0 0
  %2388 = vmatprep.subr.bf16.mxu0 0
  %2389 = vmatpush2.bf16.msra.mxu0 0
  %2390 = vmatprep.subr.bf16.mxu0 0
  %2391 = vmatpush2.bf16.msra.mxu0 0
  %2392 = vmatprep.subr.bf16.mxu0 0
  %2393 = vmatpush2.bf16.msra.mxu0 0
  %2394 = vmatprep.subr.bf16.mxu0 0
  %2395 = vmatpush2.bf16.msra.mxu0 0
  %2396 = vmatprep.subr.bf16.mxu0 0
  %2397 = vmatpush2.bf16.msra.mxu0 0
  %2398 = vmatprep.subr.bf16.mxu0 0
  %2399 = vmatpush2.bf16.msra.mxu0 0
  %2400 = vmatprep.mubr.bf16.mxu0 0
  %2401 = vmatmul.mubr.bf16.gmra.mxu0 %v2366
  %v2402 = vpop.f32.mrf.mxu0
  %v2403 = vadd.f32 %v781, %v2402
  %v2404 = vpop.f32.mrf.mxu0
  %v2405 = vpop.f32.mrf.mxu0
  %v2406 = vpop.f32.mrf.mxu0
  %2407 = vdwg.mxu0
  %vm2408 = vcmp.gt.f32.partialorder %v2403, 0.0
  %v2409 = vmul.f32 %v2403, 0.01
  %v2410 = vsel %vm2408, %v2403, %v2409
  %v2411 = vpack.c.bf16 %v2410, %v2410
  %v2413 = vsel %vm873, %v2411, 0
  %2415 = vmatprep.subr.bf16.mxu0 0
  %2416 = vmatpush1.bf16.msra.mxu0 0
  %2417 = vmatprep.subr.bf16.mxu0 0
  %2418 = vmatpush1.bf16.msra.mxu0 0
  %2419 = vmatprep.subr.bf16.mxu0 0
  %2420 = vmatpush1.bf16.msra.mxu0 0
  %2421 = vmatprep.subr.bf16.mxu0 0
  %2422 = vmatpush1.bf16.msra.mxu0 0
  %2423 = vmatprep.subr.bf16.mxu0 0
  %2424 = vmatpush1.bf16.msra.mxu0 0
  %2425 = vmatprep.subr.bf16.mxu0 0
  %2426 = vmatpush1.bf16.msra.mxu0 0
  %2427 = vmatprep.subr.bf16.mxu0 0
  %2428 = vmatpush1.bf16.msra.mxu0 %v870
  %2429 = vmatprep.subr.bf16.mxu0 0
  %2430 = vmatpush1.bf16.msra.mxu0 %v869
  %2431 = vmatprep.subr.bf16.mxu0 0
  %2432 = vmatpush2.bf16.msra.mxu0 0
  %2433 = vmatprep.subr.bf16.mxu0 0
  %2434 = vmatpush2.bf16.msra.mxu0 0
  %2435 = vmatprep.subr.bf16.mxu0 0
  %2436 = vmatpush2.bf16.msra.mxu0 0
  %2437 = vmatprep.subr.bf16.mxu0 0
  %2438 = vmatpush2.bf16.msra.mxu0 0
  %2439 = vmatprep.subr.bf16.mxu0 0
  %2440 = vmatpush2.bf16.msra.mxu0 0
  %2441 = vmatprep.subr.bf16.mxu0 0
  %2442 = vmatpush2.bf16.msra.mxu0 0
  %2443 = vmatprep.subr.bf16.mxu0 0
  %2444 = vmatpush2.bf16.msra.mxu0 0
  %2445 = vmatprep.subr.bf16.mxu0 0
  %2446 = vmatpush2.bf16.msra.mxu0 0
  %2447 = vmatprep.mubr.bf16.mxu0 0
  %2448 = vmatmul.mubr.bf16.gmra.mxu0 %v2413
  %v2449 = vpop.f32.mrf.mxu0
  %v2450 = vadd.f32 %v859, %v2449
  %v2451 = vpop.f32.mrf.mxu0
  %v2452 = vpop.f32.mrf.mxu0
  %v2453 = vpop.f32.mrf.mxu0
  %2454 = vdwg.mxu0
  %vm2455 = vcmp.gt.f32.partialorder %v2450, 0.0
  %v2456 = vmul.f32 %v2450, 0.01
  %v2457 = vsel %vm2455, %v2450, %v2456
  %v2458 = vpack.c.bf16 %v2457, %v2457
  %v2460 = vsel %vm933, %v2458, 0
  %2462 = vmatprep.subr.bf16.mxu0 0
  %2463 = vmatpush1.bf16.msra.mxu0 0
  %2464 = vmatprep.subr.bf16.mxu0 0
  %2465 = vmatpush1.bf16.msra.mxu0 0
  %2466 = vmatprep.subr.bf16.mxu0 0
  %2467 = vmatpush1.bf16.msra.mxu0 0
  %2468 = vmatprep.subr.bf16.mxu0 0
  %2469 = vmatpush1.bf16.msra.mxu0 0
  %2470 = vmatprep.subr.bf16.mxu0 0
  %2471 = vmatpush1.bf16.msra.mxu0 0
  %2472 = vmatprep.subr.bf16.mxu0 0
  %2473 = vmatpush1.bf16.msra.mxu0 0
  %2474 = vmatprep.subr.bf16.mxu0 0
  %2475 = vmatpush1.bf16.msra.mxu0 0
  %2476 = vmatprep.subr.bf16.mxu0 0
  %2477 = vmatpush1.bf16.msra.mxu0 %v931
  %2478 = vmatprep.subr.bf16.mxu0 0
  %2479 = vmatpush2.bf16.msra.mxu0 0
  %2480 = vmatprep.subr.bf16.mxu0 0
  %2481 = vmatpush2.bf16.msra.mxu0 0
  %2482 = vmatprep.subr.bf16.mxu0 0
  %2483 = vmatpush2.bf16.msra.mxu0 0
  %2484 = vmatprep.subr.bf16.mxu0 0
  %2485 = vmatpush2.bf16.msra.mxu0 0
  %2486 = vmatprep.subr.bf16.mxu0 0
  %2487 = vmatpush2.bf16.msra.mxu0 0
  %2488 = vmatprep.subr.bf16.mxu0 0
  %2489 = vmatpush2.bf16.msra.mxu0 0
  %2490 = vmatprep.subr.bf16.mxu0 0
  %2491 = vmatpush2.bf16.msra.mxu0 0
  %2492 = vmatprep.subr.bf16.mxu0 0
  %2493 = vmatpush2.bf16.msra.mxu0 0
  %2494 = vmatprep.mubr.bf16.mxu0 0
  %2495 = vmatmul.mubr.bf16.gmra.mxu0 %v2460
  %v2496 = vpop.f32.mrf.mxu0
  %v2497 = vadd.f32 %v925, %v2496
  %v2498 = vpop.f32.mrf.mxu0
  %v2499 = vpop.f32.mrf.mxu0
  %v2500 = vpop.f32.mrf.mxu0
  %2501 = vdwg.mxu0
  %vm2502 = vcmp.gt.f32.partialorder %v2497, 0.0
  %v2503 = vmul.f32 %v2497, 0.01
  %v2504 = vsel %vm2502, %v2497, %v2503
  %v2505 = vpack.c.bf16 %v2504, %v2504
  %s2506 = scalar_lea.vmem %s9, 16
  %v2507 = vld [vmem:[%s2506] sm:$0xf]
  %v2509 = vsel %vm1324, %v2505, 0
  %v2512 = vsel %vm1328, %v2507, 0
  %2514 = vmatprep.subr.bf16.mxu0 0
  %2515 = vmatpush1.bf16.msra.mxu0 0
  %2516 = vmatprep.subr.bf16.mxu0 0
  %2517 = vmatpush1.bf16.msra.mxu0 0
  %2518 = vmatprep.subr.bf16.mxu0 0
  %2519 = vmatpush1.bf16.msra.mxu0 0
  %2520 = vmatprep.subr.bf16.mxu0 0
  %2521 = vmatpush1.bf16.msra.mxu0 0
  %2522 = vmatprep.subr.bf16.mxu0 0
  %2523 = vmatpush1.bf16.msra.mxu0 0
  %2524 = vmatprep.subr.bf16.mxu0 0
  %2525 = vmatpush1.bf16.msra.mxu0 0
  %2526 = vmatprep.subr.bf16.mxu0 0
  %2527 = vmatpush1.bf16.msra.mxu0 0
  %2528 = vmatprep.subr.bf16.mxu0 0
  %2529 = vmatpush1.bf16.msra.mxu0 %v2512
  %2530 = vmatprep.subr.bf16.mxu0 0
  %2531 = vmatpush2.bf16.msra.mxu0 0
  %2532 = vmatprep.subr.bf16.mxu0 0
  %2533 = vmatpush2.bf16.msra.mxu0 0
  %2534 = vmatprep.subr.bf16.mxu0 0
  %2535 = vmatpush2.bf16.msra.mxu0 0
  %2536 = vmatprep.subr.bf16.mxu0 0
  %2537 = vmatpush2.bf16.msra.mxu0 0
  %2538 = vmatprep.subr.bf16.mxu0 0
  %2539 = vmatpush2.bf16.msra.mxu0 0
  %2540 = vmatprep.subr.bf16.mxu0 0
  %2541 = vmatpush2.bf16.msra.mxu0 0
  %2542 = vmatprep.subr.bf16.mxu0 0
  %2543 = vmatpush2.bf16.msra.mxu0 0
  %2544 = vmatprep.subr.bf16.mxu0 0
  %2545 = vmatpush2.bf16.msra.mxu0 0
  %2546 = vmatprep.mubr.bf16.mxu0 0
  %2547 = vmatmul.mubr.bf16.gmra.mxu0 %v2509
  %v2548 = vpop.f32.mrf.mxu0
  %v2549 = vadd.f32 0.0, %v2548
  %v2550 = vpop.f32.mrf.mxu0
  %v2551 = vpop.f32.mrf.mxu0
  %v2552 = vpop.f32.mrf.mxu0
  %2553 = vdwg.mxu0
  %v2554 = vadd.f32 %v2181, %v2549
  %2555 = vmatprep.subr.bf16.mxu0 0
  %2556 = vmatpush1.bf16.msra.mxu0 %v200
  %2557 = vmatprep.subr.bf16.mxu0 0
  %2558 = vmatpush1.bf16.msra.mxu0 %v199
  %2559 = vmatprep.subr.bf16.mxu0 0
  %2560 = vmatpush1.bf16.msra.mxu0 %v198
  %2561 = vmatprep.subr.bf16.mxu0 0
  %2562 = vmatpush1.bf16.msra.mxu0 %v197
  %2563 = vmatprep.subr.bf16.mxu0 0
  %2564 = vmatpush1.bf16.msra.mxu0 %v196
  %2565 = vmatprep.subr.bf16.mxu0 0
  %2566 = vmatpush1.bf16.msra.mxu0 %v195
  %2567 = vmatprep.subr.bf16.mxu0 0
  %2568 = vmatpush1.bf16.msra.mxu0 %v194
  %2569 = vmatprep.subr.bf16.mxu0 0
  %2570 = vmatpush1.bf16.msra.mxu0 %v193
  %2571 = vmatprep.subr.bf16.mxu0 0
  %2572 = vmatpush2.bf16.msra.mxu0 %v208
  %2573 = vmatprep.subr.bf16.mxu0 0
  %2574 = vmatpush2.bf16.msra.mxu0 %v207
  %2575 = vmatprep.subr.bf16.mxu0 0
  %2576 = vmatpush2.bf16.msra.mxu0 %v206
  %2577 = vmatprep.subr.bf16.mxu0 0
  %2578 = vmatpush2.bf16.msra.mxu0 %v205
  %2579 = vmatprep.subr.bf16.mxu0 0
  %2580 = vmatpush2.bf16.msra.mxu0 %v204
  %2581 = vmatprep.subr.bf16.mxu0 0
  %2582 = vmatpush2.bf16.msra.mxu0 %v203
  %2583 = vmatprep.subr.bf16.mxu0 0
  %2584 = vmatpush2.bf16.msra.mxu0 %v202
  %2585 = vmatprep.subr.bf16.mxu0 0
  %2586 = vmatpush2.bf16.msra.mxu0 %v201
  %2587 = vmatprep.mubr.bf16.mxu0 %v1568
  %2588 = vmatmul.mubr.bf16.gmra.mxu0 %v1567
  %v2589 = vpop.f32.mrf.mxu0
  %v2590 = vadd.f32 0.0, %v2589
  %v2591 = vpop.f32.mrf.mxu0
  %v2592 = vpop.f32.mrf.mxu0
  %v2593 = vpop.f32.mrf.mxu0
  %2594 = vdwg.mxu0
  %2595 = vmatprep.subr.bf16.mxu0 0
  %2596 = vmatpush1.bf16.msra.mxu0 %v343
  %2597 = vmatprep.subr.bf16.mxu0 0
  %2598 = vmatpush1.bf16.msra.mxu0 %v342
  %2599 = vmatprep.subr.bf16.mxu0 0
  %2600 = vmatpush1.bf16.msra.mxu0 %v341
  %2601 = vmatprep.subr.bf16.mxu0 0
  %2602 = vmatpush1.bf16.msra.mxu0 %v340
  %2603 = vmatprep.subr.bf16.mxu0 0
  %2604 = vmatpush1.bf16.msra.mxu0 %v339
  %2605 = vmatprep.subr.bf16.mxu0 0
  %2606 = vmatpush1.bf16.msra.mxu0 %v338
  %2607 = vmatprep.subr.bf16.mxu0 0
  %2608 = vmatpush1.bf16.msra.mxu0 %v337
  %2609 = vmatprep.subr.bf16.mxu0 0
  %2610 = vmatpush1.bf16.msra.mxu0 %v336
  %2611 = vmatprep.subr.bf16.mxu0 0
  %2612 = vmatpush2.bf16.msra.mxu0 %v351
  %2613 = vmatprep.subr.bf16.mxu0 0
  %2614 = vmatpush2.bf16.msra.mxu0 %v350
  %2615 = vmatprep.subr.bf16.mxu0 0
  %2616 = vmatpush2.bf16.msra.mxu0 %v349
  %2617 = vmatprep.subr.bf16.mxu0 0
  %2618 = vmatpush2.bf16.msra.mxu0 %v348
  %2619 = vmatprep.subr.bf16.mxu0 0
  %2620 = vmatpush2.bf16.msra.mxu0 %v347
  %2621 = vmatprep.subr.bf16.mxu0 0
  %2622 = vmatpush2.bf16.msra.mxu0 %v346
  %2623 = vmatprep.subr.bf16.mxu0 0
  %2624 = vmatpush2.bf16.msra.mxu0 %v345
  %2625 = vmatprep.subr.bf16.mxu0 0
  %2626 = vmatpush2.bf16.msra.mxu0 %v344
  %2627 = vmatprep.mubr.bf16.mxu0 %v1519
  %2628 = vmatmul.mubr.bf16.gmra.mxu0 %v1518
  %v2629 = vpop.f32.mrf.mxu0
  %v2630 = vadd.f32 %v2590, %v2629
  %v2631 = vpop.f32.mrf.mxu0
  %v2632 = vpop.f32.mrf.mxu0
  %v2633 = vpop.f32.mrf.mxu0
  %2634 = vdwg.mxu0
  %v2635 = vld [vmem:[%s1887 + $0x8] sm:$0xff]
  %v2637 = vunpack.c.l.b16 %v2635
  %v2638 = vunpack.c.h.b16 %v2635
  %v2639 = vpack.c.b16 %v2637, %v2637
  %v2640 = vpack.c.b16 %v2638, %v2638
  %2643 = vmatprep.subr.bf16.mxu0 0
  %2644 = vmatpush1.bf16.msra.mxu0 %v521
  %2645 = vmatprep.subr.bf16.mxu0 0
  %2646 = vmatpush1.bf16.msra.mxu0 %v520
  %2647 = vmatprep.subr.bf16.mxu0 0
  %2648 = vmatpush1.bf16.msra.mxu0 %v519
  %2649 = vmatprep.subr.bf16.mxu0 0
  %2650 = vmatpush1.bf16.msra.mxu0 %v518
  %2651 = vmatprep.subr.bf16.mxu0 0
  %2652 = vmatpush1.bf16.msra.mxu0 %v517
  %2653 = vmatprep.subr.bf16.mxu0 0
  %2654 = vmatpush1.bf16.msra.mxu0 %v516
  %2655 = vmatprep.subr.bf16.mxu0 0
  %2656 = vmatpush1.bf16.msra.mxu0 %v515
  %2657 = vmatprep.subr.bf16.mxu0 0
  %2658 = vmatpush1.bf16.msra.mxu0 %v514
  %2659 = vmatprep.subr.bf16.mxu0 0
  %2660 = vmatpush2.bf16.msra.mxu0 %v529
  %2661 = vmatprep.subr.bf16.mxu0 0
  %2662 = vmatpush2.bf16.msra.mxu0 %v528
  %2663 = vmatprep.subr.bf16.mxu0 0
  %2664 = vmatpush2.bf16.msra.mxu0 %v527
  %2665 = vmatprep.subr.bf16.mxu0 0
  %2666 = vmatpush2.bf16.msra.mxu0 %v526
  %2667 = vmatprep.subr.bf16.mxu0 0
  %2668 = vmatpush2.bf16.msra.mxu0 %v525
  %2669 = vmatprep.subr.bf16.mxu0 0
  %2670 = vmatpush2.bf16.msra.mxu0 %v524
  %2671 = vmatprep.subr.bf16.mxu0 0
  %2672 = vmatpush2.bf16.msra.mxu0 %v523
  %2673 = vmatprep.subr.bf16.mxu0 0
  %2674 = vmatpush2.bf16.msra.mxu0 %v522
  %2675 = vmatprep.mubr.bf16.mxu0 %v2640
  %2676 = vmatmul.mubr.bf16.gmra.mxu0 %v2639
  %v2677 = vpop.f32.mrf.mxu0
  %v2678 = vadd.f32 0.0, %v2677
  %v2679 = vpop.f32.mrf.mxu0
  %v2680 = vpop.f32.mrf.mxu0
  %v2681 = vpop.f32.mrf.mxu0
  %2682 = vdwg.mxu0
  %v2683 = vadd.f32 %v2630, %v2678
  %v2684 = vld [vmem:[%s1937 + $0x8] sm:$0xff]
  %v2686 = vunpack.c.l.b16 %v2684
  %v2687 = vunpack.c.h.b16 %v2684
  %v2688 = vpack.c.b16 %v2686, %v2686
  %v2689 = vpack.c.b16 %v2687, %v2687
  %2692 = vmatprep.subr.bf16.mxu0 0
  %2693 = vmatpush1.bf16.msra.mxu0 %v700
  %2694 = vmatprep.subr.bf16.mxu0 0
  %2695 = vmatpush1.bf16.msra.mxu0 %v699
  %2696 = vmatprep.subr.bf16.mxu0 0
  %2697 = vmatpush1.bf16.msra.mxu0 %v698
  %2698 = vmatprep.subr.bf16.mxu0 0
  %2699 = vmatpush1.bf16.msra.mxu0 %v697
  %2700 = vmatprep.subr.bf16.mxu0 0
  %2701 = vmatpush1.bf16.msra.mxu0 %v696
  %2702 = vmatprep.subr.bf16.mxu0 0
  %2703 = vmatpush1.bf16.msra.mxu0 %v695
  %2704 = vmatprep.subr.bf16.mxu0 0
  %2705 = vmatpush1.bf16.msra.mxu0 %v694
  %2706 = vmatprep.subr.bf16.mxu0 0
  %2707 = vmatpush1.bf16.msra.mxu0 %v693
  %2708 = vmatprep.subr.bf16.mxu0 0
  %2709 = vmatpush2.bf16.msra.mxu0 %v708
  %2710 = vmatprep.subr.bf16.mxu0 0
  %2711 = vmatpush2.bf16.msra.mxu0 %v707
  %2712 = vmatprep.subr.bf16.mxu0 0
  %2713 = vmatpush2.bf16.msra.mxu0 %v706
  %2714 = vmatprep.subr.bf16.mxu0 0
  %2715 = vmatpush2.bf16.msra.mxu0 %v705
  %2716 = vmatprep.subr.bf16.mxu0 0
  %2717 = vmatpush2.bf16.msra.mxu0 %v704
  %2718 = vmatprep.subr.bf16.mxu0 0
  %2719 = vmatpush2.bf16.msra.mxu0 %v703
  %2720 = vmatprep.subr.bf16.mxu0 0
  %2721 = vmatpush2.bf16.msra.mxu0 %v702
  %2722 = vmatprep.subr.bf16.mxu0 0
  %2723 = vmatpush2.bf16.msra.mxu0 %v701
  %2724 = vmatprep.mubr.bf16.mxu0 %v2689
  %2725 = vmatmul.mubr.bf16.gmra.mxu0 %v2688
  %v2726 = vpop.f32.mrf.mxu0
  %v2727 = vadd.f32 0.0, %v2726
  %v2728 = vpop.f32.mrf.mxu0
  %v2729 = vpop.f32.mrf.mxu0
  %v2730 = vpop.f32.mrf.mxu0
  %2731 = vdwg.mxu0
  %v2732 = vadd.f32 %v2683, %v2727
  %v2733 = vadd.f32 %v2732, %v770
  %vm2734 = vcmp.gt.f32.partialorder %v2733, 0.0
  %v2735 = vmul.f32 %v2733, 0.01
  %v2736 = vsel %vm2734, %v2733, %v2735
  %v2737 = vpack.c.bf16 %v2736, %v2736
  %v2739 = vsel %vm807, %v2737, 0
  %2741 = vmatprep.subr.bf16.mxu0 0
  %2742 = vmatpush1.bf16.msra.mxu0 0
  %2743 = vmatprep.subr.bf16.mxu0 0
  %2744 = vmatpush1.bf16.msra.mxu0 0
  %2745 = vmatprep.subr.bf16.mxu0 0
  %2746 = vmatpush1.bf16.msra.mxu0 0
  %2747 = vmatprep.subr.bf16.mxu0 0
  %2748 = vmatpush1.bf16.msra.mxu0 0
  %2749 = vmatprep.subr.bf16.mxu0 0
  %2750 = vmatpush1.bf16.msra.mxu0 %v802
  %2751 = vmatprep.subr.bf16.mxu0 0
  %2752 = vmatpush1.bf16.msra.mxu0 %v801
  %2753 = vmatprep.subr.bf16.mxu0 0
  %2754 = vmatpush1.bf16.msra.mxu0 %v800
  %2755 = vmatprep.subr.bf16.mxu0 0
  %2756 = vmatpush1.bf16.msra.mxu0 %v799
  %2757 = vmatprep.subr.bf16.mxu0 0
  %2758 = vmatpush2.bf16.msra.mxu0 0
  %2759 = vmatprep.subr.bf16.mxu0 0
  %2760 = vmatpush2.bf16.msra.mxu0 0
  %2761 = vmatprep.subr.bf16.mxu0 0
  %2762 = vmatpush2.bf16.msra.mxu0 0
  %2763 = vmatprep.subr.bf16.mxu0 0
  %2764 = vmatpush2.bf16.msra.mxu0 0
  %2765 = vmatprep.subr.bf16.mxu0 0
  %2766 = vmatpush2.bf16.msra.mxu0 0
  %2767 = vmatprep.subr.bf16.mxu0 0
  %2768 = vmatpush2.bf16.msra.mxu0 0
  %2769 = vmatprep.subr.bf16.mxu0 0
  %2770 = vmatpush2.bf16.msra.mxu0 0
  %2771 = vmatprep.subr.bf16.mxu0 0
  %2772 = vmatpush2.bf16.msra.mxu0 0
  %2773 = vmatprep.mubr.bf16.mxu0 0
  %2774 = vmatmul.mubr.bf16.gmra.mxu0 %v2739
  %v2775 = vpop.f32.mrf.mxu0
  %v2776 = vadd.f32 %v781, %v2775
  %v2777 = vpop.f32.mrf.mxu0
  %v2778 = vpop.f32.mrf.mxu0
  %v2779 = vpop.f32.mrf.mxu0
  %2780 = vdwg.mxu0
  %vm2781 = vcmp.gt.f32.partialorder %v2776, 0.0
  %v2782 = vmul.f32 %v2776, 0.01
  %v2783 = vsel %vm2781, %v2776, %v2782
  %v2784 = vpack.c.bf16 %v2783, %v2783
  %v2786 = vsel %vm873, %v2784, 0
  %2788 = vmatprep.subr.bf16.mxu0 0
  %2789 = vmatpush1.bf16.msra.mxu0 0
  %2790 = vmatprep.subr.bf16.mxu0 0
  %2791 = vmatpush1.bf16.msra.mxu0 0
  %2792 = vmatprep.subr.bf16.mxu0 0
  %2793 = vmatpush1.bf16.msra.mxu0 0
  %2794 = vmatprep.subr.bf16.mxu0 0
  %2795 = vmatpush1.bf16.msra.mxu0 0
  %2796 = vmatprep.subr.bf16.mxu0 0
  %2797 = vmatpush1.bf16.msra.mxu0 0
  %2798 = vmatprep.subr.bf16.mxu0 0
  %2799 = vmatpush1.bf16.msra.mxu0 0
  %2800 = vmatprep.subr.bf16.mxu0 0
  %2801 = vmatpush1.bf16.msra.mxu0 %v870
  %2802 = vmatprep.subr.bf16.mxu0 0
  %2803 = vmatpush1.bf16.msra.mxu0 %v869
  %2804 = vmatprep.subr.bf16.mxu0 0
  %2805 = vmatpush2.bf16.msra.mxu0 0
  %2806 = vmatprep.subr.bf16.mxu0 0
  %2807 = vmatpush2.bf16.msra.mxu0 0
  %2808 = vmatprep.subr.bf16.mxu0 0
  %2809 = vmatpush2.bf16.msra.mxu0 0
  %2810 = vmatprep.subr.bf16.mxu0 0
  %2811 = vmatpush2.bf16.msra.mxu0 0
  %2812 = vmatprep.subr.bf16.mxu0 0
  %2813 = vmatpush2.bf16.msra.mxu0 0
  %2814 = vmatprep.subr.bf16.mxu0 0
  %2815 = vmatpush2.bf16.msra.mxu0 0
  %2816 = vmatprep.subr.bf16.mxu0 0
  %2817 = vmatpush2.bf16.msra.mxu0 0
  %2818 = vmatprep.subr.bf16.mxu0 0
  %2819 = vmatpush2.bf16.msra.mxu0 0
  %2820 = vmatprep.mubr.bf16.mxu0 0
  %2821 = vmatmul.mubr.bf16.gmra.mxu0 %v2786
  %v2822 = vpop.f32.mrf.mxu0
  %v2823 = vadd.f32 %v859, %v2822
  %v2824 = vpop.f32.mrf.mxu0
  %v2825 = vpop.f32.mrf.mxu0
  %v2826 = vpop.f32.mrf.mxu0
  %2827 = vdwg.mxu0
  %vm2828 = vcmp.gt.f32.partialorder %v2823, 0.0
  %v2829 = vmul.f32 %v2823, 0.01
  %v2830 = vsel %vm2828, %v2823, %v2829
  %v2831 = vpack.c.bf16 %v2830, %v2830
  %v2833 = vsel %vm933, %v2831, 0
  %2835 = vmatprep.subr.bf16.mxu0 0
  %2836 = vmatpush1.bf16.msra.mxu0 0
  %2837 = vmatprep.subr.bf16.mxu0 0
  %2838 = vmatpush1.bf16.msra.mxu0 0
  %2839 = vmatprep.subr.bf16.mxu0 0
  %2840 = vmatpush1.bf16.msra.mxu0 0
  %2841 = vmatprep.subr.bf16.mxu0 0
  %2842 = vmatpush1.bf16.msra.mxu0 0
  %2843 = vmatprep.subr.bf16.mxu0 0
  %2844 = vmatpush1.bf16.msra.mxu0 0
  %2845 = vmatprep.subr.bf16.mxu0 0
  %2846 = vmatpush1.bf16.msra.mxu0 0
  %2847 = vmatprep.subr.bf16.mxu0 0
  %2848 = vmatpush1.bf16.msra.mxu0 0
  %2849 = vmatprep.subr.bf16.mxu0 0
  %2850 = vmatpush1.bf16.msra.mxu0 %v931
  %2851 = vmatprep.subr.bf16.mxu0 0
  %2852 = vmatpush2.bf16.msra.mxu0 0
  %2853 = vmatprep.subr.bf16.mxu0 0
  %2854 = vmatpush2.bf16.msra.mxu0 0
  %2855 = vmatprep.subr.bf16.mxu0 0
  %2856 = vmatpush2.bf16.msra.mxu0 0
  %2857 = vmatprep.subr.bf16.mxu0 0
  %2858 = vmatpush2.bf16.msra.mxu0 0
  %2859 = vmatprep.subr.bf16.mxu0 0
  %2860 = vmatpush2.bf16.msra.mxu0 0
  %2861 = vmatprep.subr.bf16.mxu0 0
  %2862 = vmatpush2.bf16.msra.mxu0 0
  %2863 = vmatprep.subr.bf16.mxu0 0
  %2864 = vmatpush2.bf16.msra.mxu0 0
  %2865 = vmatprep.subr.bf16.mxu0 0
  %2866 = vmatpush2.bf16.msra.mxu0 0
  %2867 = vmatprep.mubr.bf16.mxu0 0
  %2868 = vmatmul.mubr.bf16.gmra.mxu0 %v2833
  %v2869 = vpop.f32.mrf.mxu0
  %v2870 = vadd.f32 %v925, %v2869
  %v2871 = vpop.f32.mrf.mxu0
  %v2872 = vpop.f32.mrf.mxu0
  %v2873 = vpop.f32.mrf.mxu0
  %2874 = vdwg.mxu0
  %vm2875 = vcmp.gt.f32.partialorder %v2870, 0.0
  %v2876 = vmul.f32 %v2870, 0.01
  %v2877 = vsel %vm2875, %v2870, %v2876
  %v2878 = vpack.c.bf16 %v2877, %v2877
  %s2879 = scalar_lea.vmem %s9, 20
  %v2880 = vld [vmem:[%s2879] sm:$0xf]
  %v2882 = vsel %vm1324, %v2878, 0
  %v2885 = vsel %vm1328, %v2880, 0
  %2887 = vmatprep.subr.bf16.mxu0 0
  %2888 = vmatpush1.bf16.msra.mxu0 0
  %2889 = vmatprep.subr.bf16.mxu0 0
  %2890 = vmatpush1.bf16.msra.mxu0 0
  %2891 = vmatprep.subr.bf16.mxu0 0
  %2892 = vmatpush1.bf16.msra.mxu0 0
  %2893 = vmatprep.subr.bf16.mxu0 0
  %2894 = vmatpush1.bf16.msra.mxu0 0
  %2895 = vmatprep.subr.bf16.mxu0 0
  %2896 = vmatpush1.bf16.msra.mxu0 0
  %2897 = vmatprep.subr.bf16.mxu0 0
  %2898 = vmatpush1.bf16.msra.mxu0 0
  %2899 = vmatprep.subr.bf16.mxu0 0
  %2900 = vmatpush1.bf16.msra.mxu0 0
  %2901 = vmatprep.subr.bf16.mxu0 0
  %2902 = vmatpush1.bf16.msra.mxu0 %v2885
  %2903 = vmatprep.subr.bf16.mxu0 0
  %2904 = vmatpush2.bf16.msra.mxu0 0
  %2905 = vmatprep.subr.bf16.mxu0 0
  %2906 = vmatpush2.bf16.msra.mxu0 0
  %2907 = vmatprep.subr.bf16.mxu0 0
  %2908 = vmatpush2.bf16.msra.mxu0 0
  %2909 = vmatprep.subr.bf16.mxu0 0
  %2910 = vmatpush2.bf16.msra.mxu0 0
  %2911 = vmatprep.subr.bf16.mxu0 0
  %2912 = vmatpush2.bf16.msra.mxu0 0
  %2913 = vmatprep.subr.bf16.mxu0 0
  %2914 = vmatpush2.bf16.msra.mxu0 0
  %2915 = vmatprep.subr.bf16.mxu0 0
  %2916 = vmatpush2.bf16.msra.mxu0 0
  %2917 = vmatprep.subr.bf16.mxu0 0
  %2918 = vmatpush2.bf16.msra.mxu0 0
  %2919 = vmatprep.mubr.bf16.mxu0 0
  %2920 = vmatmul.mubr.bf16.gmra.mxu0 %v2882
  %v2921 = vpop.f32.mrf.mxu0
  %v2922 = vadd.f32 0.0, %v2921
  %v2923 = vpop.f32.mrf.mxu0
  %v2924 = vpop.f32.mrf.mxu0
  %v2925 = vpop.f32.mrf.mxu0
  %2926 = vdwg.mxu0
  %v2927 = vadd.f32 %v2554, %v2922
  %2928 = vmatprep.subr.bf16.mxu0 0
  %2929 = vmatpush1.bf16.msra.mxu0 %v200
  %2930 = vmatprep.subr.bf16.mxu0 0
  %2931 = vmatpush1.bf16.msra.mxu0 %v199
  %2932 = vmatprep.subr.bf16.mxu0 0
  %2933 = vmatpush1.bf16.msra.mxu0 %v198
  %2934 = vmatprep.subr.bf16.mxu0 0
  %2935 = vmatpush1.bf16.msra.mxu0 %v197
  %2936 = vmatprep.subr.bf16.mxu0 0
  %2937 = vmatpush1.bf16.msra.mxu0 %v196
  %2938 = vmatprep.subr.bf16.mxu0 0
  %2939 = vmatpush1.bf16.msra.mxu0 %v195
  %2940 = vmatprep.subr.bf16.mxu0 0
  %2941 = vmatpush1.bf16.msra.mxu0 %v194
  %2942 = vmatprep.subr.bf16.mxu0 0
  %2943 = vmatpush1.bf16.msra.mxu0 %v193
  %2944 = vmatprep.subr.bf16.mxu0 0
  %2945 = vmatpush2.bf16.msra.mxu0 %v208
  %2946 = vmatprep.subr.bf16.mxu0 0
  %2947 = vmatpush2.bf16.msra.mxu0 %v207
  %2948 = vmatprep.subr.bf16.mxu0 0
  %2949 = vmatpush2.bf16.msra.mxu0 %v206
  %2950 = vmatprep.subr.bf16.mxu0 0
  %2951 = vmatpush2.bf16.msra.mxu0 %v205
  %2952 = vmatprep.subr.bf16.mxu0 0
  %2953 = vmatpush2.bf16.msra.mxu0 %v204
  %2954 = vmatprep.subr.bf16.mxu0 0
  %2955 = vmatpush2.bf16.msra.mxu0 %v203
  %2956 = vmatprep.subr.bf16.mxu0 0
  %2957 = vmatpush2.bf16.msra.mxu0 %v202
  %2958 = vmatprep.subr.bf16.mxu0 0
  %2959 = vmatpush2.bf16.msra.mxu0 %v201
  %2960 = vmatprep.mubr.bf16.mxu0 %v1943
  %2961 = vmatmul.mubr.bf16.gmra.mxu0 %v1942
  %v2962 = vpop.f32.mrf.mxu0
  %v2963 = vadd.f32 0.0, %v2962
  %v2964 = vpop.f32.mrf.mxu0
  %v2965 = vpop.f32.mrf.mxu0
  %v2966 = vpop.f32.mrf.mxu0
  %2967 = vdwg.mxu0
  %2968 = vmatprep.subr.bf16.mxu0 0
  %2969 = vmatpush1.bf16.msra.mxu0 %v343
  %2970 = vmatprep.subr.bf16.mxu0 0
  %2971 = vmatpush1.bf16.msra.mxu0 %v342
  %2972 = vmatprep.subr.bf16.mxu0 0
  %2973 = vmatpush1.bf16.msra.mxu0 %v341
  %2974 = vmatprep.subr.bf16.mxu0 0
  %2975 = vmatpush1.bf16.msra.mxu0 %v340
  %2976 = vmatprep.subr.bf16.mxu0 0
  %2977 = vmatpush1.bf16.msra.mxu0 %v339
  %2978 = vmatprep.subr.bf16.mxu0 0
  %2979 = vmatpush1.bf16.msra.mxu0 %v338
  %2980 = vmatprep.subr.bf16.mxu0 0
  %2981 = vmatpush1.bf16.msra.mxu0 %v337
  %2982 = vmatprep.subr.bf16.mxu0 0
  %2983 = vmatpush1.bf16.msra.mxu0 %v336
  %2984 = vmatprep.subr.bf16.mxu0 0
  %2985 = vmatpush2.bf16.msra.mxu0 %v351
  %2986 = vmatprep.subr.bf16.mxu0 0
  %2987 = vmatpush2.bf16.msra.mxu0 %v350
  %2988 = vmatprep.subr.bf16.mxu0 0
  %2989 = vmatpush2.bf16.msra.mxu0 %v349
  %2990 = vmatprep.subr.bf16.mxu0 0
  %2991 = vmatpush2.bf16.msra.mxu0 %v348
  %2992 = vmatprep.subr.bf16.mxu0 0
  %2993 = vmatpush2.bf16.msra.mxu0 %v347
  %2994 = vmatprep.subr.bf16.mxu0 0
  %2995 = vmatpush2.bf16.msra.mxu0 %v346
  %2996 = vmatprep.subr.bf16.mxu0 0
  %2997 = vmatpush2.bf16.msra.mxu0 %v345
  %2998 = vmatprep.subr.bf16.mxu0 0
  %2999 = vmatpush2.bf16.msra.mxu0 %v344
  %3000 = vmatprep.mubr.bf16.mxu0 %v1893
  %3001 = vmatmul.mubr.bf16.gmra.mxu0 %v1892
  %v3002 = vpop.f32.mrf.mxu0
  %v3003 = vadd.f32 %v2963, %v3002
  %v3004 = vpop.f32.mrf.mxu0
  %v3005 = vpop.f32.mrf.mxu0
  %v3006 = vpop.f32.mrf.mxu0
  %3007 = vdwg.mxu0
  %s3008 = scalar_lea.vmem %s0, 120
  %v3009 = vld [vmem:[%s3008] sm:$0xff]
  %v3011 = vunpack.c.l.b16 %v3009
  %v3012 = vunpack.c.h.b16 %v3009
  %v3013 = vpack.c.b16 %v3011, %v3011
  %v3014 = vpack.c.b16 %v3012, %v3012
  %3017 = vmatprep.subr.bf16.mxu0 0
  %3018 = vmatpush1.bf16.msra.mxu0 %v521
  %3019 = vmatprep.subr.bf16.mxu0 0
  %3020 = vmatpush1.bf16.msra.mxu0 %v520
  %3021 = vmatprep.subr.bf16.mxu0 0
  %3022 = vmatpush1.bf16.msra.mxu0 %v519
  %3023 = vmatprep.subr.bf16.mxu0 0
  %3024 = vmatpush1.bf16.msra.mxu0 %v518
  %3025 = vmatprep.subr.bf16.mxu0 0
  %3026 = vmatpush1.bf16.msra.mxu0 %v517
  %3027 = vmatprep.subr.bf16.mxu0 0
  %3028 = vmatpush1.bf16.msra.mxu0 %v516
  %3029 = vmatprep.subr.bf16.mxu0 0
  %3030 = vmatpush1.bf16.msra.mxu0 %v515
  %3031 = vmatprep.subr.bf16.mxu0 0
  %3032 = vmatpush1.bf16.msra.mxu0 %v514
  %3033 = vmatprep.subr.bf16.mxu0 0
  %3034 = vmatpush2.bf16.msra.mxu0 %v529
  %3035 = vmatprep.subr.bf16.mxu0 0
  %3036 = vmatpush2.bf16.msra.mxu0 %v528
  %3037 = vmatprep.subr.bf16.mxu0 0
  %3038 = vmatpush2.bf16.msra.mxu0 %v527
  %3039 = vmatprep.subr.bf16.mxu0 0
  %3040 = vmatpush2.bf16.msra.mxu0 %v526
  %3041 = vmatprep.subr.bf16.mxu0 0
  %3042 = vmatpush2.bf16.msra.mxu0 %v525
  %3043 = vmatprep.subr.bf16.mxu0 0
  %3044 = vmatpush2.bf16.msra.mxu0 %v524
  %3045 = vmatprep.subr.bf16.mxu0 0
  %3046 = vmatpush2.bf16.msra.mxu0 %v523
  %3047 = vmatprep.subr.bf16.mxu0 0
  %3048 = vmatpush2.bf16.msra.mxu0 %v522
  %3049 = vmatprep.mubr.bf16.mxu0 %v3014
  %3050 = vmatmul.mubr.bf16.gmra.mxu0 %v3013
  %v3051 = vpop.f32.mrf.mxu0
  %v3052 = vadd.f32 0.0, %v3051
  %v3053 = vpop.f32.mrf.mxu0
  %v3054 = vpop.f32.mrf.mxu0
  %v3055 = vpop.f32.mrf.mxu0
  %3056 = vdwg.mxu0
  %v3057 = vadd.f32 %v3003, %v3052
  %s3058 = scalar_lea.vmem %s0, 140
  %v3059 = vld [vmem:[%s3058] sm:$0xff]
  %v3061 = vunpack.c.l.b16 %v3059
  %v3062 = vunpack.c.h.b16 %v3059
  %v3063 = vpack.c.b16 %v3061, %v3061
  %v3064 = vpack.c.b16 %v3062, %v3062
  %3067 = vmatprep.subr.bf16.mxu0 0
  %3068 = vmatpush1.bf16.msra.mxu0 %v700
  %3069 = vmatprep.subr.bf16.mxu0 0
  %3070 = vmatpush1.bf16.msra.mxu0 %v699
  %3071 = vmatprep.subr.bf16.mxu0 0
  %3072 = vmatpush1.bf16.msra.mxu0 %v698
  %3073 = vmatprep.subr.bf16.mxu0 0
  %3074 = vmatpush1.bf16.msra.mxu0 %v697
  %3075 = vmatprep.subr.bf16.mxu0 0
  %3076 = vmatpush1.bf16.msra.mxu0 %v696
  %3077 = vmatprep.subr.bf16.mxu0 0
  %3078 = vmatpush1.bf16.msra.mxu0 %v695
  %3079 = vmatprep.subr.bf16.mxu0 0
  %3080 = vmatpush1.bf16.msra.mxu0 %v694
  %3081 = vmatprep.subr.bf16.mxu0 0
  %3082 = vmatpush1.bf16.msra.mxu0 %v693
  %3083 = vmatprep.subr.bf16.mxu0 0
  %3084 = vmatpush2.bf16.msra.mxu0 %v708
  %3085 = vmatprep.subr.bf16.mxu0 0
  %3086 = vmatpush2.bf16.msra.mxu0 %v707
  %3087 = vmatprep.subr.bf16.mxu0 0
  %3088 = vmatpush2.bf16.msra.mxu0 %v706
  %3089 = vmatprep.subr.bf16.mxu0 0
  %3090 = vmatpush2.bf16.msra.mxu0 %v705
  %3091 = vmatprep.subr.bf16.mxu0 0
  %3092 = vmatpush2.bf16.msra.mxu0 %v704
  %3093 = vmatprep.subr.bf16.mxu0 0
  %3094 = vmatpush2.bf16.msra.mxu0 %v703
  %3095 = vmatprep.subr.bf16.mxu0 0
  %3096 = vmatpush2.bf16.msra.mxu0 %v702
  %3097 = vmatprep.subr.bf16.mxu0 0
  %3098 = vmatpush2.bf16.msra.mxu0 %v701
  %3099 = vmatprep.mubr.bf16.mxu0 %v3064
  %3100 = vmatmul.mubr.bf16.gmra.mxu0 %v3063
  %v3101 = vpop.f32.mrf.mxu0
  %v3102 = vadd.f32 0.0, %v3101
  %v3103 = vpop.f32.mrf.mxu0
  %v3104 = vpop.f32.mrf.mxu0
  %v3105 = vpop.f32.mrf.mxu0
  %3106 = vdwg.mxu0
  %v3107 = vadd.f32 %v3057, %v3102
  %v3108 = vadd.f32 %v3107, %v770
  %vm3109 = vcmp.gt.f32.partialorder %v3108, 0.0
  %v3110 = vmul.f32 %v3108, 0.01
  %v3111 = vsel %vm3109, %v3108, %v3110
  %v3112 = vpack.c.bf16 %v3111, %v3111
  %v3114 = vsel %vm807, %v3112, 0
  %3116 = vmatprep.subr.bf16.mxu0 0
  %3117 = vmatpush1.bf16.msra.mxu0 0
  %3118 = vmatprep.subr.bf16.mxu0 0
  %3119 = vmatpush1.bf16.msra.mxu0 0
  %3120 = vmatprep.subr.bf16.mxu0 0
  %3121 = vmatpush1.bf16.msra.mxu0 0
  %3122 = vmatprep.subr.bf16.mxu0 0
  %3123 = vmatpush1.bf16.msra.mxu0 0
  %3124 = vmatprep.subr.bf16.mxu0 0
  %3125 = vmatpush1.bf16.msra.mxu0 %v802
  %3126 = vmatprep.subr.bf16.mxu0 0
  %3127 = vmatpush1.bf16.msra.mxu0 %v801
  %3128 = vmatprep.subr.bf16.mxu0 0
  %3129 = vmatpush1.bf16.msra.mxu0 %v800
  %3130 = vmatprep.subr.bf16.mxu0 0
  %3131 = vmatpush1.bf16.msra.mxu0 %v799
  %3132 = vmatprep.subr.bf16.mxu0 0
  %3133 = vmatpush2.bf16.msra.mxu0 0
  %3134 = vmatprep.subr.bf16.mxu0 0
  %3135 = vmatpush2.bf16.msra.mxu0 0
  %3136 = vmatprep.subr.bf16.mxu0 0
  %3137 = vmatpush2.bf16.msra.mxu0 0
  %3138 = vmatprep.subr.bf16.mxu0 0
  %3139 = vmatpush2.bf16.msra.mxu0 0
  %3140 = vmatprep.subr.bf16.mxu0 0
  %3141 = vmatpush2.bf16.msra.mxu0 0
  %3142 = vmatprep.subr.bf16.mxu0 0
  %3143 = vmatpush2.bf16.msra.mxu0 0
  %3144 = vmatprep.subr.bf16.mxu0 0
  %3145 = vmatpush2.bf16.msra.mxu0 0
  %3146 = vmatprep.subr.bf16.mxu0 0
  %3147 = vmatpush2.bf16.msra.mxu0 0
  %3148 = vmatprep.mubr.bf16.mxu0 0
  %3149 = vmatmul.mubr.bf16.gmra.mxu0 %v3114
  %v3150 = vpop.f32.mrf.mxu0
  %v3151 = vadd.f32 %v781, %v3150
  %v3152 = vpop.f32.mrf.mxu0
  %v3153 = vpop.f32.mrf.mxu0
  %v3154 = vpop.f32.mrf.mxu0
  %3155 = vdwg.mxu0
  %vm3156 = vcmp.gt.f32.partialorder %v3151, 0.0
  %v3157 = vmul.f32 %v3151, 0.01
  %v3158 = vsel %vm3156, %v3151, %v3157
  %v3159 = vpack.c.bf16 %v3158, %v3158
  %v3161 = vsel %vm873, %v3159, 0
  %3163 = vmatprep.subr.bf16.mxu0 0
  %3164 = vmatpush1.bf16.msra.mxu0 0
  %3165 = vmatprep.subr.bf16.mxu0 0
  %3166 = vmatpush1.bf16.msra.mxu0 0
  %3167 = vmatprep.subr.bf16.mxu0 0
  %3168 = vmatpush1.bf16.msra.mxu0 0
  %3169 = vmatprep.subr.bf16.mxu0 0
  %3170 = vmatpush1.bf16.msra.mxu0 0
  %3171 = vmatprep.subr.bf16.mxu0 0
  %3172 = vmatpush1.bf16.msra.mxu0 0
  %3173 = vmatprep.subr.bf16.mxu0 0
  %3174 = vmatpush1.bf16.msra.mxu0 0
  %3175 = vmatprep.subr.bf16.mxu0 0
  %3176 = vmatpush1.bf16.msra.mxu0 %v870
  %3177 = vmatprep.subr.bf16.mxu0 0
  %3178 = vmatpush1.bf16.msra.mxu0 %v869
  %3179 = vmatprep.subr.bf16.mxu0 0
  %3180 = vmatpush2.bf16.msra.mxu0 0
  %3181 = vmatprep.subr.bf16.mxu0 0
  %3182 = vmatpush2.bf16.msra.mxu0 0
  %3183 = vmatprep.subr.bf16.mxu0 0
  %3184 = vmatpush2.bf16.msra.mxu0 0
  %3185 = vmatprep.subr.bf16.mxu0 0
  %3186 = vmatpush2.bf16.msra.mxu0 0
  %3187 = vmatprep.subr.bf16.mxu0 0
  %3188 = vmatpush2.bf16.msra.mxu0 0
  %3189 = vmatprep.subr.bf16.mxu0 0
  %3190 = vmatpush2.bf16.msra.mxu0 0
  %3191 = vmatprep.subr.bf16.mxu0 0
  %3192 = vmatpush2.bf16.msra.mxu0 0
  %3193 = vmatprep.subr.bf16.mxu0 0
  %3194 = vmatpush2.bf16.msra.mxu0 0
  %3195 = vmatprep.mubr.bf16.mxu0 0
  %3196 = vmatmul.mubr.bf16.gmra.mxu0 %v3161
  %v3197 = vpop.f32.mrf.mxu0
  %v3198 = vadd.f32 %v859, %v3197
  %v3199 = vpop.f32.mrf.mxu0
  %v3200 = vpop.f32.mrf.mxu0
  %v3201 = vpop.f32.mrf.mxu0
  %3202 = vdwg.mxu0
  %vm3203 = vcmp.gt.f32.partialorder %v3198, 0.0
  %v3204 = vmul.f32 %v3198, 0.01
  %v3205 = vsel %vm3203, %v3198, %v3204
  %v3206 = vpack.c.bf16 %v3205, %v3205
  %v3208 = vsel %vm933, %v3206, 0
  %3210 = vmatprep.subr.bf16.mxu0 0
  %3211 = vmatpush1.bf16.msra.mxu0 0
  %3212 = vmatprep.subr.bf16.mxu0 0
  %3213 = vmatpush1.bf16.msra.mxu0 0
  %3214 = vmatprep.subr.bf16.mxu0 0
  %3215 = vmatpush1.bf16.msra.mxu0 0
  %3216 = vmatprep.subr.bf16.mxu0 0
  %3217 = vmatpush1.bf16.msra.mxu0 0
  %3218 = vmatprep.subr.bf16.mxu0 0
  %3219 = vmatpush1.bf16.msra.mxu0 0
  %3220 = vmatprep.subr.bf16.mxu0 0
  %3221 = vmatpush1.bf16.msra.mxu0 0
  %3222 = vmatprep.subr.bf16.mxu0 0
  %3223 = vmatpush1.bf16.msra.mxu0 0
  %3224 = vmatprep.subr.bf16.mxu0 0
  %3225 = vmatpush1.bf16.msra.mxu0 %v931
  %3226 = vmatprep.subr.bf16.mxu0 0
  %3227 = vmatpush2.bf16.msra.mxu0 0
  %3228 = vmatprep.subr.bf16.mxu0 0
  %3229 = vmatpush2.bf16.msra.mxu0 0
  %3230 = vmatprep.subr.bf16.mxu0 0
  %3231 = vmatpush2.bf16.msra.mxu0 0
  %3232 = vmatprep.subr.bf16.mxu0 0
  %3233 = vmatpush2.bf16.msra.mxu0 0
  %3234 = vmatprep.subr.bf16.mxu0 0
  %3235 = vmatpush2.bf16.msra.mxu0 0
  %3236 = vmatprep.subr.bf16.mxu0 0
  %3237 = vmatpush2.bf16.msra.mxu0 0
  %3238 = vmatprep.subr.bf16.mxu0 0
  %3239 = vmatpush2.bf16.msra.mxu0 0
  %3240 = vmatprep.subr.bf16.mxu0 0
  %3241 = vmatpush2.bf16.msra.mxu0 0
  %3242 = vmatprep.mubr.bf16.mxu0 0
  %3243 = vmatmul.mubr.bf16.gmra.mxu0 %v3208
  %v3244 = vpop.f32.mrf.mxu0
  %v3245 = vadd.f32 %v925, %v3244
  %v3246 = vpop.f32.mrf.mxu0
  %v3247 = vpop.f32.mrf.mxu0
  %v3248 = vpop.f32.mrf.mxu0
  %3249 = vdwg.mxu0
  %vm3250 = vcmp.gt.f32.partialorder %v3245, 0.0
  %v3251 = vmul.f32 %v3245, 0.01
  %v3252 = vsel %vm3250, %v3245, %v3251
  %v3253 = vpack.c.bf16 %v3252, %v3252
  %s3254 = scalar_lea.vmem %s9, 24
  %v3255 = vld [vmem:[%s3254] sm:$0xf]
  %v3257 = vsel %vm1324, %v3253, 0
  %v3260 = vsel %vm1328, %v3255, 0
  %3262 = vmatprep.subr.bf16.mxu0 0
  %3263 = vmatpush1.bf16.msra.mxu0 0
  %3264 = vmatprep.subr.bf16.mxu0 0
  %3265 = vmatpush1.bf16.msra.mxu0 0
  %3266 = vmatprep.subr.bf16.mxu0 0
  %3267 = vmatpush1.bf16.msra.mxu0 0
  %3268 = vmatprep.subr.bf16.mxu0 0
  %3269 = vmatpush1.bf16.msra.mxu0 0
  %3270 = vmatprep.subr.bf16.mxu0 0
  %3271 = vmatpush1.bf16.msra.mxu0 0
  %3272 = vmatprep.subr.bf16.mxu0 0
  %3273 = vmatpush1.bf16.msra.mxu0 0
  %3274 = vmatprep.subr.bf16.mxu0 0
  %3275 = vmatpush1.bf16.msra.mxu0 0
  %3276 = vmatprep.subr.bf16.mxu0 0
  %3277 = vmatpush1.bf16.msra.mxu0 %v3260
  %3278 = vmatprep.subr.bf16.mxu0 0
  %3279 = vmatpush2.bf16.msra.mxu0 0
  %3280 = vmatprep.subr.bf16.mxu0 0
  %3281 = vmatpush2.bf16.msra.mxu0 0
  %3282 = vmatprep.subr.bf16.mxu0 0
  %3283 = vmatpush2.bf16.msra.mxu0 0
  %3284 = vmatprep.subr.bf16.mxu0 0
  %3285 = vmatpush2.bf16.msra.mxu0 0
  %3286 = vmatprep.subr.bf16.mxu0 0
  %3287 = vmatpush2.bf16.msra.mxu0 0
  %3288 = vmatprep.subr.bf16.mxu0 0
  %3289 = vmatpush2.bf16.msra.mxu0 0
  %3290 = vmatprep.subr.bf16.mxu0 0
  %3291 = vmatpush2.bf16.msra.mxu0 0
  %3292 = vmatprep.subr.bf16.mxu0 0
  %3293 = vmatpush2.bf16.msra.mxu0 0
  %3294 = vmatprep.mubr.bf16.mxu0 0
  %3295 = vmatmul.mubr.bf16.gmra.mxu0 %v3257
  %v3296 = vpop.f32.mrf.mxu0
  %v3297 = vadd.f32 0.0, %v3296
  %v3298 = vpop.f32.mrf.mxu0
  %v3299 = vpop.f32.mrf.mxu0
  %v3300 = vpop.f32.mrf.mxu0
  %3301 = vdwg.mxu0
  %v3302 = vadd.f32 %v2927, %v3297
  %3303 = vmatprep.subr.bf16.mxu0 0
  %3304 = vmatpush1.bf16.msra.mxu0 %v200
  %3305 = vmatprep.subr.bf16.mxu0 0
  %3306 = vmatpush1.bf16.msra.mxu0 %v199
  %3307 = vmatprep.subr.bf16.mxu0 0
  %3308 = vmatpush1.bf16.msra.mxu0 %v198
  %3309 = vmatprep.subr.bf16.mxu0 0
  %3310 = vmatpush1.bf16.msra.mxu0 %v197
  %3311 = vmatprep.subr.bf16.mxu0 0
  %3312 = vmatpush1.bf16.msra.mxu0 %v196
  %3313 = vmatprep.subr.bf16.mxu0 0
  %3314 = vmatpush1.bf16.msra.mxu0 %v195
  %3315 = vmatprep.subr.bf16.mxu0 0
  %3316 = vmatpush1.bf16.msra.mxu0 %v194
  %3317 = vmatprep.subr.bf16.mxu0 0
  %3318 = vmatpush1.bf16.msra.mxu0 %v193
  %3319 = vmatprep.subr.bf16.mxu0 0
  %3320 = vmatpush2.bf16.msra.mxu0 %v208
  %3321 = vmatprep.subr.bf16.mxu0 0
  %3322 = vmatpush2.bf16.msra.mxu0 %v207
  %3323 = vmatprep.subr.bf16.mxu0 0
  %3324 = vmatpush2.bf16.msra.mxu0 %v206
  %3325 = vmatprep.subr.bf16.mxu0 0
  %3326 = vmatpush2.bf16.msra.mxu0 %v205
  %3327 = vmatprep.subr.bf16.mxu0 0
  %3328 = vmatpush2.bf16.msra.mxu0 %v204
  %3329 = vmatprep.subr.bf16.mxu0 0
  %3330 = vmatpush2.bf16.msra.mxu0 %v203
  %3331 = vmatprep.subr.bf16.mxu0 0
  %3332 = vmatpush2.bf16.msra.mxu0 %v202
  %3333 = vmatprep.subr.bf16.mxu0 0
  %3334 = vmatpush2.bf16.msra.mxu0 %v201
  %3335 = vmatprep.mubr.bf16.mxu0 %v2316
  %3336 = vmatmul.mubr.bf16.gmra.mxu0 %v2315
  %v3337 = vpop.f32.mrf.mxu0
  %v3338 = vadd.f32 0.0, %v3337
  %v3339 = vpop.f32.mrf.mxu0
  %v3340 = vpop.f32.mrf.mxu0
  %v3341 = vpop.f32.mrf.mxu0
  %3342 = vdwg.mxu0
  %3343 = vmatprep.subr.bf16.mxu0 0
  %3344 = vmatpush1.bf16.msra.mxu0 %v343
  %3345 = vmatprep.subr.bf16.mxu0 0
  %3346 = vmatpush1.bf16.msra.mxu0 %v342
  %3347 = vmatprep.subr.bf16.mxu0 0
  %3348 = vmatpush1.bf16.msra.mxu0 %v341
  %3349 = vmatprep.subr.bf16.mxu0 0
  %3350 = vmatpush1.bf16.msra.mxu0 %v340
  %3351 = vmatprep.subr.bf16.mxu0 0
  %3352 = vmatpush1.bf16.msra.mxu0 %v339
  %3353 = vmatprep.subr.bf16.mxu0 0
  %3354 = vmatpush1.bf16.msra.mxu0 %v338
  %3355 = vmatprep.subr.bf16.mxu0 0
  %3356 = vmatpush1.bf16.msra.mxu0 %v337
  %3357 = vmatprep.subr.bf16.mxu0 0
  %3358 = vmatpush1.bf16.msra.mxu0 %v336
  %3359 = vmatprep.subr.bf16.mxu0 0
  %3360 = vmatpush2.bf16.msra.mxu0 %v351
  %3361 = vmatprep.subr.bf16.mxu0 0
  %3362 = vmatpush2.bf16.msra.mxu0 %v350
  %3363 = vmatprep.subr.bf16.mxu0 0
  %3364 = vmatpush2.bf16.msra.mxu0 %v349
  %3365 = vmatprep.subr.bf16.mxu0 0
  %3366 = vmatpush2.bf16.msra.mxu0 %v348
  %3367 = vmatprep.subr.bf16.mxu0 0
  %3368 = vmatpush2.bf16.msra.mxu0 %v347
  %3369 = vmatprep.subr.bf16.mxu0 0
  %3370 = vmatpush2.bf16.msra.mxu0 %v346
  %3371 = vmatprep.subr.bf16.mxu0 0
  %3372 = vmatpush2.bf16.msra.mxu0 %v345
  %3373 = vmatprep.subr.bf16.mxu0 0
  %3374 = vmatpush2.bf16.msra.mxu0 %v344
  %3375 = vmatprep.mubr.bf16.mxu0 %v2267
  %3376 = vmatmul.mubr.bf16.gmra.mxu0 %v2266
  %v3377 = vpop.f32.mrf.mxu0
  %v3378 = vadd.f32 %v3338, %v3377
  %v3379 = vpop.f32.mrf.mxu0
  %v3380 = vpop.f32.mrf.mxu0
  %v3381 = vpop.f32.mrf.mxu0
  %3382 = vdwg.mxu0
  %v3383 = vld [vmem:[%s3008 + $0x4] sm:$0xff]
  %v3385 = vunpack.c.l.b16 %v3383
  %v3386 = vunpack.c.h.b16 %v3383
  %v3387 = vpack.c.b16 %v3385, %v3385
  %v3388 = vpack.c.b16 %v3386, %v3386
  %3391 = vmatprep.subr.bf16.mxu0 0
  %3392 = vmatpush1.bf16.msra.mxu0 %v521
  %3393 = vmatprep.subr.bf16.mxu0 0
  %3394 = vmatpush1.bf16.msra.mxu0 %v520
  %3395 = vmatprep.subr.bf16.mxu0 0
  %3396 = vmatpush1.bf16.msra.mxu0 %v519
  %3397 = vmatprep.subr.bf16.mxu0 0
  %3398 = vmatpush1.bf16.msra.mxu0 %v518
  %3399 = vmatprep.subr.bf16.mxu0 0
  %3400 = vmatpush1.bf16.msra.mxu0 %v517
  %3401 = vmatprep.subr.bf16.mxu0 0
  %3402 = vmatpush1.bf16.msra.mxu0 %v516
  %3403 = vmatprep.subr.bf16.mxu0 0
  %3404 = vmatpush1.bf16.msra.mxu0 %v515
  %3405 = vmatprep.subr.bf16.mxu0 0
  %3406 = vmatpush1.bf16.msra.mxu0 %v514
  %3407 = vmatprep.subr.bf16.mxu0 0
  %3408 = vmatpush2.bf16.msra.mxu0 %v529
  %3409 = vmatprep.subr.bf16.mxu0 0
  %3410 = vmatpush2.bf16.msra.mxu0 %v528
  %3411 = vmatprep.subr.bf16.mxu0 0
  %3412 = vmatpush2.bf16.msra.mxu0 %v527
  %3413 = vmatprep.subr.bf16.mxu0 0
  %3414 = vmatpush2.bf16.msra.mxu0 %v526
  %3415 = vmatprep.subr.bf16.mxu0 0
  %3416 = vmatpush2.bf16.msra.mxu0 %v525
  %3417 = vmatprep.subr.bf16.mxu0 0
  %3418 = vmatpush2.bf16.msra.mxu0 %v524
  %3419 = vmatprep.subr.bf16.mxu0 0
  %3420 = vmatpush2.bf16.msra.mxu0 %v523
  %3421 = vmatprep.subr.bf16.mxu0 0
  %3422 = vmatpush2.bf16.msra.mxu0 %v522
  %3423 = vmatprep.mubr.bf16.mxu0 %v3388
  %3424 = vmatmul.mubr.bf16.gmra.mxu0 %v3387
  %v3425 = vpop.f32.mrf.mxu0
  %v3426 = vadd.f32 0.0, %v3425
  %v3427 = vpop.f32.mrf.mxu0
  %v3428 = vpop.f32.mrf.mxu0
  %v3429 = vpop.f32.mrf.mxu0
  %3430 = vdwg.mxu0
  %v3431 = vadd.f32 %v3378, %v3426
  %v3432 = vld [vmem:[%s3058 + $0x4] sm:$0xff]
  %v3434 = vunpack.c.l.b16 %v3432
  %v3435 = vunpack.c.h.b16 %v3432
  %v3436 = vpack.c.b16 %v3434, %v3434
  %v3437 = vpack.c.b16 %v3435, %v3435
  %3440 = vmatprep.subr.bf16.mxu0 0
  %3441 = vmatpush1.bf16.msra.mxu0 %v700
  %3442 = vmatprep.subr.bf16.mxu0 0
  %3443 = vmatpush1.bf16.msra.mxu0 %v699
  %3444 = vmatprep.subr.bf16.mxu0 0
  %3445 = vmatpush1.bf16.msra.mxu0 %v698
  %3446 = vmatprep.subr.bf16.mxu0 0
  %3447 = vmatpush1.bf16.msra.mxu0 %v697
  %3448 = vmatprep.subr.bf16.mxu0 0
  %3449 = vmatpush1.bf16.msra.mxu0 %v696
  %3450 = vmatprep.subr.bf16.mxu0 0
  %3451 = vmatpush1.bf16.msra.mxu0 %v695
  %3452 = vmatprep.subr.bf16.mxu0 0
  %3453 = vmatpush1.bf16.msra.mxu0 %v694
  %3454 = vmatprep.subr.bf16.mxu0 0
  %3455 = vmatpush1.bf16.msra.mxu0 %v693
  %3456 = vmatprep.subr.bf16.mxu0 0
  %3457 = vmatpush2.bf16.msra.mxu0 %v708
  %3458 = vmatprep.subr.bf16.mxu0 0
  %3459 = vmatpush2.bf16.msra.mxu0 %v707
  %3460 = vmatprep.subr.bf16.mxu0 0
  %3461 = vmatpush2.bf16.msra.mxu0 %v706
  %3462 = vmatprep.subr.bf16.mxu0 0
  %3463 = vmatpush2.bf16.msra.mxu0 %v705
  %3464 = vmatprep.subr.bf16.mxu0 0
  %3465 = vmatpush2.bf16.msra.mxu0 %v704
  %3466 = vmatprep.subr.bf16.mxu0 0
  %3467 = vmatpush2.bf16.msra.mxu0 %v703
  %3468 = vmatprep.subr.bf16.mxu0 0
  %3469 = vmatpush2.bf16.msra.mxu0 %v702
  %3470 = vmatprep.subr.bf16.mxu0 0
  %3471 = vmatpush2.bf16.msra.mxu0 %v701
  %3472 = vmatprep.mubr.bf16.mxu0 %v3437
  %3473 = vmatmul.mubr.bf16.gmra.mxu0 %v3436
  %v3474 = vpop.f32.mrf.mxu0
  %v3475 = vadd.f32 0.0, %v3474
  %v3476 = vpop.f32.mrf.mxu0
  %v3477 = vpop.f32.mrf.mxu0
  %v3478 = vpop.f32.mrf.mxu0
  %3479 = vdwg.mxu0
  %v3480 = vadd.f32 %v3431, %v3475
  %v3481 = vadd.f32 %v3480, %v770
  %vm3482 = vcmp.gt.f32.partialorder %v3481, 0.0
  %v3483 = vmul.f32 %v3481, 0.01
  %v3484 = vsel %vm3482, %v3481, %v3483
  %v3485 = vpack.c.bf16 %v3484, %v3484
  %v3487 = vsel %vm807, %v3485, 0
  %3489 = vmatprep.subr.bf16.mxu0 0
  %3490 = vmatpush1.bf16.msra.mxu0 0
  %3491 = vmatprep.subr.bf16.mxu0 0
  %3492 = vmatpush1.bf16.msra.mxu0 0
  %3493 = vmatprep.subr.bf16.mxu0 0
  %3494 = vmatpush1.bf16.msra.mxu0 0
  %3495 = vmatprep.subr.bf16.mxu0 0
  %3496 = vmatpush1.bf16.msra.mxu0 0
  %3497 = vmatprep.subr.bf16.mxu0 0
  %3498 = vmatpush1.bf16.msra.mxu0 %v802
  %3499 = vmatprep.subr.bf16.mxu0 0
  %3500 = vmatpush1.bf16.msra.mxu0 %v801
  %3501 = vmatprep.subr.bf16.mxu0 0
  %3502 = vmatpush1.bf16.msra.mxu0 %v800
  %3503 = vmatprep.subr.bf16.mxu0 0
  %3504 = vmatpush1.bf16.msra.mxu0 %v799
  %3505 = vmatprep.subr.bf16.mxu0 0
  %3506 = vmatpush2.bf16.msra.mxu0 0
  %3507 = vmatprep.subr.bf16.mxu0 0
  %3508 = vmatpush2.bf16.msra.mxu0 0
  %3509 = vmatprep.subr.bf16.mxu0 0
  %3510 = vmatpush2.bf16.msra.mxu0 0
  %3511 = vmatprep.subr.bf16.mxu0 0
  %3512 = vmatpush2.bf16.msra.mxu0 0
  %3513 = vmatprep.subr.bf16.mxu0 0
  %3514 = vmatpush2.bf16.msra.mxu0 0
  %3515 = vmatprep.subr.bf16.mxu0 0
  %3516 = vmatpush2.bf16.msra.mxu0 0
  %3517 = vmatprep.subr.bf16.mxu0 0
  %3518 = vmatpush2.bf16.msra.mxu0 0
  %3519 = vmatprep.subr.bf16.mxu0 0
  %3520 = vmatpush2.bf16.msra.mxu0 0
  %3521 = vmatprep.mubr.bf16.mxu0 0
  %3522 = vmatmul.mubr.bf16.gmra.mxu0 %v3487
  %v3523 = vpop.f32.mrf.mxu0
  %v3524 = vadd.f32 %v781, %v3523
  %v3525 = vpop.f32.mrf.mxu0
  %v3526 = vpop.f32.mrf.mxu0
  %v3527 = vpop.f32.mrf.mxu0
  %3528 = vdwg.mxu0
  %vm3529 = vcmp.gt.f32.partialorder %v3524, 0.0
  %v3530 = vmul.f32 %v3524, 0.01
  %v3531 = vsel %vm3529, %v3524, %v3530
  %v3532 = vpack.c.bf16 %v3531, %v3531
  %v3534 = vsel %vm873, %v3532, 0
  %3536 = vmatprep.subr.bf16.mxu0 0
  %3537 = vmatpush1.bf16.msra.mxu0 0
  %3538 = vmatprep.subr.bf16.mxu0 0
  %3539 = vmatpush1.bf16.msra.mxu0 0
  %3540 = vmatprep.subr.bf16.mxu0 0
  %3541 = vmatpush1.bf16.msra.mxu0 0
  %3542 = vmatprep.subr.bf16.mxu0 0
  %3543 = vmatpush1.bf16.msra.mxu0 0
  %3544 = vmatprep.subr.bf16.mxu0 0
  %3545 = vmatpush1.bf16.msra.mxu0 0
  %3546 = vmatprep.subr.bf16.mxu0 0
  %3547 = vmatpush1.bf16.msra.mxu0 0
  %3548 = vmatprep.subr.bf16.mxu0 0
  %3549 = vmatpush1.bf16.msra.mxu0 %v870
  %3550 = vmatprep.subr.bf16.mxu0 0
  %3551 = vmatpush1.bf16.msra.mxu0 %v869
  %3552 = vmatprep.subr.bf16.mxu0 0
  %3553 = vmatpush2.bf16.msra.mxu0 0
  %3554 = vmatprep.subr.bf16.mxu0 0
  %3555 = vmatpush2.bf16.msra.mxu0 0
  %3556 = vmatprep.subr.bf16.mxu0 0
  %3557 = vmatpush2.bf16.msra.mxu0 0
  %3558 = vmatprep.subr.bf16.mxu0 0
  %3559 = vmatpush2.bf16.msra.mxu0 0
  %3560 = vmatprep.subr.bf16.mxu0 0
  %3561 = vmatpush2.bf16.msra.mxu0 0
  %3562 = vmatprep.subr.bf16.mxu0 0
  %3563 = vmatpush2.bf16.msra.mxu0 0
  %3564 = vmatprep.subr.bf16.mxu0 0
  %3565 = vmatpush2.bf16.msra.mxu0 0
  %3566 = vmatprep.subr.bf16.mxu0 0
  %3567 = vmatpush2.bf16.msra.mxu0 0
  %3568 = vmatprep.mubr.bf16.mxu0 0
  %3569 = vmatmul.mubr.bf16.gmra.mxu0 %v3534
  %v3570 = vpop.f32.mrf.mxu0
  %v3571 = vadd.f32 %v859, %v3570
  %v3572 = vpop.f32.mrf.mxu0
  %v3573 = vpop.f32.mrf.mxu0
  %v3574 = vpop.f32.mrf.mxu0
  %3575 = vdwg.mxu0
  %vm3576 = vcmp.gt.f32.partialorder %v3571, 0.0
  %v3577 = vmul.f32 %v3571, 0.01
  %v3578 = vsel %vm3576, %v3571, %v3577
  %v3579 = vpack.c.bf16 %v3578, %v3578
  %v3581 = vsel %vm933, %v3579, 0
  %3583 = vmatprep.subr.bf16.mxu0 0
  %3584 = vmatpush1.bf16.msra.mxu0 0
  %3585 = vmatprep.subr.bf16.mxu0 0
  %3586 = vmatpush1.bf16.msra.mxu0 0
  %3587 = vmatprep.subr.bf16.mxu0 0
  %3588 = vmatpush1.bf16.msra.mxu0 0
  %3589 = vmatprep.subr.bf16.mxu0 0
  %3590 = vmatpush1.bf16.msra.mxu0 0
  %3591 = vmatprep.subr.bf16.mxu0 0
  %3592 = vmatpush1.bf16.msra.mxu0 0
  %3593 = vmatprep.subr.bf16.mxu0 0
  %3594 = vmatpush1.bf16.msra.mxu0 0
  %3595 = vmatprep.subr.bf16.mxu0 0
  %3596 = vmatpush1.bf16.msra.mxu0 0
  %3597 = vmatprep.subr.bf16.mxu0 0
  %3598 = vmatpush1.bf16.msra.mxu0 %v931
  %3599 = vmatprep.subr.bf16.mxu0 0
  %3600 = vmatpush2.bf16.msra.mxu0 0
  %3601 = vmatprep.subr.bf16.mxu0 0
  %3602 = vmatpush2.bf16.msra.mxu0 0
  %3603 = vmatprep.subr.bf16.mxu0 0
  %3604 = vmatpush2.bf16.msra.mxu0 0
  %3605 = vmatprep.subr.bf16.mxu0 0
  %3606 = vmatpush2.bf16.msra.mxu0 0
  %3607 = vmatprep.subr.bf16.mxu0 0
  %3608 = vmatpush2.bf16.msra.mxu0 0
  %3609 = vmatprep.subr.bf16.mxu0 0
  %3610 = vmatpush2.bf16.msra.mxu0 0
  %3611 = vmatprep.subr.bf16.mxu0 0
  %3612 = vmatpush2.bf16.msra.mxu0 0
  %3613 = vmatprep.subr.bf16.mxu0 0
  %3614 = vmatpush2.bf16.msra.mxu0 0
  %3615 = vmatprep.mubr.bf16.mxu0 0
  %3616 = vmatmul.mubr.bf16.gmra.mxu0 %v3581
  %v3617 = vpop.f32.mrf.mxu0
  %v3618 = vadd.f32 %v925, %v3617
  %v3619 = vpop.f32.mrf.mxu0
  %v3620 = vpop.f32.mrf.mxu0
  %v3621 = vpop.f32.mrf.mxu0
  %3622 = vdwg.mxu0
  %vm3623 = vcmp.gt.f32.partialorder %v3618, 0.0
  %v3624 = vmul.f32 %v3618, 0.01
  %v3625 = vsel %vm3623, %v3618, %v3624
  %v3626 = vpack.c.bf16 %v3625, %v3625
  %s3627 = scalar_lea.vmem %s9, 28
  %v3628 = vld [vmem:[%s3627] sm:$0xf]
  %v3630 = vsel %vm1324, %v3626, 0
  %v3633 = vsel %vm1328, %v3628, 0
  %3635 = vmatprep.subr.bf16.mxu0 0
  %3636 = vmatpush1.bf16.msra.mxu0 0
  %3637 = vmatprep.subr.bf16.mxu0 0
  %3638 = vmatpush1.bf16.msra.mxu0 0
  %3639 = vmatprep.subr.bf16.mxu0 0
  %3640 = vmatpush1.bf16.msra.mxu0 0
  %3641 = vmatprep.subr.bf16.mxu0 0
  %3642 = vmatpush1.bf16.msra.mxu0 0
  %3643 = vmatprep.subr.bf16.mxu0 0
  %3644 = vmatpush1.bf16.msra.mxu0 0
  %3645 = vmatprep.subr.bf16.mxu0 0
  %3646 = vmatpush1.bf16.msra.mxu0 0
  %3647 = vmatprep.subr.bf16.mxu0 0
  %3648 = vmatpush1.bf16.msra.mxu0 0
  %3649 = vmatprep.subr.bf16.mxu0 0
  %3650 = vmatpush1.bf16.msra.mxu0 %v3633
  %3651 = vmatprep.subr.bf16.mxu0 0
  %3652 = vmatpush2.bf16.msra.mxu0 0
  %3653 = vmatprep.subr.bf16.mxu0 0
  %3654 = vmatpush2.bf16.msra.mxu0 0
  %3655 = vmatprep.subr.bf16.mxu0 0
  %3656 = vmatpush2.bf16.msra.mxu0 0
  %3657 = vmatprep.subr.bf16.mxu0 0
  %3658 = vmatpush2.bf16.msra.mxu0 0
  %3659 = vmatprep.subr.bf16.mxu0 0
  %3660 = vmatpush2.bf16.msra.mxu0 0
  %3661 = vmatprep.subr.bf16.mxu0 0
  %3662 = vmatpush2.bf16.msra.mxu0 0
  %3663 = vmatprep.subr.bf16.mxu0 0
  %3664 = vmatpush2.bf16.msra.mxu0 0
  %3665 = vmatprep.subr.bf16.mxu0 0
  %3666 = vmatpush2.bf16.msra.mxu0 0
  %3667 = vmatprep.mubr.bf16.mxu0 0
  %3668 = vmatmul.mubr.bf16.gmra.mxu0 %v3630
  %v3669 = vpop.f32.mrf.mxu0
  %v3670 = vadd.f32 0.0, %v3669
  %v3671 = vpop.f32.mrf.mxu0
  %v3672 = vpop.f32.mrf.mxu0
  %v3673 = vpop.f32.mrf.mxu0
  %3674 = vdwg.mxu0
  %v3675 = vadd.f32 %v3302, %v3670
  %3676 = vmatprep.subr.bf16.mxu0 0
  %3677 = vmatpush1.bf16.msra.mxu0 %v200
  %3678 = vmatprep.subr.bf16.mxu0 0
  %3679 = vmatpush1.bf16.msra.mxu0 %v199
  %3680 = vmatprep.subr.bf16.mxu0 0
  %3681 = vmatpush1.bf16.msra.mxu0 %v198
  %3682 = vmatprep.subr.bf16.mxu0 0
  %3683 = vmatpush1.bf16.msra.mxu0 %v197
  %3684 = vmatprep.subr.bf16.mxu0 0
  %3685 = vmatpush1.bf16.msra.mxu0 %v196
  %3686 = vmatprep.subr.bf16.mxu0 0
  %3687 = vmatpush1.bf16.msra.mxu0 %v195
  %3688 = vmatprep.subr.bf16.mxu0 0
  %3689 = vmatpush1.bf16.msra.mxu0 %v194
  %3690 = vmatprep.subr.bf16.mxu0 0
  %3691 = vmatpush1.bf16.msra.mxu0 %v193
  %3692 = vmatprep.subr.bf16.mxu0 0
  %3693 = vmatpush2.bf16.msra.mxu0 %v208
  %3694 = vmatprep.subr.bf16.mxu0 0
  %3695 = vmatpush2.bf16.msra.mxu0 %v207
  %3696 = vmatprep.subr.bf16.mxu0 0
  %3697 = vmatpush2.bf16.msra.mxu0 %v206
  %3698 = vmatprep.subr.bf16.mxu0 0
  %3699 = vmatpush2.bf16.msra.mxu0 %v205
  %3700 = vmatprep.subr.bf16.mxu0 0
  %3701 = vmatpush2.bf16.msra.mxu0 %v204
  %3702 = vmatprep.subr.bf16.mxu0 0
  %3703 = vmatpush2.bf16.msra.mxu0 %v203
  %3704 = vmatprep.subr.bf16.mxu0 0
  %3705 = vmatpush2.bf16.msra.mxu0 %v202
  %3706 = vmatprep.subr.bf16.mxu0 0
  %3707 = vmatpush2.bf16.msra.mxu0 %v201
  %3708 = vmatprep.mubr.bf16.mxu0 %v2689
  %3709 = vmatmul.mubr.bf16.gmra.mxu0 %v2688
  %v3710 = vpop.f32.mrf.mxu0
  %v3711 = vadd.f32 0.0, %v3710
  %v3712 = vpop.f32.mrf.mxu0
  %v3713 = vpop.f32.mrf.mxu0
  %v3714 = vpop.f32.mrf.mxu0
  %3715 = vdwg.mxu0
  %3716 = vmatprep.subr.bf16.mxu0 0
  %3717 = vmatpush1.bf16.msra.mxu0 %v343
  %3718 = vmatprep.subr.bf16.mxu0 0
  %3719 = vmatpush1.bf16.msra.mxu0 %v342
  %3720 = vmatprep.subr.bf16.mxu0 0
  %3721 = vmatpush1.bf16.msra.mxu0 %v341
  %3722 = vmatprep.subr.bf16.mxu0 0
  %3723 = vmatpush1.bf16.msra.mxu0 %v340
  %3724 = vmatprep.subr.bf16.mxu0 0
  %3725 = vmatpush1.bf16.msra.mxu0 %v339
  %3726 = vmatprep.subr.bf16.mxu0 0
  %3727 = vmatpush1.bf16.msra.mxu0 %v338
  %3728 = vmatprep.subr.bf16.mxu0 0
  %3729 = vmatpush1.bf16.msra.mxu0 %v337
  %3730 = vmatprep.subr.bf16.mxu0 0
  %3731 = vmatpush1.bf16.msra.mxu0 %v336
  %3732 = vmatprep.subr.bf16.mxu0 0
  %3733 = vmatpush2.bf16.msra.mxu0 %v351
  %3734 = vmatprep.subr.bf16.mxu0 0
  %3735 = vmatpush2.bf16.msra.mxu0 %v350
  %3736 = vmatprep.subr.bf16.mxu0 0
  %3737 = vmatpush2.bf16.msra.mxu0 %v349
  %3738 = vmatprep.subr.bf16.mxu0 0
  %3739 = vmatpush2.bf16.msra.mxu0 %v348
  %3740 = vmatprep.subr.bf16.mxu0 0
  %3741 = vmatpush2.bf16.msra.mxu0 %v347
  %3742 = vmatprep.subr.bf16.mxu0 0
  %3743 = vmatpush2.bf16.msra.mxu0 %v346
  %3744 = vmatprep.subr.bf16.mxu0 0
  %3745 = vmatpush2.bf16.msra.mxu0 %v345
  %3746 = vmatprep.subr.bf16.mxu0 0
  %3747 = vmatpush2.bf16.msra.mxu0 %v344
  %3748 = vmatprep.mubr.bf16.mxu0 %v2640
  %3749 = vmatmul.mubr.bf16.gmra.mxu0 %v2639
  %v3750 = vpop.f32.mrf.mxu0
  %v3751 = vadd.f32 %v3711, %v3750
  %v3752 = vpop.f32.mrf.mxu0
  %v3753 = vpop.f32.mrf.mxu0
  %v3754 = vpop.f32.mrf.mxu0
  %3755 = vdwg.mxu0
  %v3756 = vld [vmem:[%s3008 + $0x8] sm:$0xff]
  %v3758 = vunpack.c.l.b16 %v3756
  %v3759 = vunpack.c.h.b16 %v3756
  %v3760 = vpack.c.b16 %v3758, %v3758
  %v3761 = vpack.c.b16 %v3759, %v3759
  %3764 = vmatprep.subr.bf16.mxu0 0
  %3765 = vmatpush1.bf16.msra.mxu0 %v521
  %3766 = vmatprep.subr.bf16.mxu0 0
  %3767 = vmatpush1.bf16.msra.mxu0 %v520
  %3768 = vmatprep.subr.bf16.mxu0 0
  %3769 = vmatpush1.bf16.msra.mxu0 %v519
  %3770 = vmatprep.subr.bf16.mxu0 0
  %3771 = vmatpush1.bf16.msra.mxu0 %v518
  %3772 = vmatprep.subr.bf16.mxu0 0
  %3773 = vmatpush1.bf16.msra.mxu0 %v517
  %3774 = vmatprep.subr.bf16.mxu0 0
  %3775 = vmatpush1.bf16.msra.mxu0 %v516
  %3776 = vmatprep.subr.bf16.mxu0 0
  %3777 = vmatpush1.bf16.msra.mxu0 %v515
  %3778 = vmatprep.subr.bf16.mxu0 0
  %3779 = vmatpush1.bf16.msra.mxu0 %v514
  %3780 = vmatprep.subr.bf16.mxu0 0
  %3781 = vmatpush2.bf16.msra.mxu0 %v529
  %3782 = vmatprep.subr.bf16.mxu0 0
  %3783 = vmatpush2.bf16.msra.mxu0 %v528
  %3784 = vmatprep.subr.bf16.mxu0 0
  %3785 = vmatpush2.bf16.msra.mxu0 %v527
  %3786 = vmatprep.subr.bf16.mxu0 0
  %3787 = vmatpush2.bf16.msra.mxu0 %v526
  %3788 = vmatprep.subr.bf16.mxu0 0
  %3789 = vmatpush2.bf16.msra.mxu0 %v525
  %3790 = vmatprep.subr.bf16.mxu0 0
  %3791 = vmatpush2.bf16.msra.mxu0 %v524
  %3792 = vmatprep.subr.bf16.mxu0 0
  %3793 = vmatpush2.bf16.msra.mxu0 %v523
  %3794 = vmatprep.subr.bf16.mxu0 0
  %3795 = vmatpush2.bf16.msra.mxu0 %v522
  %3796 = vmatprep.mubr.bf16.mxu0 %v3761
  %3797 = vmatmul.mubr.bf16.gmra.mxu0 %v3760
  %v3798 = vpop.f32.mrf.mxu0
  %v3799 = vadd.f32 0.0, %v3798
  %v3800 = vpop.f32.mrf.mxu0
  %v3801 = vpop.f32.mrf.mxu0
  %v3802 = vpop.f32.mrf.mxu0
  %3803 = vdwg.mxu0
  %v3804 = vadd.f32 %v3751, %v3799
  %v3805 = vld [vmem:[%s3058 + $0x8] sm:$0xff]
  %v3807 = vunpack.c.l.b16 %v3805
  %v3808 = vunpack.c.h.b16 %v3805
  %v3809 = vpack.c.b16 %v3807, %v3807
  %v3810 = vpack.c.b16 %v3808, %v3808
  %3813 = vmatprep.subr.bf16.mxu0 0
  %3814 = vmatpush1.bf16.msra.mxu0 %v700
  %3815 = vmatprep.subr.bf16.mxu0 0
  %3816 = vmatpush1.bf16.msra.mxu0 %v699
  %3817 = vmatprep.subr.bf16.mxu0 0
  %3818 = vmatpush1.bf16.msra.mxu0 %v698
  %3819 = vmatprep.subr.bf16.mxu0 0
  %3820 = vmatpush1.bf16.msra.mxu0 %v697
  %3821 = vmatprep.subr.bf16.mxu0 0
  %3822 = vmatpush1.bf16.msra.mxu0 %v696
  %3823 = vmatprep.subr.bf16.mxu0 0
  %3824 = vmatpush1.bf16.msra.mxu0 %v695
  %3825 = vmatprep.subr.bf16.mxu0 0
  %3826 = vmatpush1.bf16.msra.mxu0 %v694
  %3827 = vmatprep.subr.bf16.mxu0 0
  %3828 = vmatpush1.bf16.msra.mxu0 %v693
  %3829 = vmatprep.subr.bf16.mxu0 0
  %3830 = vmatpush2.bf16.msra.mxu0 %v708
  %3831 = vmatprep.subr.bf16.mxu0 0
  %3832 = vmatpush2.bf16.msra.mxu0 %v707
  %3833 = vmatprep.subr.bf16.mxu0 0
  %3834 = vmatpush2.bf16.msra.mxu0 %v706
  %3835 = vmatprep.subr.bf16.mxu0 0
  %3836 = vmatpush2.bf16.msra.mxu0 %v705
  %3837 = vmatprep.subr.bf16.mxu0 0
  %3838 = vmatpush2.bf16.msra.mxu0 %v704
  %3839 = vmatprep.subr.bf16.mxu0 0
  %3840 = vmatpush2.bf16.msra.mxu0 %v703
  %3841 = vmatprep.subr.bf16.mxu0 0
  %3842 = vmatpush2.bf16.msra.mxu0 %v702
  %3843 = vmatprep.subr.bf16.mxu0 0
  %3844 = vmatpush2.bf16.msra.mxu0 %v701
  %3845 = vmatprep.mubr.bf16.mxu0 %v3810
  %3846 = vmatmul.mubr.bf16.gmra.mxu0 %v3809
  %v3847 = vpop.f32.mrf.mxu0
  %v3848 = vadd.f32 0.0, %v3847
  %v3849 = vpop.f32.mrf.mxu0
  %v3850 = vpop.f32.mrf.mxu0
  %v3851 = vpop.f32.mrf.mxu0
  %3852 = vdwg.mxu0
  %v3853 = vadd.f32 %v3804, %v3848
  %v3854 = vadd.f32 %v3853, %v770
  %vm3855 = vcmp.gt.f32.partialorder %v3854, 0.0
  %v3856 = vmul.f32 %v3854, 0.01
  %v3857 = vsel %vm3855, %v3854, %v3856
  %v3858 = vpack.c.bf16 %v3857, %v3857
  %v3860 = vsel %vm807, %v3858, 0
  %3862 = vmatprep.subr.bf16.mxu0 0
  %3863 = vmatpush1.bf16.msra.mxu0 0
  %3864 = vmatprep.subr.bf16.mxu0 0
  %3865 = vmatpush1.bf16.msra.mxu0 0
  %3866 = vmatprep.subr.bf16.mxu0 0
  %3867 = vmatpush1.bf16.msra.mxu0 0
  %3868 = vmatprep.subr.bf16.mxu0 0
  %3869 = vmatpush1.bf16.msra.mxu0 0
  %3870 = vmatprep.subr.bf16.mxu0 0
  %3871 = vmatpush1.bf16.msra.mxu0 %v802
  %3872 = vmatprep.subr.bf16.mxu0 0
  %3873 = vmatpush1.bf16.msra.mxu0 %v801
  %3874 = vmatprep.subr.bf16.mxu0 0
  %3875 = vmatpush1.bf16.msra.mxu0 %v800
  %3876 = vmatprep.subr.bf16.mxu0 0
  %3877 = vmatpush1.bf16.msra.mxu0 %v799
  %3878 = vmatprep.subr.bf16.mxu0 0
  %3879 = vmatpush2.bf16.msra.mxu0 0
  %3880 = vmatprep.subr.bf16.mxu0 0
  %3881 = vmatpush2.bf16.msra.mxu0 0
  %3882 = vmatprep.subr.bf16.mxu0 0
  %3883 = vmatpush2.bf16.msra.mxu0 0
  %3884 = vmatprep.subr.bf16.mxu0 0
  %3885 = vmatpush2.bf16.msra.mxu0 0
  %3886 = vmatprep.subr.bf16.mxu0 0
  %3887 = vmatpush2.bf16.msra.mxu0 0
  %3888 = vmatprep.subr.bf16.mxu0 0
  %3889 = vmatpush2.bf16.msra.mxu0 0
  %3890 = vmatprep.subr.bf16.mxu0 0
  %3891 = vmatpush2.bf16.msra.mxu0 0
  %3892 = vmatprep.subr.bf16.mxu0 0
  %3893 = vmatpush2.bf16.msra.mxu0 0
  %3894 = vmatprep.mubr.bf16.mxu0 0
  %3895 = vmatmul.mubr.bf16.gmra.mxu0 %v3860
  %v3896 = vpop.f32.mrf.mxu0
  %v3897 = vadd.f32 %v781, %v3896
  %v3898 = vpop.f32.mrf.mxu0
  %v3899 = vpop.f32.mrf.mxu0
  %v3900 = vpop.f32.mrf.mxu0
  %3901 = vdwg.mxu0
  %vm3902 = vcmp.gt.f32.partialorder %v3897, 0.0
  %v3903 = vmul.f32 %v3897, 0.01
  %v3904 = vsel %vm3902, %v3897, %v3903
  %v3905 = vpack.c.bf16 %v3904, %v3904
  %v3907 = vsel %vm873, %v3905, 0
  %3909 = vmatprep.subr.bf16.mxu0 0
  %3910 = vmatpush1.bf16.msra.mxu0 0
  %3911 = vmatprep.subr.bf16.mxu0 0
  %3912 = vmatpush1.bf16.msra.mxu0 0
  %3913 = vmatprep.subr.bf16.mxu0 0
  %3914 = vmatpush1.bf16.msra.mxu0 0
  %3915 = vmatprep.subr.bf16.mxu0 0
  %3916 = vmatpush1.bf16.msra.mxu0 0
  %3917 = vmatprep.subr.bf16.mxu0 0
  %3918 = vmatpush1.bf16.msra.mxu0 0
  %3919 = vmatprep.subr.bf16.mxu0 0
  %3920 = vmatpush1.bf16.msra.mxu0 0
  %3921 = vmatprep.subr.bf16.mxu0 0
  %3922 = vmatpush1.bf16.msra.mxu0 %v870
  %3923 = vmatprep.subr.bf16.mxu0 0
  %3924 = vmatpush1.bf16.msra.mxu0 %v869
  %3925 = vmatprep.subr.bf16.mxu0 0
  %3926 = vmatpush2.bf16.msra.mxu0 0
  %3927 = vmatprep.subr.bf16.mxu0 0
  %3928 = vmatpush2.bf16.msra.mxu0 0
  %3929 = vmatprep.subr.bf16.mxu0 0
  %3930 = vmatpush2.bf16.msra.mxu0 0
  %3931 = vmatprep.subr.bf16.mxu0 0
  %3932 = vmatpush2.bf16.msra.mxu0 0
  %3933 = vmatprep.subr.bf16.mxu0 0
  %3934 = vmatpush2.bf16.msra.mxu0 0
  %3935 = vmatprep.subr.bf16.mxu0 0
  %3936 = vmatpush2.bf16.msra.mxu0 0
  %3937 = vmatprep.subr.bf16.mxu0 0
  %3938 = vmatpush2.bf16.msra.mxu0 0
  %3939 = vmatprep.subr.bf16.mxu0 0
  %3940 = vmatpush2.bf16.msra.mxu0 0
  %3941 = vmatprep.mubr.bf16.mxu0 0
  %3942 = vmatmul.mubr.bf16.gmra.mxu0 %v3907
  %v3943 = vpop.f32.mrf.mxu0
  %v3944 = vadd.f32 %v859, %v3943
  %v3945 = vpop.f32.mrf.mxu0
  %v3946 = vpop.f32.mrf.mxu0
  %v3947 = vpop.f32.mrf.mxu0
  %3948 = vdwg.mxu0
  %vm3949 = vcmp.gt.f32.partialorder %v3944, 0.0
  %v3950 = vmul.f32 %v3944, 0.01
  %v3951 = vsel %vm3949, %v3944, %v3950
  %v3952 = vpack.c.bf16 %v3951, %v3951
  %v3954 = vsel %vm933, %v3952, 0
  %3956 = vmatprep.subr.bf16.mxu0 0
  %3957 = vmatpush1.bf16.msra.mxu0 0
  %3958 = vmatprep.subr.bf16.mxu0 0
  %3959 = vmatpush1.bf16.msra.mxu0 0
  %3960 = vmatprep.subr.bf16.mxu0 0
  %3961 = vmatpush1.bf16.msra.mxu0 0
  %3962 = vmatprep.subr.bf16.mxu0 0
  %3963 = vmatpush1.bf16.msra.mxu0 0
  %3964 = vmatprep.subr.bf16.mxu0 0
  %3965 = vmatpush1.bf16.msra.mxu0 0
  %3966 = vmatprep.subr.bf16.mxu0 0
  %3967 = vmatpush1.bf16.msra.mxu0 0
  %3968 = vmatprep.subr.bf16.mxu0 0
  %3969 = vmatpush1.bf16.msra.mxu0 0
  %3970 = vmatprep.subr.bf16.mxu0 0
  %3971 = vmatpush1.bf16.msra.mxu0 %v931
  %3972 = vmatprep.subr.bf16.mxu0 0
  %3973 = vmatpush2.bf16.msra.mxu0 0
  %3974 = vmatprep.subr.bf16.mxu0 0
  %3975 = vmatpush2.bf16.msra.mxu0 0
  %3976 = vmatprep.subr.bf16.mxu0 0
  %3977 = vmatpush2.bf16.msra.mxu0 0
  %3978 = vmatprep.subr.bf16.mxu0 0
  %3979 = vmatpush2.bf16.msra.mxu0 0
  %3980 = vmatprep.subr.bf16.mxu0 0
  %3981 = vmatpush2.bf16.msra.mxu0 0
  %3982 = vmatprep.subr.bf16.mxu0 0
  %3983 = vmatpush2.bf16.msra.mxu0 0
  %3984 = vmatprep.subr.bf16.mxu0 0
  %3985 = vmatpush2.bf16.msra.mxu0 0
  %3986 = vmatprep.subr.bf16.mxu0 0
  %3987 = vmatpush2.bf16.msra.mxu0 0
  %3988 = vmatprep.mubr.bf16.mxu0 0
  %3989 = vmatmul.mubr.bf16.gmra.mxu0 %v3954
  %v3990 = vpop.f32.mrf.mxu0
  %v3991 = vadd.f32 %v925, %v3990
  %v3992 = vpop.f32.mrf.mxu0
  %v3993 = vpop.f32.mrf.mxu0
  %v3994 = vpop.f32.mrf.mxu0
  %3995 = vdwg.mxu0
  %vm3996 = vcmp.gt.f32.partialorder %v3991, 0.0
  %v3997 = vmul.f32 %v3991, 0.01
  %v3998 = vsel %vm3996, %v3991, %v3997
  %v3999 = vpack.c.bf16 %v3998, %v3998
  %s4000 = scalar_lea.vmem %s9, 32
  %v4001 = vld [vmem:[%s4000] sm:$0xf]
  %v4003 = vsel %vm1324, %v3999, 0
  %v4006 = vsel %vm1328, %v4001, 0
  %4008 = vmatprep.subr.bf16.mxu0 0
  %4009 = vmatpush1.bf16.msra.mxu0 0
  %4010 = vmatprep.subr.bf16.mxu0 0
  %4011 = vmatpush1.bf16.msra.mxu0 0
  %4012 = vmatprep.subr.bf16.mxu0 0
  %4013 = vmatpush1.bf16.msra.mxu0 0
  %4014 = vmatprep.subr.bf16.mxu0 0
  %4015 = vmatpush1.bf16.msra.mxu0 0
  %4016 = vmatprep.subr.bf16.mxu0 0
  %4017 = vmatpush1.bf16.msra.mxu0 0
  %4018 = vmatprep.subr.bf16.mxu0 0
  %4019 = vmatpush1.bf16.msra.mxu0 0
  %4020 = vmatprep.subr.bf16.mxu0 0
  %4021 = vmatpush1.bf16.msra.mxu0 0
  %4022 = vmatprep.subr.bf16.mxu0 0
  %4023 = vmatpush1.bf16.msra.mxu0 %v4006
  %4024 = vmatprep.subr.bf16.mxu0 0
  %4025 = vmatpush2.bf16.msra.mxu0 0
  %4026 = vmatprep.subr.bf16.mxu0 0
  %4027 = vmatpush2.bf16.msra.mxu0 0
  %4028 = vmatprep.subr.bf16.mxu0 0
  %4029 = vmatpush2.bf16.msra.mxu0 0
  %4030 = vmatprep.subr.bf16.mxu0 0
  %4031 = vmatpush2.bf16.msra.mxu0 0
  %4032 = vmatprep.subr.bf16.mxu0 0
  %4033 = vmatpush2.bf16.msra.mxu0 0
  %4034 = vmatprep.subr.bf16.mxu0 0
  %4035 = vmatpush2.bf16.msra.mxu0 0
  %4036 = vmatprep.subr.bf16.mxu0 0
  %4037 = vmatpush2.bf16.msra.mxu0 0
  %4038 = vmatprep.subr.bf16.mxu0 0
  %4039 = vmatpush2.bf16.msra.mxu0 0
  %4040 = vmatprep.mubr.bf16.mxu0 0
  %4041 = vmatmul.mubr.bf16.gmra.mxu0 %v4003
  %v4042 = vpop.f32.mrf.mxu0
  %v4043 = vadd.f32 0.0, %v4042
  %v4044 = vpop.f32.mrf.mxu0
  %v4045 = vpop.f32.mrf.mxu0
  %v4046 = vpop.f32.mrf.mxu0
  %4047 = vdwg.mxu0
  %v4048 = vadd.f32 %v3675, %v4043
  %4049 = vst [vmem:[%s10] sm:$0xff] %v4048
  // Predicated region
  $region42: #{featdisnet_forward.1} parent=0 // pred_check
    _
  $region43: #{featdisnet_forward.1} parent=0 // pred_check_branch
    %4051 = sbr.rel (0) target = $region45
  $region44: #{featdisnet_forward.1} parent=0 // pred_region
    _
  $region45: #{featdisnet_forward.1} parent=0 // pred_fallthru
    _
  // Predicated region
  $region46: #{featdisnet_forward.1} parent=0 // pred_check
    _
  $region47: #{featdisnet_forward.1} parent=0 // pred_check_branch
    %4053 = sbr.rel (0) target = $region49
  $region48: #{featdisnet_forward.1} parent=0 // pred_region
    _
  $region49: #{featdisnet_forward.1} parent=0 // pred_fallthru
    _

</llo_original>
